<compile_context>
chip_gen: v6e
topology: v6e:2x2x1
jax: 0.10.0
libtpu: 0.0.40
codegen_flags: <defaults>
</compile_context>

<pallas_src>
import functools

import jax
import jax.numpy as jnp
from jax.experimental import pallas as pl
from jax.experimental.pallas import tpu as pltpu

EPS = 1e-5   # nn.BatchNorm2d default
LANE = 128


def _round_up(x, m):
    return (x + m - 1) // m * m


def _pick_batch_block(n):
    """Largest divisor of n that is <= 8, preferring ones that keep >= 4 grid
    steps (pipeline depth; >= 2 steps per TensorCore on v7x)."""
    divs = [b for b in range(1, min(n, 8) + 1) if n % b == 0]
    deep = [b for b in divs if n // b >= 4]
    return max(deep) if deep else max(divs)


# ----------------------------- Pallas kernels ------------------------------

def _pool_conv1_kernel(B, H2, W2, Cin, Cp,
                       x_ref, w_ref, y_ref, stats_ref, lhs_ref):
    """Fused 2x2 max-pool + 3x3 conv1 (one im2col MXU matmul) + BN1 partials.

    x_ref    : (B, H2, 2, W2, 2*Cin) f32  raw NHWC input, pool pairs exposed
    w_ref    : (9*Cin, Cp)          bf16  conv1 weights (tap-major rows)
    y_ref    : (B, H2*W2, Cp)       bf16  pre-BN conv1 activations
    stats_ref: (1, 2, Cp)           f32   block-local [sum ; sum of squares]
    lhs_ref  : (B*H2*W2, 9*Cin)     f32   im2col scratch (cast to bf16 once)
    """
    F = H2 * W2

    # ---- 2x2 max pool fully in-kernel (pooled tensor never touches HBM) ----
    x = x_ref[...]                                            # (B,H2,2,W2,2Cin)
    hmax = jnp.maximum(x[:, :, 0], x[:, :, 1])                # (B,H2,W2,2Cin)
    pooled = jnp.maximum(hmax[..., :Cin], hmax[..., Cin:])    # (B,H2,W2,Cin)

    # ---- zero-pad H and W by 1 (conv padding=1) ----
    zr = jnp.zeros((B, 1, W2, Cin), pooled.dtype)
    zc = jnp.zeros((B, H2 + 2, 1, Cin), pooled.dtype)
    p = jnp.concatenate([zr, pooled, zr], axis=1)
    p = jnp.concatenate([zc, p, zc], axis=2)                  # (B,H2+2,W2+2,Cin)

    # ---- im2col: each shifted tap lands in its lane columns of the scratch ----
    for kh in range(3):
        for kw in range(3):
            t = kh * 3 + kw
            tap = p[:, kh:kh + H2, kw:kw + W2, :].reshape(B * F, Cin)
            lhs_ref[:, t * Cin:(t + 1) * Cin] = tap

    # ---- single MXU matmul: (B*F, 9*Cin) @ (9*Cin, Cp), bf16 in / f32 acc ----
    lhs = lhs_ref[...].astype(jnp.bfloat16)                   # one cast
    out = jnp.dot(lhs, w_ref[...], preferred_element_type=jnp.float32)

    # ---- per-block BatchNorm partial statistics (f32) ----
    psum = jnp.sum(out, axis=0, keepdims=True)
    psq = jnp.sum(out * out, axis=0, keepdims=True)
    stats_ref[0] = jnp.concatenate([psum, psq], axis=0)

    # ---- bf16 lane-dense writeback ----
    y_ref[...] = out.reshape(B, F, Cp).astype(jnp.bfloat16)


def _bn_relu_conv2_kernel(B, H2, W2, Cp,
                          y1_ref, w_ref, scale_ref, shift_ref,
                          y2_ref, stats_ref, lhs_ref):
    """Fused BN1-apply + ReLU + 3x3 conv2 (one K=9*Cp matmul) + BN2 partials.

    y1_ref   : (B, H2*W2, Cp)  bf16   pre-BN conv1 activations
    w_ref    : (9*Cp, Cp)      bf16   conv2 weights (tap-major rows)
    scale/shift : (1, Cp)      f32    folded BN1 params
    y2_ref   : (B, H2*W2, Cp)  bf16   pre-BN conv2 activations
    stats_ref: (1, 2, Cp)      f32
    lhs_ref  : (B*H2*W2, 9*Cp) bf16   im2col scratch (128-lane aligned stores)
    """
    F = H2 * W2

    # ---- BN1 apply + ReLU in f32, then a single bf16 cast ----
    y1 = y1_ref[...].astype(jnp.float32)                      # (B,F,Cp)
    act = jnp.maximum(y1 * scale_ref[...] + shift_ref[...], 0.0)
    act = act.astype(jnp.bfloat16).reshape(B, H2, W2, Cp)

    # ---- zero-pad H and W by 1 (zeros are exact post-BN pad: see host notes) ----
    zr = jnp.zeros((B, 1, W2, Cp), jnp.bfloat16)
    zc = jnp.zeros((B, H2 + 2, 1, Cp), jnp.bfloat16)
    p = jnp.concatenate([zr, act, zr], axis=1)
    p = jnp.concatenate([zc, p, zc], axis=2)                  # (B,H2+2,W2+2,Cp)

    # ---- im2col into lane-aligned columns (full 128-lane unmasked stores) ----
    for kh in range(3):
        for kw in range(3):
            t = kh * 3 + kw
            tap = p[:, kh:kh + H2, kw:kw + W2, :].reshape(B * F, Cp)
            lhs_ref[:, t * Cp:(t + 1) * Cp] = tap

    # ---- single MXU matmul with K = 9*Cp (accumulates inside the MXU) ----
    out = jnp.dot(lhs_ref[...], w_ref[...], preferred_element_type=jnp.float32)

    psum = jnp.sum(out, axis=0, keepdims=True)
    psq = jnp.sum(out * out, axis=0, keepdims=True)
    stats_ref[0] = jnp.concatenate([psum, psq], axis=0)

    y2_ref[...] = out.reshape(B, F, Cp).astype(jnp.bfloat16)


# ------------------------------ host helpers --------------------------------

def _pad_vec(v, cp):
    return jnp.zeros((cp,), jnp.float32).at[:v.shape[0]].set(v)


def _bn_scale_shift(stats, gamma_p, beta_p, count):
    # stats: (G, 2, Cp) per-block [sum, sum_sq] over valid pixels.
    s = jnp.sum(stats, axis=0)                     # (2, Cp) - tiny reduction
    mean = s[0] / count
    # Biased variance via E[x^2] - E[x]^2 in f32; fine at these scales.
    # TODO(synk): use a centered second pass / Welford for large-magnitude
    # activations in real workloads.
    var = jnp.maximum(s[1] / count - mean * mean, 0.0)
    scale = gamma_p / jnp.sqrt(var + EPS)          # gamma folded into the scale
    shift = beta_p - mean * scale
    # Padded channels: gamma_p = 0 -> scale = shift = 0, so padded lanes stay 0.
    return scale.reshape(1, -1), shift.reshape(1, -1)


# ------------------------------ forward pass --------------------------------

@jax.jit
def downsamp_forward(x_nchw, params):
    """DownSamp forward: NCHW in -> NCHW out (N, Cout, H/2, W/2)."""
    x = jnp.transpose(x_nchw, (0, 2, 3, 1))        # NCHW -> NHWC
    N, H, W, Cin = x.shape
    assert H % 2 == 0 and W % 2 == 0, "MaxPool2d(2) path assumes even H, W"
    H2, W2 = H // 2, W // 2
    F = H2 * W2
    Cout = params["w1"].shape[-1]
    Cp = _round_up(Cout, LANE)                     # lane-dense padded channels
    count = float(N * H2 * W2)

    B = _pick_batch_block(N)                       # images per grid step
    G = N // B
    # TODO(synk): for large H*W also tile image rows with a 1-row halo; here
    # the whole (pooled) image block fits comfortably in VMEM.

    # Pool pairs exposed by a free host reshape: (N, H2, 2, W2, 2*Cin).
    x6 = x.reshape(N, H2, 2, W2, 2 * Cin)

    # Conv weights: HWIO -> (9*Cin, Cp) / (9*Cp, Cp), tap-major, bf16.
    w1p = (jnp.zeros((9 * Cin, Cp), jnp.float32)
           .at[:, :Cout].set(params["w1"].reshape(9 * Cin, Cout))
           ).astype(jnp.bfloat16)
    w2p = (jnp.zeros((3, 3, Cp, Cp), jnp.float32)
           .at[:, :, :Cout, :Cout].set(params["w2"])
           ).reshape(9 * Cp, Cp).astype(jnp.bfloat16)
    g1p, b1p = _pad_vec(params["g1"], Cp), _pad_vec(params["beta1"], Cp)
    g2p, b2p = _pad_vec(params["g2"], Cp), _pad_vec(params["beta2"], Cp)
    # NOTE: conv biases are intentionally unused: training-mode BatchNorm
    # subtracts the batch mean, which cancels a per-channel bias exactly.

    mosaic = pltpu.CompilerParams(
        dimension_semantics=("parallel",),         # batch blocks across v7x TCs
    )

    # --- kernel 1: fused maxpool + conv1 (im2col matmul) + BN1 partial stats ---
    y1, stats1 = pl.pallas_call(
        functools.partial(_pool_conv1_kernel, B, H2, W2, Cin, Cp),
        grid=(G,),
        in_specs=[
            pl.BlockSpec((B, H2, 2, W2, 2 * Cin), lambda g: (g, 0, 0, 0, 0)),
            pl.BlockSpec((9 * Cin, Cp), lambda g: (0, 0)),
        ],
        out_specs=[
            pl.BlockSpec((B, F, Cp), lambda g: (g, 0, 0)),
            pl.BlockSpec((1, 2, Cp), lambda g: (g, 0, 0)),
        ],
        out_shape=[
            jax.ShapeDtypeStruct((N, F, Cp), jnp.bfloat16),
            jax.ShapeDtypeStruct((G, 2, Cp), jnp.float32),
        ],
        scratch_shapes=[pltpu.VMEM((B * F, 9 * Cin), jnp.float32)],
        compiler_params=mosaic,
    )(x6, w1p)

    scale1, shift1 = _bn_scale_shift(stats1, g1p, b1p, count)

    # --- kernel 2: BN1-apply + ReLU + conv2 (K=9*Cp matmul) + BN2 partials ---
    y2, stats2 = pl.pallas_call(
        functools.partial(_bn_relu_conv2_kernel, B, H2, W2, Cp),
        grid=(G,),
        in_specs=[
            pl.BlockSpec((B, F, Cp), lambda g: (g, 0, 0)),
            pl.BlockSpec((9 * Cp, Cp), lambda g: (0, 0)),
            pl.BlockSpec((1, Cp), lambda g: (0, 0)),
            pl.BlockSpec((1, Cp), lambda g: (0, 0)),
        ],
        out_specs=[
            pl.BlockSpec((B, F, Cp), lambda g: (g, 0, 0)),
            pl.BlockSpec((1, 2, Cp), lambda g: (g, 0, 0)),
        ],
        out_shape=[
            jax.ShapeDtypeStruct((N, F, Cp), jnp.bfloat16),
            jax.ShapeDtypeStruct((G, 2, Cp), jnp.float32),
        ],
        scratch_shapes=[pltpu.VMEM((B * F, 9 * Cp), jnp.bfloat16)],
        compiler_params=mosaic,
    )(y1, w2p, scale1, shift1)

    scale2, shift2 = _bn_scale_shift(stats2, g2p, b2p, count)

    # --- BN2-apply + ReLU epilogue in plain jnp: XLA fuses it with the
    #     channel slice and the NHWC->NCHW transpose (no third kernel launch,
    #     no HBM pass over padded lanes). ---
    z = jnp.maximum(y2.astype(jnp.float32) * scale2 + shift2, 0.0)
    z = z.reshape(N, H2, W2, Cp)[..., :Cout]
    return jnp.transpose(z, (0, 3, 1, 2))
    # TODO(synk): BatchNorm running_mean/running_var buffer updates (stateful
    # training side effect) are not materialized; they do not affect the
    # forward output.


# --------------------------- pure-JAX reference -----------------------------

def _ref_conv_bn_relu(x, w_hwio, b, gamma, beta):
    y = jax.lax.conv_general_dilated(
        x, w_hwio, window_strides=(1, 1), padding="SAME",
        dimension_numbers=("NHWC", "HWIO", "NHWC"),
        precision=jax.lax.Precision.HIGHEST)
    y = y + b       # bias included here; cancelled exactly by training-mode BN
    mean = jnp.mean(y, axis=(0, 1, 2), keepdims=True)
    var = jnp.mean((y - mean) ** 2, axis=(0, 1, 2), keepdims=True)
    y = (y - mean) / jnp.sqrt(var + EPS) * gamma + beta
    return jnp.maximum(y, 0.0)


def reference_forward(x_nchw, params):
    x = jnp.transpose(x_nchw, (0, 2, 3, 1))
    N, H, W, C = x.shape
    x = x.reshape(N, H // 2, 2, W // 2, 2, C).max(axis=(2, 4))
    x = _ref_conv_bn_relu(x, params["w1"], params["b1"], params["g1"], params["beta1"])
    x = _ref_conv_bn_relu(x, params["w2"], params["b2"], params["g2"], params["beta2"])
    return jnp.transpose(x, (0, 3, 1, 2))


# ------------------------------ param init ----------------------------------

def init_params(key, cin, cout):
    # Conv weights stored HWIO (== PyTorch OIHW transposed by (2,3,1,0)).
    ks = jax.random.split(key, 8)
    return {
        "w1": 0.2 * jax.random.normal(ks[0], (3, 3, cin, cout), jnp.float32),
        "b1": 0.1 * jax.random.normal(ks[1], (cout,), jnp.float32),
        "g1": 1.0 + 0.1 * jax.random.normal(ks[2], (cout,), jnp.float32),
        "beta1": 0.1 * jax.random.normal(ks[3], (cout,), jnp.float32),
        "w2": 0.2 * jax.random.normal(ks[4], (3, 3, cout, cout), jnp.float32),
        "b2": 0.1 * jax.random.normal(ks[5], (cout,), jnp.float32),
        "g2": 1.0 + 0.1 * jax.random.normal(ks[6], (cout,), jnp.float32),
        "beta2": 0.1 * jax.random.normal(ks[7], (cout,), jnp.float32),
    }


# --------------------------------- main --------------------------------------

if __name__ == "__main__":
    key = jax.random.PRNGKey(0)
    k_x, k_p = jax.random.split(key)

    N, Cin, H, W = 2, 4, 16, 16
    Cout = 8

    x = jax.random.normal(k_x, (N, Cin, H, W), jnp.float32)   # NCHW, like torch
    params = init_params(k_p, Cin, Cout)

    out = jax.block_until_ready(downsamp_forward(x, params))
    ref = jax.block_until_ready(reference_forward(x, params))

    assert out.shape == (N, Cout, H // 2, W // 2), out.shape
    err = float(jnp.max(jnp.abs(out - ref)))
    # bf16 MXU inputs and bf16 inter-stage activations (f32 accumulation and
    # f32 BN statistics) vs. an f32 Precision.HIGHEST reference.
    assert err < 7.5e-2, f"max abs error vs reference too large: {err}"

    print("KERNEL_OK")
</pallas_src>

<mosaic_0001>
module attributes {stable_mosaic.version = 11 : i64} {
  func.func @_bn_relu_conv2_kernel(%arg0: i32, %arg1: memref<2x64x128xbf16, #tpu.memory_space<vmem>>, %arg2: memref<1152x128xbf16, #tpu.memory_space<vmem>>, %arg3: memref<1x128xf32, #tpu.memory_space<vmem>>, %arg4: memref<1x128xf32, #tpu.memory_space<vmem>>, %arg5: memref<2x64x128xbf16, #tpu.memory_space<vmem>>, %arg6: memref<1x2x128xf32, #tpu.memory_space<vmem>>, %arg7: memref<128x1152xbf16, #tpu.memory_space<vmem>>) attributes {dimension_semantics = [#tpu.dimension_semantics<parallel>], iteration_bounds = array<i64: 1>, scalar_prefetch = 0 : i64, scratch_operands = 1 : i64, tpu.core_type = #tpu.core_type<tc>, window_params = [{transform_indices = @transform_0, window_bounds = array<i64: 2, 64, 128>}, {pipeline_mode = #tpu.pipeline_mode<synchronous>, transform_indices = @transform_1, window_bounds = array<i64: 1152, 128>}, {pipeline_mode = #tpu.pipeline_mode<synchronous>, transform_indices = @transform_2, window_bounds = array<i64: 1, 128>}, {pipeline_mode = #tpu.pipeline_mode<synchronous>, transform_indices = @transform_3, window_bounds = array<i64: 1, 128>}, {transform_indices = @transform_4, window_bounds = array<i64: 2, 64, 128>}, {transform_indices = @transform_5, window_bounds = array<i64: 1, 2, 128>}]} {
    %c0 = arith.constant 0 : index
    %c0_0 = arith.constant 0 : index
    %c0_1 = arith.constant 0 : index
    %0 = vector.load %arg1[%c0, %c0_0, %c0_1] : memref<2x64x128xbf16, #tpu.memory_space<vmem>>, vector<2x64x128xbf16>
    %1 = arith.extf %0 : vector<2x64x128xbf16> to vector<2x64x128xf32>
    %c0_2 = arith.constant 0 : index
    %c0_3 = arith.constant 0 : index
    %2 = vector.load %arg3[%c0_2, %c0_3] : memref<1x128xf32, #tpu.memory_space<vmem>>, vector<1x128xf32>
    %3 = vector.shape_cast %2 : vector<1x128xf32> to vector<1x1x128xf32>
    %4 = vector.broadcast %3 : vector<1x1x128xf32> to vector<2x64x128xf32>
    %5 = arith.mulf %1, %4 : vector<2x64x128xf32>
    %c0_4 = arith.constant 0 : index
    %c0_5 = arith.constant 0 : index
    %6 = vector.load %arg4[%c0_4, %c0_5] : memref<1x128xf32, #tpu.memory_space<vmem>>, vector<1x128xf32>
    %7 = vector.shape_cast %6 : vector<1x128xf32> to vector<1x1x128xf32>
    %8 = vector.broadcast %7 : vector<1x1x128xf32> to vector<2x64x128xf32>
    %9 = arith.addf %5, %8 : vector<2x64x128xf32>
    %cst = arith.constant 0.000000e+00 : f32
    %10 = vector.broadcast %cst : f32 to vector<2x64x128xf32>
    %11 = arith.maximumf %9, %10 : vector<2x64x128xf32>
    %12 = arith.truncf %11 : vector<2x64x128xf32> to vector<2x64x128xbf16>
    %13 = vector.shape_cast %12 : vector<2x64x128xbf16> to vector<2x8x8x128xbf16>
    %cst_6 = arith.constant 0.000000e+00 : bf16
    %14 = vector.broadcast %cst_6 : bf16 to vector<2x1x8x128xbf16>
    %cst_7 = arith.constant 0.000000e+00 : bf16
    %15 = vector.broadcast %cst_7 : bf16 to vector<2x10x1x128xbf16>
    %16 = tpu.concatenate %14, %13, %14 in 1 : vector<2x1x8x128xbf16>, vector<2x8x8x128xbf16>, vector<2x1x8x128xbf16> -> vector<2x10x8x128xbf16>
    %17 = tpu.concatenate %15, %16, %15 in 2 : vector<2x10x1x128xbf16>, vector<2x10x8x128xbf16>, vector<2x10x1x128xbf16> -> vector<2x10x10x128xbf16>
    %18 = vector.extract_strided_slice %17 {offsets = [0, 0, 0, 0], sizes = [2, 8, 8, 128], strides = [1, 1, 1, 1]} : vector<2x10x10x128xbf16> to vector<2x8x8x128xbf16>
    %19 = vector.shape_cast %18 : vector<2x8x8x128xbf16> to vector<128x128xbf16>
    %c0_8 = arith.constant 0 : index
    %c0_9 = arith.constant 0 : index
    %20 = vector.load %arg7[%c0_8, %c0_9] : memref<128x1152xbf16, #tpu.memory_space<vmem>>, vector<128x128xbf16>
    tpu.vector_store %arg7[%c0_8, %c0_9], %19 {strides = array<i32>} : memref<128x1152xbf16, #tpu.memory_space<vmem>>, vector<128x128xbf16>,
    %21 = vector.extract_strided_slice %17 {offsets = [0, 0, 1, 0], sizes = [2, 8, 8, 128], strides = [1, 1, 1, 1]} : vector<2x10x10x128xbf16> to vector<2x8x8x128xbf16>
    %22 = vector.shape_cast %21 : vector<2x8x8x128xbf16> to vector<128x128xbf16>
    %c0_10 = arith.constant 0 : index
    %c128 = arith.constant 128 : index
    %23 = vector.load %arg7[%c0_10, %c128] : memref<128x1152xbf16, #tpu.memory_space<vmem>>, vector<128x128xbf16>
    tpu.vector_store %arg7[%c0_10, %c128], %22 {strides = array<i32>} : memref<128x1152xbf16, #tpu.memory_space<vmem>>, vector<128x128xbf16>,
    %24 = vector.extract_strided_slice %17 {offsets = [0, 0, 2, 0], sizes = [2, 8, 8, 128], strides = [1, 1, 1, 1]} : vector<2x10x10x128xbf16> to vector<2x8x8x128xbf16>
    %25 = vector.shape_cast %24 : vector<2x8x8x128xbf16> to vector<128x128xbf16>
    %c0_11 = arith.constant 0 : index
    %c256 = arith.constant 256 : index
    %26 = vector.load %arg7[%c0_11, %c256] : memref<128x1152xbf16, #tpu.memory_space<vmem>>, vector<128x128xbf16>
    tpu.vector_store %arg7[%c0_11, %c256], %25 {strides = array<i32>} : memref<128x1152xbf16, #tpu.memory_space<vmem>>, vector<128x128xbf16>,
    %27 = vector.extract_strided_slice %17 {offsets = [0, 1, 0, 0], sizes = [2, 8, 8, 128], strides = [1, 1, 1, 1]} : vector<2x10x10x128xbf16> to vector<2x8x8x128xbf16>
    %28 = vector.shape_cast %27 : vector<2x8x8x128xbf16> to vector<128x128xbf16>
    %c0_12 = arith.constant 0 : index
    %c384 = arith.constant 384 : index
    %29 = vector.load %arg7[%c0_12, %c384] : memref<128x1152xbf16, #tpu.memory_space<vmem>>, vector<128x128xbf16>
    tpu.vector_store %arg7[%c0_12, %c384], %28 {strides = array<i32>} : memref<128x1152xbf16, #tpu.memory_space<vmem>>, vector<128x128xbf16>,
    %30 = vector.extract_strided_slice %17 {offsets = [0, 1, 1, 0], sizes = [2, 8, 8, 128], strides = [1, 1, 1, 1]} : vector<2x10x10x128xbf16> to vector<2x8x8x128xbf16>
    %31 = vector.shape_cast %30 : vector<2x8x8x128xbf16> to vector<128x128xbf16>
    %c0_13 = arith.constant 0 : index
    %c512 = arith.constant 512 : index
    %32 = vector.load %arg7[%c0_13, %c512] : memref<128x1152xbf16, #tpu.memory_space<vmem>>, vector<128x128xbf16>
    tpu.vector_store %arg7[%c0_13, %c512], %31 {strides = array<i32>} : memref<128x1152xbf16, #tpu.memory_space<vmem>>, vector<128x128xbf16>,
    %33 = vector.extract_strided_slice %17 {offsets = [0, 1, 2, 0], sizes = [2, 8, 8, 128], strides = [1, 1, 1, 1]} : vector<2x10x10x128xbf16> to vector<2x8x8x128xbf16>
    %34 = vector.shape_cast %33 : vector<2x8x8x128xbf16> to vector<128x128xbf16>
    %c0_14 = arith.constant 0 : index
    %c640 = arith.constant 640 : index
    %35 = vector.load %arg7[%c0_14, %c640] : memref<128x1152xbf16, #tpu.memory_space<vmem>>, vector<128x128xbf16>
    tpu.vector_store %arg7[%c0_14, %c640], %34 {strides = array<i32>} : memref<128x1152xbf16, #tpu.memory_space<vmem>>, vector<128x128xbf16>,
    %36 = vector.extract_strided_slice %17 {offsets = [0, 2, 0, 0], sizes = [2, 8, 8, 128], strides = [1, 1, 1, 1]} : vector<2x10x10x128xbf16> to vector<2x8x8x128xbf16>
    %37 = vector.shape_cast %36 : vector<2x8x8x128xbf16> to vector<128x128xbf16>
    %c0_15 = arith.constant 0 : index
    %c768 = arith.constant 768 : index
    %38 = vector.load %arg7[%c0_15, %c768] : memref<128x1152xbf16, #tpu.memory_space<vmem>>, vector<128x128xbf16>
    tpu.vector_store %arg7[%c0_15, %c768], %37 {strides = array<i32>} : memref<128x1152xbf16, #tpu.memory_space<vmem>>, vector<128x128xbf16>,
    %39 = vector.extract_strided_slice %17 {offsets = [0, 2, 1, 0], sizes = [2, 8, 8, 128], strides = [1, 1, 1, 1]} : vector<2x10x10x128xbf16> to vector<2x8x8x128xbf16>
    %40 = vector.shape_cast %39 : vector<2x8x8x128xbf16> to vector<128x128xbf16>
    %c0_16 = arith.constant 0 : index
    %c896 = arith.constant 896 : index
    %41 = vector.load %arg7[%c0_16, %c896] : memref<128x1152xbf16, #tpu.memory_space<vmem>>, vector<128x128xbf16>
    tpu.vector_store %arg7[%c0_16, %c896], %40 {strides = array<i32>} : memref<128x1152xbf16, #tpu.memory_space<vmem>>, vector<128x128xbf16>,
    %42 = vector.extract_strided_slice %17 {offsets = [0, 2, 2, 0], sizes = [2, 8, 8, 128], strides = [1, 1, 1, 1]} : vector<2x10x10x128xbf16> to vector<2x8x8x128xbf16>
    %43 = vector.shape_cast %42 : vector<2x8x8x128xbf16> to vector<128x128xbf16>
    %c0_17 = arith.constant 0 : index
    %c1024 = arith.constant 1024 : index
    %44 = vector.load %arg7[%c0_17, %c1024] : memref<128x1152xbf16, #tpu.memory_space<vmem>>, vector<128x128xbf16>
    tpu.vector_store %arg7[%c0_17, %c1024], %43 {strides = array<i32>} : memref<128x1152xbf16, #tpu.memory_space<vmem>>, vector<128x128xbf16>,
    %c0_18 = arith.constant 0 : index
    %c0_19 = arith.constant 0 : index
    %45 = vector.load %arg7[%c0_18, %c0_19] : memref<128x1152xbf16, #tpu.memory_space<vmem>>, vector<128x1152xbf16>
    %c0_20 = arith.constant 0 : index
    %c0_21 = arith.constant 0 : index
    %46 = vector.load %arg2[%c0_20, %c0_21] : memref<1152x128xbf16, #tpu.memory_space<vmem>>, vector<1152x128xbf16>
    %cst_22 = arith.constant dense<0.000000e+00> : vector<128x128xf32>
    %47 = tpu.matmul %45, %46, %cst_22 {dimension_numbers = #tpu.dot_dimension_numbers<[1], [0], [0], [1], [0, 0, 1, 1], [], []>} : vector<128x1152xbf16>, vector<1152x128xbf16>, vector<128x128xf32> -> vector<128x128xf32>
    %cst_23 = arith.constant dense<0.000000e+00> : vector<128xf32>
    %48 = vector.multi_reduction <add>, %47, %cst_23 [0] : vector<128x128xf32> to vector<128xf32>
    %49 = vector.shape_cast %48 : vector<128xf32> to vector<1x128xf32>
    %50 = arith.mulf %47, %47 : vector<128x128xf32>
    %cst_24 = arith.constant dense<0.000000e+00> : vector<128xf32>
    %51 = vector.multi_reduction <add>, %50, %cst_24 [0] : vector<128x128xf32> to vector<128xf32>
    %52 = vector.shape_cast %51 : vector<128xf32> to vector<1x128xf32>
    %53 = tpu.concatenate %49, %52 in 0 : vector<1x128xf32>, vector<1x128xf32> -> vector<2x128xf32>
    %c0_25 = arith.constant 0 : index
    %c0_26 = arith.constant 0 : index
    %c0_27 = arith.constant 0 : index
    %54 = vector.load %arg6[%c0_25, %c0_26, %c0_27] : memref<1x2x128xf32, #tpu.memory_space<vmem>>, vector<1x2x128xf32>
    %55 = vector.shape_cast %54 : vector<1x2x128xf32> to vector<2x128xf32>
    %56 = vector.shape_cast %53 : vector<2x128xf32> to vector<1x2x128xf32>
    tpu.vector_store %arg6[%c0_25, %c0_26, %c0_27], %56 {strides = array<i32>} : memref<1x2x128xf32, #tpu.memory_space<vmem>>, vector<1x2x128xf32>,
    %57 = vector.shape_cast %47 : vector<128x128xf32> to vector<2x64x128xf32>
    %58 = arith.truncf %57 : vector<2x64x128xf32> to vector<2x64x128xbf16>
    %c0_28 = arith.constant 0 : index
    %c0_29 = arith.constant 0 : index
    %c0_30 = arith.constant 0 : index
    %59 = vector.load %arg5[%c0_28, %c0_29, %c0_30] : memref<2x64x128xbf16, #tpu.memory_space<vmem>>, vector<2x64x128xbf16>
    tpu.vector_store %arg5[%c0_28, %c0_29, %c0_30], %58 {strides = array<i32>} : memref<2x64x128xbf16, #tpu.memory_space<vmem>>, vector<2x64x128xbf16>,
    return
  }
  func.func @transform_0(%arg0: i32) -> (i32, i32, i32) {
    %c0_i32 = arith.constant 0 : i32
    %c0_i32_0 = arith.constant 0 : i32
    %c0_i32_1 = arith.constant 0 : i32
    return %arg0, %c0_i32, %c0_i32_0 : i32, i32, i32
  }
  func.func @transform_1(%arg0: i32) -> (i32, i32) {
    %c0_i32 = arith.constant 0 : i32
    %c0_i32_0 = arith.constant 0 : i32
    %c0_i32_1 = arith.constant 0 : i32
    return %c0_i32, %c0_i32_0 : i32, i32
  }
  func.func @transform_2(%arg0: i32) -> (i32, i32) {
    %c0_i32 = arith.constant 0 : i32
    %c0_i32_0 = arith.constant 0 : i32
    %c0_i32_1 = arith.constant 0 : i32
    return %c0_i32, %c0_i32_0 : i32, i32
  }
  func.func @transform_3(%arg0: i32) -> (i32, i32) {
    %c0_i32 = arith.constant 0 : i32
    %c0_i32_0 = arith.constant 0 : i32
    %c0_i32_1 = arith.constant 0 : i32
    return %c0_i32, %c0_i32_0 : i32, i32
  }
  func.func @transform_4(%arg0: i32) -> (i32, i32, i32) {
    %c0_i32 = arith.constant 0 : i32
    %c0_i32_0 = arith.constant 0 : i32
    %c0_i32_1 = arith.constant 0 : i32
    return %arg0, %c0_i32, %c0_i32_0 : i32, i32, i32
  }
  func.func @transform_5(%arg0: i32) -> (i32, i32, i32) {
    %c0_i32 = arith.constant 0 : i32
    %c0_i32_0 = arith.constant 0 : i32
    %c0_i32_1 = arith.constant 0 : i32
    return %arg0, %c0_i32, %c0_i32_0 : i32, i32, i32
  }
}

module attributes {stable_mosaic.version = 11 : i64} {
  func.func @_pool_conv1_kernel(%arg0: i32, %arg1: memref<2x8x2x8x8xf32, #tpu.memory_space<vmem>>, %arg2: memref<36x128xbf16, #tpu.memory_space<vmem>>, %arg3: memref<2x64x128xbf16, #tpu.memory_space<vmem>>, %arg4: memref<1x2x128xf32, #tpu.memory_space<vmem>>, %arg5: memref<128x36xf32, #tpu.memory_space<vmem>>) attributes {dimension_semantics = [#tpu.dimension_semantics<parallel>], iteration_bounds = array<i64: 1>, scalar_prefetch = 0 : i64, scratch_operands = 1 : i64, tpu.core_type = #tpu.core_type<tc>, window_params = [{transform_indices = @transform_0, window_bounds = array<i64: 2, 8, 2, 8, 8>}, {pipeline_mode = #tpu.pipeline_mode<synchronous>, transform_indices = @transform_1, window_bounds = array<i64: 36, 128>}, {transform_indices = @transform_2, window_bounds = array<i64: 2, 64, 128>}, {transform_indices = @transform_3, window_bounds = array<i64: 1, 2, 128>}]} {
    %c0 = arith.constant 0 : index
    %c0_0 = arith.constant 0 : index
    %c0_1 = arith.constant 0 : index
    %c0_2 = arith.constant 0 : index
    %c0_3 = arith.constant 0 : index
    %0 = vector.load %arg1[%c0, %c0_0, %c0_1, %c0_2, %c0_3] : memref<2x8x2x8x8xf32, #tpu.memory_space<vmem>>, vector<2x8x2x8x8xf32>
    %1 = vector.extract_strided_slice %0 {offsets = [0, 0, 0, 0, 0], sizes = [2, 8, 1, 8, 8], strides = [1, 1, 1, 1, 1]} : vector<2x8x2x8x8xf32> to vector<2x8x1x8x8xf32>
    %2 = vector.shape_cast %1 : vector<2x8x1x8x8xf32> to vector<2x8x8x8xf32>
    %3 = vector.extract_strided_slice %0 {offsets = [0, 0, 1, 0, 0], sizes = [2, 8, 1, 8, 8], strides = [1, 1, 1, 1, 1]} : vector<2x8x2x8x8xf32> to vector<2x8x1x8x8xf32>
    %4 = vector.shape_cast %3 : vector<2x8x1x8x8xf32> to vector<2x8x8x8xf32>
    %5 = arith.maximumf %2, %4 : vector<2x8x8x8xf32>
    %6 = vector.extract_strided_slice %5 {offsets = [0, 0, 0, 0], sizes = [2, 8, 8, 4], strides = [1, 1, 1, 1]} : vector<2x8x8x8xf32> to vector<2x8x8x4xf32>
    %7 = vector.extract_strided_slice %5 {offsets = [0, 0, 0, 4], sizes = [2, 8, 8, 4], strides = [1, 1, 1, 1]} : vector<2x8x8x8xf32> to vector<2x8x8x4xf32>
    %8 = arith.maximumf %6, %7 : vector<2x8x8x4xf32>
    %cst = arith.constant 0.000000e+00 : f32
    %9 = vector.broadcast %cst : f32 to vector<2x1x8x4xf32>
    %cst_4 = arith.constant 0.000000e+00 : f32
    %10 = vector.broadcast %cst_4 : f32 to vector<2x10x1x4xf32>
    %11 = tpu.concatenate %9, %8, %9 in 1 : vector<2x1x8x4xf32>, vector<2x8x8x4xf32>, vector<2x1x8x4xf32> -> vector<2x10x8x4xf32>
    %12 = tpu.concatenate %10, %11, %10 in 2 : vector<2x10x1x4xf32>, vector<2x10x8x4xf32>, vector<2x10x1x4xf32> -> vector<2x10x10x4xf32>
    %13 = vector.extract_strided_slice %12 {offsets = [0, 0, 0, 0], sizes = [2, 8, 8, 4], strides = [1, 1, 1, 1]} : vector<2x10x10x4xf32> to vector<2x8x8x4xf32>
    %14 = vector.shape_cast %13 : vector<2x8x8x4xf32> to vector<128x4xf32>
    %c0_5 = arith.constant 0 : index
    %c0_6 = arith.constant 0 : index
    %15 = vector.load %arg5[%c0_5, %c0_6] : memref<128x36xf32, #tpu.memory_space<vmem>>, vector<128x4xf32>
    tpu.vector_store %arg5[%c0_5, %c0_6], %14 {strides = array<i32>} : memref<128x36xf32, #tpu.memory_space<vmem>>, vector<128x4xf32>,
    %16 = vector.extract_strided_slice %12 {offsets = [0, 0, 1, 0], sizes = [2, 8, 8, 4], strides = [1, 1, 1, 1]} : vector<2x10x10x4xf32> to vector<2x8x8x4xf32>
    %17 = vector.shape_cast %16 : vector<2x8x8x4xf32> to vector<128x4xf32>
    %c0_7 = arith.constant 0 : index
    %c4 = arith.constant 4 : index
    %18 = vector.load %arg5[%c0_7, %c4] : memref<128x36xf32, #tpu.memory_space<vmem>>, vector<128x4xf32>
    tpu.vector_store %arg5[%c0_7, %c4], %17 {strides = array<i32>} : memref<128x36xf32, #tpu.memory_space<vmem>>, vector<128x4xf32>,
    %19 = vector.extract_strided_slice %12 {offsets = [0, 0, 2, 0], sizes = [2, 8, 8, 4], strides = [1, 1, 1, 1]} : vector<2x10x10x4xf32> to vector<2x8x8x4xf32>
    %20 = vector.shape_cast %19 : vector<2x8x8x4xf32> to vector<128x4xf32>
    %c0_8 = arith.constant 0 : index
    %c8 = arith.constant 8 : index
    %21 = vector.load %arg5[%c0_8, %c8] : memref<128x36xf32, #tpu.memory_space<vmem>>, vector<128x4xf32>
    tpu.vector_store %arg5[%c0_8, %c8], %20 {strides = array<i32>} : memref<128x36xf32, #tpu.memory_space<vmem>>, vector<128x4xf32>,
    %22 = vector.extract_strided_slice %12 {offsets = [0, 1, 0, 0], sizes = [2, 8, 8, 4], strides = [1, 1, 1, 1]} : vector<2x10x10x4xf32> to vector<2x8x8x4xf32>
    %23 = vector.shape_cast %22 : vector<2x8x8x4xf32> to vector<128x4xf32>
    %c0_9 = arith.constant 0 : index
    %c12 = arith.constant 12 : index
    %24 = vector.load %arg5[%c0_9, %c12] : memref<128x36xf32, #tpu.memory_space<vmem>>, vector<128x4xf32>
    tpu.vector_store %arg5[%c0_9, %c12], %23 {strides = array<i32>} : memref<128x36xf32, #tpu.memory_space<vmem>>, vector<128x4xf32>,
    %25 = vector.extract_strided_slice %12 {offsets = [0, 1, 1, 0], sizes = [2, 8, 8, 4], strides = [1, 1, 1, 1]} : vector<2x10x10x4xf32> to vector<2x8x8x4xf32>
    %26 = vector.shape_cast %25 : vector<2x8x8x4xf32> to vector<128x4xf32>
    %c0_10 = arith.constant 0 : index
    %c16 = arith.constant 16 : index
    %27 = vector.load %arg5[%c0_10, %c16] : memref<128x36xf32, #tpu.memory_space<vmem>>, vector<128x4xf32>
    tpu.vector_store %arg5[%c0_10, %c16], %26 {strides = array<i32>} : memref<128x36xf32, #tpu.memory_space<vmem>>, vector<128x4xf32>,
    %28 = vector.extract_strided_slice %12 {offsets = [0, 1, 2, 0], sizes = [2, 8, 8, 4], strides = [1, 1, 1, 1]} : vector<2x10x10x4xf32> to vector<2x8x8x4xf32>
    %29 = vector.shape_cast %28 : vector<2x8x8x4xf32> to vector<128x4xf32>
    %c0_11 = arith.constant 0 : index
    %c20 = arith.constant 20 : index
    %30 = vector.load %arg5[%c0_11, %c20] : memref<128x36xf32, #tpu.memory_space<vmem>>, vector<128x4xf32>
    tpu.vector_store %arg5[%c0_11, %c20], %29 {strides = array<i32>} : memref<128x36xf32, #tpu.memory_space<vmem>>, vector<128x4xf32>,
    %31 = vector.extract_strided_slice %12 {offsets = [0, 2, 0, 0], sizes = [2, 8, 8, 4], strides = [1, 1, 1, 1]} : vector<2x10x10x4xf32> to vector<2x8x8x4xf32>
    %32 = vector.shape_cast %31 : vector<2x8x8x4xf32> to vector<128x4xf32>
    %c0_12 = arith.constant 0 : index
    %c24 = arith.constant 24 : index
    %33 = vector.load %arg5[%c0_12, %c24] : memref<128x36xf32, #tpu.memory_space<vmem>>, vector<128x4xf32>
    tpu.vector_store %arg5[%c0_12, %c24], %32 {strides = array<i32>} : memref<128x36xf32, #tpu.memory_space<vmem>>, vector<128x4xf32>,
    %34 = vector.extract_strided_slice %12 {offsets = [0, 2, 1, 0], sizes = [2, 8, 8, 4], strides = [1, 1, 1, 1]} : vector<2x10x10x4xf32> to vector<2x8x8x4xf32>
    %35 = vector.shape_cast %34 : vector<2x8x8x4xf32> to vector<128x4xf32>
    %c0_13 = arith.constant 0 : index
    %c28 = arith.constant 28 : index
    %36 = vector.load %arg5[%c0_13, %c28] : memref<128x36xf32, #tpu.memory_space<vmem>>, vector<128x4xf32>
    tpu.vector_store %arg5[%c0_13, %c28], %35 {strides = array<i32>} : memref<128x36xf32, #tpu.memory_space<vmem>>, vector<128x4xf32>,
    %37 = vector.extract_strided_slice %12 {offsets = [0, 2, 2, 0], sizes = [2, 8, 8, 4], strides = [1, 1, 1, 1]} : vector<2x10x10x4xf32> to vector<2x8x8x4xf32>
    %38 = vector.shape_cast %37 : vector<2x8x8x4xf32> to vector<128x4xf32>
    %c0_14 = arith.constant 0 : index
    %c32 = arith.constant 32 : index
    %39 = vector.load %arg5[%c0_14, %c32] : memref<128x36xf32, #tpu.memory_space<vmem>>, vector<128x4xf32>
    tpu.vector_store %arg5[%c0_14, %c32], %38 {strides = array<i32>} : memref<128x36xf32, #tpu.memory_space<vmem>>, vector<128x4xf32>,
    %c0_15 = arith.constant 0 : index
    %c0_16 = arith.constant 0 : index
    %40 = vector.load %arg5[%c0_15, %c0_16] : memref<128x36xf32, #tpu.memory_space<vmem>>, vector<128x36xf32>
    %41 = arith.truncf %40 : vector<128x36xf32> to vector<128x36xbf16>
    %c0_17 = arith.constant 0 : index
    %c0_18 = arith.constant 0 : index
    %42 = vector.load %arg2[%c0_17, %c0_18] : memref<36x128xbf16, #tpu.memory_space<vmem>>, vector<36x128xbf16>
    %cst_19 = arith.constant dense<0.000000e+00> : vector<128x128xf32>
    %43 = tpu.matmul %41, %42, %cst_19 {dimension_numbers = #tpu.dot_dimension_numbers<[1], [0], [0], [1], [0, 0, 1, 1], [], []>} : vector<128x36xbf16>, vector<36x128xbf16>, vector<128x128xf32> -> vector<128x128xf32>
    %cst_20 = arith.constant dense<0.000000e+00> : vector<128xf32>
    %44 = vector.multi_reduction <add>, %43, %cst_20 [0] : vector<128x128xf32> to vector<128xf32>
    %45 = vector.shape_cast %44 : vector<128xf32> to vector<1x128xf32>
    %46 = arith.mulf %43, %43 : vector<128x128xf32>
    %cst_21 = arith.constant dense<0.000000e+00> : vector<128xf32>
    %47 = vector.multi_reduction <add>, %46, %cst_21 [0] : vector<128x128xf32> to vector<128xf32>
    %48 = vector.shape_cast %47 : vector<128xf32> to vector<1x128xf32>
    %49 = tpu.concatenate %45, %48 in 0 : vector<1x128xf32>, vector<1x128xf32> -> vector<2x128xf32>
    %c0_22 = arith.constant 0 : index
    %c0_23 = arith.constant 0 : index
    %c0_24 = arith.constant 0 : index
    %50 = vector.load %arg4[%c0_22, %c0_23, %c0_24] : memref<1x2x128xf32, #tpu.memory_space<vmem>>, vector<1x2x128xf32>
    %51 = vector.shape_cast %50 : vector<1x2x128xf32> to vector<2x128xf32>
    %52 = vector.shape_cast %49 : vector<2x128xf32> to vector<1x2x128xf32>
    tpu.vector_store %arg4[%c0_22, %c0_23, %c0_24], %52 {strides = array<i32>} : memref<1x2x128xf32, #tpu.memory_space<vmem>>, vector<1x2x128xf32>,
    %53 = vector.shape_cast %43 : vector<128x128xf32> to vector<2x64x128xf32>
    %54 = arith.truncf %53 : vector<2x64x128xf32> to vector<2x64x128xbf16>
    %c0_25 = arith.constant 0 : index
    %c0_26 = arith.constant 0 : index
    %c0_27 = arith.constant 0 : index
    %55 = vector.load %arg3[%c0_25, %c0_26, %c0_27] : memref<2x64x128xbf16, #tpu.memory_space<vmem>>, vector<2x64x128xbf16>
    tpu.vector_store %arg3[%c0_25, %c0_26, %c0_27], %54 {strides = array<i32>} : memref<2x64x128xbf16, #tpu.memory_space<vmem>>, vector<2x64x128xbf16>,
    return
  }
  func.func @transform_0(%arg0: i32) -> (i32, i32, i32, i32, i32) {
    %c0_i32 = arith.constant 0 : i32
    %c0_i32_0 = arith.constant 0 : i32
    %c0_i32_1 = arith.constant 0 : i32
    %c0_i32_2 = arith.constant 0 : i32
    %c0_i32_3 = arith.constant 0 : i32
    return %arg0, %c0_i32, %c0_i32_0, %c0_i32_1, %c0_i32_2 : i32, i32, i32, i32, i32
  }
  func.func @transform_1(%arg0: i32) -> (i32, i32) {
    %c0_i32 = arith.constant 0 : i32
    %c0_i32_0 = arith.constant 0 : i32
    %c0_i32_1 = arith.constant 0 : i32
    return %c0_i32, %c0_i32_0 : i32, i32
  }
  func.func @transform_2(%arg0: i32) -> (i32, i32, i32) {
    %c0_i32 = arith.constant 0 : i32
    %c0_i32_0 = arith.constant 0 : i32
    %c0_i32_1 = arith.constant 0 : i32
    return %arg0, %c0_i32, %c0_i32_0 : i32, i32, i32
  }
  func.func @transform_3(%arg0: i32) -> (i32, i32, i32) {
    %c0_i32 = arith.constant 0 : i32
    %c0_i32_0 = arith.constant 0 : i32
    %c0_i32_1 = arith.constant 0 : i32
    return %arg0, %c0_i32, %c0_i32_0 : i32, i32, i32
  }
}

</mosaic_0001>

<llo_original>
// kernel: downsamp_forward.2
$region0: #{downsamp_forward.2}
  #allocation0 [shape = 'u32[]', space=smem, size = 0x4, offset = 0x4, fixed_abs, tag = 'smem constant byte address 0x4 - core index']
  #allocation1 [shape = 'u32[144,128]{1,0:T(1,128)}', space=vmem, size = 0x12000, scoped, tag = 'internal scratch']
  #allocation2 [shape = 'f32[128,36]{1,0:T(8,128)}', space=vmem, size = 0x10000, scoped, tag = 'scratch operand']
  %s0 = inlined_call_operand.vmem [shape: f32[2,8,2,8,8], index: 0, kind: input, shape index: {}]
  %s1 = inlined_call_operand.vmem [shape: bf16[36,128], index: 1, kind: input, shape index: {}]
  %s2 = inlined_call_operand.vmem [shape: bf16[2,64,128], index: 2, kind: output, shape index: {0}]
  %s3 = inlined_call_operand.vmem [shape: f32[1,2,128], index: 3, kind: output, shape index: {1}]
  %4 = xla_tuple %s2, %s3
  %s5 = sld [smem:[#allocation0]]
  $region26: #{downsamp_forward.2} parent=0
    _
  %s7 = ssub.s32 1, %s5
  %s8 = scalar_select 0, %s7, %s5
  // Predicated region
  $region2: #{downsamp_forward.2} parent=0 // pred_check
    _
  $region3: #{downsamp_forward.2} parent=0 // pred_check_branch
    %10 = sbr.rel (0) target = $region5
  $region4: #{downsamp_forward.2} parent=0 // pred_region
    _
  $region5: #{downsamp_forward.2} parent=0 // pred_fallthru
    _
  // Predicated region
  $region6: #{downsamp_forward.2} parent=0 // pred_check
    _
  $region7: #{downsamp_forward.2} parent=0 // pred_check_branch
    %12 = sbr.rel (0) target = $region9
  $region8: #{downsamp_forward.2} parent=0 // pred_region
    _
  $region9: #{downsamp_forward.2} parent=0 // pred_fallthru
    _
  %v14 = vld [vmem:[%s0] sm:$0xff]
  %v15 = vld [vmem:[%s0 + $0x8] sm:$0xff]
  %v16 = vld [vmem:[%s0 + $0x10] sm:$0xff]
  %v17 = vld [vmem:[%s0 + $0x18] sm:$0xff]
  %v18 = vld [vmem:[%s0 + $0x20] sm:$0xff]
  %v19 = vld [vmem:[%s0 + $0x28] sm:$0xff]
  %v20 = vld [vmem:[%s0 + $0x30] sm:$0xff]
  %v21 = vld [vmem:[%s0 + $0x38] sm:$0xff]
  %v22 = vld [vmem:[%s0 + $0x40] sm:$0xff]
  %v23 = vld [vmem:[%s0 + $0x48] sm:$0xff]
  %v24 = vld [vmem:[%s0 + $0x50] sm:$0xff]
  %v25 = vld [vmem:[%s0 + $0x58] sm:$0xff]
  %v26 = vld [vmem:[%s0 + $0x60] sm:$0xff]
  %v27 = vld [vmem:[%s0 + $0x68] sm:$0xff]
  %v28 = vld [vmem:[%s0 + $0x70] sm:$0xff]
  %v29 = vld [vmem:[%s0 + $0x78] sm:$0xff]
  %v30 = vld [vmem:[%s0 + $0x80] sm:$0xff]
  %v31 = vld [vmem:[%s0 + $0x88] sm:$0xff]
  %v32 = vld [vmem:[%s0 + $0x90] sm:$0xff]
  %v33 = vld [vmem:[%s0 + $0x98] sm:$0xff]
  %v34 = vld [vmem:[%s0 + $0xa0] sm:$0xff]
  %v35 = vld [vmem:[%s0 + $0xa8] sm:$0xff]
  %v36 = vld [vmem:[%s0 + $0xb0] sm:$0xff]
  %v37 = vld [vmem:[%s0 + $0xb8] sm:$0xff]
  %v38 = vld [vmem:[%s0 + $0xc0] sm:$0xff]
  %v39 = vld [vmem:[%s0 + $0xc8] sm:$0xff]
  %v40 = vld [vmem:[%s0 + $0xd0] sm:$0xff]
  %v41 = vld [vmem:[%s0 + $0xd8] sm:$0xff]
  %v42 = vld [vmem:[%s0 + $0xe0] sm:$0xff]
  %v43 = vld [vmem:[%s0 + $0xe8] sm:$0xff]
  %v44 = vld [vmem:[%s0 + $0xf0] sm:$0xff]
  %v45 = vld [vmem:[%s0 + $0xf8] sm:$0xff]
  %v46 = vmax.f32 %v14, %v15
  %v47 = vmax.f32 %v16, %v17
  %v48 = vmax.f32 %v18, %v19
  %v49 = vmax.f32 %v20, %v21
  %v50 = vmax.f32 %v22, %v23
  %v51 = vmax.f32 %v24, %v25
  %v52 = vmax.f32 %v26, %v27
  %v53 = vmax.f32 %v28, %v29
  %v54 = vmax.f32 %v30, %v31
  %v55 = vmax.f32 %v32, %v33
  %v56 = vmax.f32 %v34, %v35
  %v57 = vmax.f32 %v36, %v37
  %v58 = vmax.f32 %v38, %v39
  %v59 = vmax.f32 %v40, %v41
  %v60 = vmax.f32 %v42, %v43
  %v61 = vmax.f32 %v44, %v45
  %78 = vrot.lane.b32.xlu0 %v46, 124
  %v79 = vpop.permute.xlu0 %78
  %80 = vrot.lane.b32.xlu0 %v47, 124
  %v81 = vpop.permute.xlu0 %80
  %82 = vrot.lane.b32.xlu0 %v48, 124
  %v83 = vpop.permute.xlu0 %82
  %84 = vrot.lane.b32.xlu0 %v49, 124
  %v85 = vpop.permute.xlu0 %84
  %86 = vrot.lane.b32.xlu0 %v50, 124
  %v87 = vpop.permute.xlu0 %86
  %88 = vrot.lane.b32.xlu0 %v51, 124
  %v89 = vpop.permute.xlu0 %88
  %90 = vrot.lane.b32.xlu0 %v52, 124
  %v91 = vpop.permute.xlu0 %90
  %92 = vrot.lane.b32.xlu0 %v53, 124
  %v93 = vpop.permute.xlu0 %92
  %94 = vrot.lane.b32.xlu0 %v54, 124
  %v95 = vpop.permute.xlu0 %94
  %96 = vrot.lane.b32.xlu0 %v55, 124
  %v97 = vpop.permute.xlu0 %96
  %98 = vrot.lane.b32.xlu0 %v56, 124
  %v99 = vpop.permute.xlu0 %98
  %100 = vrot.lane.b32.xlu0 %v57, 124
  %v101 = vpop.permute.xlu0 %100
  %102 = vrot.lane.b32.xlu0 %v58, 124
  %v103 = vpop.permute.xlu0 %102
  %104 = vrot.lane.b32.xlu0 %v59, 124
  %v105 = vpop.permute.xlu0 %104
  %106 = vrot.lane.b32.xlu0 %v60, 124
  %v107 = vpop.permute.xlu0 %106
  %108 = vrot.lane.b32.xlu0 %v61, 124
  %v109 = vpop.permute.xlu0 %108
  %v126 = vmax.f32 %v46, %v79
  %v127 = vmax.f32 %v47, %v81
  %v128 = vmax.f32 %v48, %v83
  %v129 = vmax.f32 %v49, %v85
  %v130 = vmax.f32 %v50, %v87
  %v131 = vmax.f32 %v51, %v89
  %v132 = vmax.f32 %v52, %v91
  %v133 = vmax.f32 %v53, %v93
  %v134 = vmax.f32 %v54, %v95
  %v135 = vmax.f32 %v55, %v97
  %v136 = vmax.f32 %v56, %v99
  %v137 = vmax.f32 %v57, %v101
  %v138 = vmax.f32 %v58, %v103
  %v139 = vmax.f32 %v59, %v105
  %v140 = vmax.f32 %v60, %v107
  %v141 = vmax.f32 %v61, %v109
  %v159 = vrot.slane 0.0, 7
  %v160 = vrot.slane %v126, 7
  %v161 = vrot.slane %v127, 7
  %v162 = vrot.slane %v128, 7
  %v163 = vrot.slane %v129, 7
  %v164 = vrot.slane %v130, 7
  %v165 = vrot.slane %v131, 7
  %v166 = vrot.slane %v132, 7
  %v167 = vrot.slane %v133, 7
  %v168 = vrot.slane %v134, 7
  %v169 = vrot.slane %v135, 7
  %v170 = vrot.slane %v136, 7
  %v171 = vrot.slane %v137, 7
  %v172 = vrot.slane %v138, 7
  %v173 = vrot.slane %v139, 7
  %v174 = vrot.slane %v140, 7
  %v175 = vrot.slane %v141, 7
  %vm193 = vcmask 1040384
  %v194 = vsel %vm193, 0.0, %v159
  %v195 = vsel %vm193, 0.0, %v160
  %v196 = vsel %vm193, 0.0, %v161
  %v197 = vsel %vm193, 0.0, %v162
  %v198 = vsel %vm193, 0.0, %v163
  %v199 = vsel %vm193, 0.0, %v164
  %v200 = vsel %vm193, 0.0, %v165
  %v201 = vsel %vm193, 0.0, %v166
  %v202 = vsel %vm193, 0.0, %v167
  %v203 = vsel %vm193, 0.0, %v168
  %v204 = vsel %vm193, 0.0, %v169
  %v205 = vsel %vm193, 0.0, %v170
  %v206 = vsel %vm193, 0.0, %v171
  %v207 = vsel %vm193, 0.0, %v172
  %v208 = vsel %vm193, 0.0, %v173
  %v209 = vsel %vm193, 0.0, %v174
  %v210 = vsel %vm193, 0.0, %v175
  %v211 = vsel %vm193, %v159, 0.0
  %v212 = vsel %vm193, %v160, 0.0
  %v213 = vsel %vm193, %v161, 0.0
  %v214 = vsel %vm193, %v162, 0.0
  %v215 = vsel %vm193, %v163, 0.0
  %v216 = vsel %vm193, %v164, 0.0
  %v217 = vsel %vm193, %v165, 0.0
  %v218 = vsel %vm193, %v166, 0.0
  %v219 = vsel %vm193, %v167, 0.0
  %v220 = vsel %vm193, %v168, 0.0
  %v221 = vsel %vm193, %v169, 0.0
  %v222 = vsel %vm193, %v170, 0.0
  %v223 = vsel %vm193, %v171, 0.0
  %v224 = vsel %vm193, %v172, 0.0
  %v225 = vsel %vm193, %v173, 0.0
  %v226 = vsel %vm193, %v174, 0.0
  %v227 = vsel %vm193, %v175, 0.0
  %vm228 = vcmask 31744
  %229 = vst.msk [vmem:[#allocation2] sm:$0xff] %vm228, %v194
  %230 = vst.msk [vmem:[#allocation2 + $0x8] sm:$0xff] %vm228, %v195
  %231 = vst.msk [vmem:[#allocation2 + $0x10] sm:$0xff] %vm228, %v196
  %232 = vst.msk [vmem:[#allocation2 + $0x18] sm:$0xff] %vm228, %v197
  %233 = vst.msk [vmem:[#allocation2 + $0x20] sm:$0xff] %vm228, %v198
  %234 = vst.msk [vmem:[#allocation2 + $0x28] sm:$0xff] %vm228, %v199
  %235 = vst.msk [vmem:[#allocation2 + $0x30] sm:$0xff] %vm228, %v200
  %236 = vst.msk [vmem:[#allocation2 + $0x38] sm:$0xff] %vm228, %v201
  %237 = vst.msk [vmem:[#allocation2 + $0x40] sm:$0xff] %vm228, %v194
  %238 = vst.msk [vmem:[#allocation2 + $0x48] sm:$0xff] %vm228, %v203
  %239 = vst.msk [vmem:[#allocation2 + $0x50] sm:$0xff] %vm228, %v204
  %240 = vst.msk [vmem:[#allocation2 + $0x58] sm:$0xff] %vm228, %v205
  %241 = vst.msk [vmem:[#allocation2 + $0x60] sm:$0xff] %vm228, %v206
  %242 = vst.msk [vmem:[#allocation2 + $0x68] sm:$0xff] %vm228, %v207
  %243 = vst.msk [vmem:[#allocation2 + $0x70] sm:$0xff] %vm228, %v208
  %244 = vst.msk [vmem:[#allocation2 + $0x78] sm:$0xff] %vm228, %v209
  %vm275 = vcmask 1046528
  %v276 = vrot.slane %v194, 1
  %v277 = vrot.slane %v211, 1
  %v278 = vsel %vm275, %v276, %v277
  %v279 = vrot.slane %v195, 1
  %v280 = vrot.slane %v212, 1
  %v281 = vsel %vm275, %v279, %v280
  %v282 = vrot.slane %v196, 1
  %v283 = vrot.slane %v213, 1
  %v284 = vsel %vm275, %v282, %v283
  %v285 = vrot.slane %v197, 1
  %v286 = vrot.slane %v214, 1
  %v287 = vsel %vm275, %v285, %v286
  %v288 = vrot.slane %v198, 1
  %v289 = vrot.slane %v215, 1
  %v290 = vsel %vm275, %v288, %v289
  %v291 = vrot.slane %v199, 1
  %v292 = vrot.slane %v216, 1
  %v293 = vsel %vm275, %v291, %v292
  %v294 = vrot.slane %v200, 1
  %v295 = vrot.slane %v217, 1
  %v296 = vsel %vm275, %v294, %v295
  %v297 = vrot.slane %v201, 1
  %v298 = vrot.slane %v218, 1
  %v299 = vsel %vm275, %v297, %v298
  %v300 = vrot.slane %v203, 1
  %v301 = vrot.slane %v220, 1
  %v302 = vsel %vm275, %v300, %v301
  %v303 = vrot.slane %v204, 1
  %v304 = vrot.slane %v221, 1
  %v305 = vsel %vm275, %v303, %v304
  %v306 = vrot.slane %v205, 1
  %v307 = vrot.slane %v222, 1
  %v308 = vsel %vm275, %v306, %v307
  %v309 = vrot.slane %v206, 1
  %v310 = vrot.slane %v223, 1
  %v311 = vsel %vm275, %v309, %v310
  %v312 = vrot.slane %v207, 1
  %v313 = vrot.slane %v224, 1
  %v314 = vsel %vm275, %v312, %v313
  %v315 = vrot.slane %v208, 1
  %v316 = vrot.slane %v225, 1
  %v317 = vsel %vm275, %v315, %v316
  %v318 = vrot.slane %v209, 1
  %v319 = vrot.slane %v226, 1
  %v320 = vsel %vm275, %v318, %v319
  %321 = vrot.lane.b32.xlu0 %v278, 4
  %v322 = vpop.permute.xlu0 %321
  %323 = vrot.lane.b32.xlu0 %v281, 4
  %v324 = vpop.permute.xlu0 %323
  %325 = vrot.lane.b32.xlu0 %v284, 4
  %v326 = vpop.permute.xlu0 %325
  %327 = vrot.lane.b32.xlu0 %v287, 4
  %v328 = vpop.permute.xlu0 %327
  %329 = vrot.lane.b32.xlu0 %v290, 4
  %v330 = vpop.permute.xlu0 %329
  %331 = vrot.lane.b32.xlu0 %v293, 4
  %v332 = vpop.permute.xlu0 %331
  %333 = vrot.lane.b32.xlu0 %v296, 4
  %v334 = vpop.permute.xlu0 %333
  %335 = vrot.lane.b32.xlu0 %v299, 4
  %v336 = vpop.permute.xlu0 %335
  %337 = vrot.lane.b32.xlu0 %v302, 4
  %v338 = vpop.permute.xlu0 %337
  %339 = vrot.lane.b32.xlu0 %v305, 4
  %v340 = vpop.permute.xlu0 %339
  %341 = vrot.lane.b32.xlu0 %v308, 4
  %v342 = vpop.permute.xlu0 %341
  %343 = vrot.lane.b32.xlu0 %v311, 4
  %v344 = vpop.permute.xlu0 %343
  %345 = vrot.lane.b32.xlu0 %v314, 4
  %v346 = vpop.permute.xlu0 %345
  %347 = vrot.lane.b32.xlu0 %v317, 4
  %v348 = vpop.permute.xlu0 %347
  %349 = vrot.lane.b32.xlu0 %v320, 4
  %v350 = vpop.permute.xlu0 %349
  %vm366 = vcmask 64544
  %367 = vst.msk [vmem:[#allocation2] sm:$0xff] %vm366, %v322
  %368 = vst.msk [vmem:[#allocation2 + $0x8] sm:$0xff] %vm366, %v324
  %369 = vst.msk [vmem:[#allocation2 + $0x10] sm:$0xff] %vm366, %v326
  %370 = vst.msk [vmem:[#allocation2 + $0x18] sm:$0xff] %vm366, %v328
  %371 = vst.msk [vmem:[#allocation2 + $0x20] sm:$0xff] %vm366, %v330
  %372 = vst.msk [vmem:[#allocation2 + $0x28] sm:$0xff] %vm366, %v332
  %373 = vst.msk [vmem:[#allocation2 + $0x30] sm:$0xff] %vm366, %v334
  %374 = vst.msk [vmem:[#allocation2 + $0x38] sm:$0xff] %vm366, %v336
  %375 = vst.msk [vmem:[#allocation2 + $0x40] sm:$0xff] %vm366, %v322
  %376 = vst.msk [vmem:[#allocation2 + $0x48] sm:$0xff] %vm366, %v338
  %377 = vst.msk [vmem:[#allocation2 + $0x50] sm:$0xff] %vm366, %v340
  %378 = vst.msk [vmem:[#allocation2 + $0x58] sm:$0xff] %vm366, %v342
  %379 = vst.msk [vmem:[#allocation2 + $0x60] sm:$0xff] %vm366, %v344
  %380 = vst.msk [vmem:[#allocation2 + $0x68] sm:$0xff] %vm366, %v346
  %381 = vst.msk [vmem:[#allocation2 + $0x70] sm:$0xff] %vm366, %v348
  %382 = vst.msk [vmem:[#allocation2 + $0x78] sm:$0xff] %vm366, %v350
  %vm383 = vcmask 1045504
  %v384 = vrot.slane %v194, 2
  %v385 = vrot.slane %v211, 2
  %v386 = vsel %vm383, %v384, %v385
  %v387 = vrot.slane %v195, 2
  %v388 = vrot.slane %v212, 2
  %v389 = vsel %vm383, %v387, %v388
  %v390 = vrot.slane %v196, 2
  %v391 = vrot.slane %v213, 2
  %v392 = vsel %vm383, %v390, %v391
  %v393 = vrot.slane %v197, 2
  %v394 = vrot.slane %v214, 2
  %v395 = vsel %vm383, %v393, %v394
  %v396 = vrot.slane %v198, 2
  %v397 = vrot.slane %v215, 2
  %v398 = vsel %vm383, %v396, %v397
  %v399 = vrot.slane %v199, 2
  %v400 = vrot.slane %v216, 2
  %v401 = vsel %vm383, %v399, %v400
  %v402 = vrot.slane %v200, 2
  %v403 = vrot.slane %v217, 2
  %v404 = vsel %vm383, %v402, %v403
  %v405 = vrot.slane %v201, 2
  %v406 = vrot.slane %v218, 2
  %v407 = vsel %vm383, %v405, %v406
  %v408 = vrot.slane %v203, 2
  %v409 = vrot.slane %v220, 2
  %v410 = vsel %vm383, %v408, %v409
  %v411 = vrot.slane %v204, 2
  %v412 = vrot.slane %v221, 2
  %v413 = vsel %vm383, %v411, %v412
  %v414 = vrot.slane %v205, 2
  %v415 = vrot.slane %v222, 2
  %v416 = vsel %vm383, %v414, %v415
  %v417 = vrot.slane %v206, 2
  %v418 = vrot.slane %v223, 2
  %v419 = vsel %vm383, %v417, %v418
  %v420 = vrot.slane %v207, 2
  %v421 = vrot.slane %v224, 2
  %v422 = vsel %vm383, %v420, %v421
  %v423 = vrot.slane %v208, 2
  %v424 = vrot.slane %v225, 2
  %v425 = vsel %vm383, %v423, %v424
  %v426 = vrot.slane %v209, 2
  %v427 = vrot.slane %v226, 2
  %v428 = vsel %vm383, %v426, %v427
  %429 = vrot.lane.b32.xlu0 %v386, 8
  %v430 = vpop.permute.xlu0 %429
  %431 = vrot.lane.b32.xlu0 %v389, 8
  %v432 = vpop.permute.xlu0 %431
  %433 = vrot.lane.b32.xlu0 %v392, 8
  %v434 = vpop.permute.xlu0 %433
  %435 = vrot.lane.b32.xlu0 %v395, 8
  %v436 = vpop.permute.xlu0 %435
  %437 = vrot.lane.b32.xlu0 %v398, 8
  %v438 = vpop.permute.xlu0 %437
  %439 = vrot.lane.b32.xlu0 %v401, 8
  %v440 = vpop.permute.xlu0 %439
  %441 = vrot.lane.b32.xlu0 %v404, 8
  %v442 = vpop.permute.xlu0 %441
  %443 = vrot.lane.b32.xlu0 %v407, 8
  %v444 = vpop.permute.xlu0 %443
  %445 = vrot.lane.b32.xlu0 %v410, 8
  %v446 = vpop.permute.xlu0 %445
  %447 = vrot.lane.b32.xlu0 %v413, 8
  %v448 = vpop.permute.xlu0 %447
  %449 = vrot.lane.b32.xlu0 %v416, 8
  %v450 = vpop.permute.xlu0 %449
  %451 = vrot.lane.b32.xlu0 %v419, 8
  %v452 = vpop.permute.xlu0 %451
  %453 = vrot.lane.b32.xlu0 %v422, 8
  %v454 = vpop.permute.xlu0 %453
  %455 = vrot.lane.b32.xlu0 %v425, 8
  %v456 = vpop.permute.xlu0 %455
  %457 = vrot.lane.b32.xlu0 %v428, 8
  %v458 = vpop.permute.xlu0 %457
  %vm474 = vcmask 97344
  %475 = vst.msk [vmem:[#allocation2] sm:$0xff] %vm474, %v430
  %476 = vst.msk [vmem:[#allocation2 + $0x8] sm:$0xff] %vm474, %v432
  %477 = vst.msk [vmem:[#allocation2 + $0x10] sm:$0xff] %vm474, %v434
  %478 = vst.msk [vmem:[#allocation2 + $0x18] sm:$0xff] %vm474, %v436
  %479 = vst.msk [vmem:[#allocation2 + $0x20] sm:$0xff] %vm474, %v438
  %480 = vst.msk [vmem:[#allocation2 + $0x28] sm:$0xff] %vm474, %v440
  %481 = vst.msk [vmem:[#allocation2 + $0x30] sm:$0xff] %vm474, %v442
  %482 = vst.msk [vmem:[#allocation2 + $0x38] sm:$0xff] %vm474, %v444
  %483 = vst.msk [vmem:[#allocation2 + $0x40] sm:$0xff] %vm474, %v430
  %484 = vst.msk [vmem:[#allocation2 + $0x48] sm:$0xff] %vm474, %v446
  %485 = vst.msk [vmem:[#allocation2 + $0x50] sm:$0xff] %vm474, %v448
  %486 = vst.msk [vmem:[#allocation2 + $0x58] sm:$0xff] %vm474, %v450
  %487 = vst.msk [vmem:[#allocation2 + $0x60] sm:$0xff] %vm474, %v452
  %488 = vst.msk [vmem:[#allocation2 + $0x68] sm:$0xff] %vm474, %v454
  %489 = vst.msk [vmem:[#allocation2 + $0x70] sm:$0xff] %vm474, %v456
  %490 = vst.msk [vmem:[#allocation2 + $0x78] sm:$0xff] %vm474, %v458
  %493 = vrot.lane.b32.xlu0 %v195, 12
  %v494 = vpop.permute.xlu0 %493
  %495 = vrot.lane.b32.xlu0 %v196, 12
  %v496 = vpop.permute.xlu0 %495
  %497 = vrot.lane.b32.xlu0 %v197, 12
  %v498 = vpop.permute.xlu0 %497
  %499 = vrot.lane.b32.xlu0 %v198, 12
  %v500 = vpop.permute.xlu0 %499
  %501 = vrot.lane.b32.xlu0 %v199, 12
  %v502 = vpop.permute.xlu0 %501
  %503 = vrot.lane.b32.xlu0 %v200, 12
  %v504 = vpop.permute.xlu0 %503
  %505 = vrot.lane.b32.xlu0 %v201, 12
  %v506 = vpop.permute.xlu0 %505
  %507 = vrot.lane.b32.xlu0 %v202, 12
  %v508 = vpop.permute.xlu0 %507
  %509 = vrot.lane.b32.xlu0 %v203, 12
  %v510 = vpop.permute.xlu0 %509
  %511 = vrot.lane.b32.xlu0 %v204, 12
  %v512 = vpop.permute.xlu0 %511
  %513 = vrot.lane.b32.xlu0 %v205, 12
  %v514 = vpop.permute.xlu0 %513
  %515 = vrot.lane.b32.xlu0 %v206, 12
  %v516 = vpop.permute.xlu0 %515
  %517 = vrot.lane.b32.xlu0 %v207, 12
  %v518 = vpop.permute.xlu0 %517
  %519 = vrot.lane.b32.xlu0 %v208, 12
  %v520 = vpop.permute.xlu0 %519
  %521 = vrot.lane.b32.xlu0 %v209, 12
  %v522 = vpop.permute.xlu0 %521
  %523 = vrot.lane.b32.xlu0 %v210, 12
  %v524 = vpop.permute.xlu0 %523
  %vm541 = vcmask 130144
  %542 = vst.msk [vmem:[#allocation2] sm:$0xff] %vm541, %v494
  %543 = vst.msk [vmem:[#allocation2 + $0x8] sm:$0xff] %vm541, %v496
  %544 = vst.msk [vmem:[#allocation2 + $0x10] sm:$0xff] %vm541, %v498
  %545 = vst.msk [vmem:[#allocation2 + $0x18] sm:$0xff] %vm541, %v500
  %546 = vst.msk [vmem:[#allocation2 + $0x20] sm:$0xff] %vm541, %v502
  %547 = vst.msk [vmem:[#allocation2 + $0x28] sm:$0xff] %vm541, %v504
  %548 = vst.msk [vmem:[#allocation2 + $0x30] sm:$0xff] %vm541, %v506
  %549 = vst.msk [vmem:[#allocation2 + $0x38] sm:$0xff] %vm541, %v508
  %550 = vst.msk [vmem:[#allocation2 + $0x40] sm:$0xff] %vm541, %v510
  %551 = vst.msk [vmem:[#allocation2 + $0x48] sm:$0xff] %vm541, %v512
  %552 = vst.msk [vmem:[#allocation2 + $0x50] sm:$0xff] %vm541, %v514
  %553 = vst.msk [vmem:[#allocation2 + $0x58] sm:$0xff] %vm541, %v516
  %554 = vst.msk [vmem:[#allocation2 + $0x60] sm:$0xff] %vm541, %v518
  %555 = vst.msk [vmem:[#allocation2 + $0x68] sm:$0xff] %vm541, %v520
  %556 = vst.msk [vmem:[#allocation2 + $0x70] sm:$0xff] %vm541, %v522
  %557 = vst.msk [vmem:[#allocation2 + $0x78] sm:$0xff] %vm541, %v524
  %v560 = vrot.slane %v202, 1
  %v561 = vrot.slane %v219, 1
  %v562 = vsel %vm275, %v560, %v561
  %v563 = vrot.slane %v210, 1
  %v564 = vrot.slane %v227, 1
  %v565 = vsel %vm275, %v563, %v564
  %566 = vrot.lane.b32.xlu0 %v281, 16
  %v567 = vpop.permute.xlu0 %566
  %568 = vrot.lane.b32.xlu0 %v284, 16
  %v569 = vpop.permute.xlu0 %568
  %570 = vrot.lane.b32.xlu0 %v287, 16
  %v571 = vpop.permute.xlu0 %570
  %572 = vrot.lane.b32.xlu0 %v290, 16
  %v573 = vpop.permute.xlu0 %572
  %574 = vrot.lane.b32.xlu0 %v293, 16
  %v575 = vpop.permute.xlu0 %574
  %576 = vrot.lane.b32.xlu0 %v296, 16
  %v577 = vpop.permute.xlu0 %576
  %578 = vrot.lane.b32.xlu0 %v299, 16
  %v579 = vpop.permute.xlu0 %578
  %580 = vrot.lane.b32.xlu0 %v562, 16
  %v581 = vpop.permute.xlu0 %580
  %582 = vrot.lane.b32.xlu0 %v302, 16
  %v583 = vpop.permute.xlu0 %582
  %584 = vrot.lane.b32.xlu0 %v305, 16
  %v585 = vpop.permute.xlu0 %584
  %586 = vrot.lane.b32.xlu0 %v308, 16
  %v587 = vpop.permute.xlu0 %586
  %588 = vrot.lane.b32.xlu0 %v311, 16
  %v589 = vpop.permute.xlu0 %588
  %590 = vrot.lane.b32.xlu0 %v314, 16
  %v591 = vpop.permute.xlu0 %590
  %592 = vrot.lane.b32.xlu0 %v317, 16
  %v593 = vpop.permute.xlu0 %592
  %594 = vrot.lane.b32.xlu0 %v320, 16
  %v595 = vpop.permute.xlu0 %594
  %596 = vrot.lane.b32.xlu0 %v565, 16
  %v597 = vpop.permute.xlu0 %596
  %vm614 = vcmask 162944
  %615 = vst.msk [vmem:[#allocation2] sm:$0xff] %vm614, %v567
  %616 = vst.msk [vmem:[#allocation2 + $0x8] sm:$0xff] %vm614, %v569
  %617 = vst.msk [vmem:[#allocation2 + $0x10] sm:$0xff] %vm614, %v571
  %618 = vst.msk [vmem:[#allocation2 + $0x18] sm:$0xff] %vm614, %v573
  %619 = vst.msk [vmem:[#allocation2 + $0x20] sm:$0xff] %vm614, %v575
  %620 = vst.msk [vmem:[#allocation2 + $0x28] sm:$0xff] %vm614, %v577
  %621 = vst.msk [vmem:[#allocation2 + $0x30] sm:$0xff] %vm614, %v579
  %622 = vst.msk [vmem:[#allocation2 + $0x38] sm:$0xff] %vm614, %v581
  %623 = vst.msk [vmem:[#allocation2 + $0x40] sm:$0xff] %vm614, %v583
  %624 = vst.msk [vmem:[#allocation2 + $0x48] sm:$0xff] %vm614, %v585
  %625 = vst.msk [vmem:[#allocation2 + $0x50] sm:$0xff] %vm614, %v587
  %626 = vst.msk [vmem:[#allocation2 + $0x58] sm:$0xff] %vm614, %v589
  %627 = vst.msk [vmem:[#allocation2 + $0x60] sm:$0xff] %vm614, %v591
  %628 = vst.msk [vmem:[#allocation2 + $0x68] sm:$0xff] %vm614, %v593
  %629 = vst.msk [vmem:[#allocation2 + $0x70] sm:$0xff] %vm614, %v595
  %630 = vst.msk [vmem:[#allocation2 + $0x78] sm:$0xff] %vm614, %v597
  %v631 = vrot.slane %v202, 2
  %v632 = vrot.slane %v219, 2
  %v633 = vsel %vm383, %v631, %v632
  %v634 = vrot.slane %v210, 2
  %v635 = vrot.slane %v227, 2
  %v636 = vsel %vm383, %v634, %v635
  %637 = vrot.lane.b32.xlu0 %v389, 20
  %v638 = vpop.permute.xlu0 %637
  %639 = vrot.lane.b32.xlu0 %v392, 20
  %v640 = vpop.permute.xlu0 %639
  %641 = vrot.lane.b32.xlu0 %v395, 20
  %v642 = vpop.permute.xlu0 %641
  %643 = vrot.lane.b32.xlu0 %v398, 20
  %v644 = vpop.permute.xlu0 %643
  %645 = vrot.lane.b32.xlu0 %v401, 20
  %v646 = vpop.permute.xlu0 %645
  %647 = vrot.lane.b32.xlu0 %v404, 20
  %v648 = vpop.permute.xlu0 %647
  %649 = vrot.lane.b32.xlu0 %v407, 20
  %v650 = vpop.permute.xlu0 %649
  %651 = vrot.lane.b32.xlu0 %v633, 20
  %v652 = vpop.permute.xlu0 %651
  %653 = vrot.lane.b32.xlu0 %v410, 20
  %v654 = vpop.permute.xlu0 %653
  %655 = vrot.lane.b32.xlu0 %v413, 20
  %v656 = vpop.permute.xlu0 %655
  %657 = vrot.lane.b32.xlu0 %v416, 20
  %v658 = vpop.permute.xlu0 %657
  %659 = vrot.lane.b32.xlu0 %v419, 20
  %v660 = vpop.permute.xlu0 %659
  %661 = vrot.lane.b32.xlu0 %v422, 20
  %v662 = vpop.permute.xlu0 %661
  %663 = vrot.lane.b32.xlu0 %v425, 20
  %v664 = vpop.permute.xlu0 %663
  %665 = vrot.lane.b32.xlu0 %v428, 20
  %v666 = vpop.permute.xlu0 %665
  %667 = vrot.lane.b32.xlu0 %v636, 20
  %v668 = vpop.permute.xlu0 %667
  %vm685 = vcmask 195744
  %686 = vst.msk [vmem:[#allocation2] sm:$0xff] %vm685, %v638
  %687 = vst.msk [vmem:[#allocation2 + $0x8] sm:$0xff] %vm685, %v640
  %688 = vst.msk [vmem:[#allocation2 + $0x10] sm:$0xff] %vm685, %v642
  %689 = vst.msk [vmem:[#allocation2 + $0x18] sm:$0xff] %vm685, %v644
  %690 = vst.msk [vmem:[#allocation2 + $0x20] sm:$0xff] %vm685, %v646
  %691 = vst.msk [vmem:[#allocation2 + $0x28] sm:$0xff] %vm685, %v648
  %692 = vst.msk [vmem:[#allocation2 + $0x30] sm:$0xff] %vm685, %v650
  %693 = vst.msk [vmem:[#allocation2 + $0x38] sm:$0xff] %vm685, %v652
  %694 = vst.msk [vmem:[#allocation2 + $0x40] sm:$0xff] %vm685, %v654
  %695 = vst.msk [vmem:[#allocation2 + $0x48] sm:$0xff] %vm685, %v656
  %696 = vst.msk [vmem:[#allocation2 + $0x50] sm:$0xff] %vm685, %v658
  %697 = vst.msk [vmem:[#allocation2 + $0x58] sm:$0xff] %vm685, %v660
  %698 = vst.msk [vmem:[#allocation2 + $0x60] sm:$0xff] %vm685, %v662
  %699 = vst.msk [vmem:[#allocation2 + $0x68] sm:$0xff] %vm685, %v664
  %700 = vst.msk [vmem:[#allocation2 + $0x70] sm:$0xff] %vm685, %v666
  %701 = vst.msk [vmem:[#allocation2 + $0x78] sm:$0xff] %vm685, %v668
  %702 = vrot.lane.b32.xlu0 %v196, 24
  %v703 = vpop.permute.xlu0 %702
  %704 = vrot.lane.b32.xlu0 %v197, 24
  %v705 = vpop.permute.xlu0 %704
  %706 = vrot.lane.b32.xlu0 %v198, 24
  %v707 = vpop.permute.xlu0 %706
  %708 = vrot.lane.b32.xlu0 %v199, 24
  %v709 = vpop.permute.xlu0 %708
  %710 = vrot.lane.b32.xlu0 %v200, 24
  %v711 = vpop.permute.xlu0 %710
  %712 = vrot.lane.b32.xlu0 %v201, 24
  %v713 = vpop.permute.xlu0 %712
  %714 = vrot.lane.b32.xlu0 %v202, 24
  %v715 = vpop.permute.xlu0 %714
  %716 = vrot.lane.b32.xlu0 %v194, 24
  %v717 = vpop.permute.xlu0 %716
  %718 = vrot.lane.b32.xlu0 %v204, 24
  %v719 = vpop.permute.xlu0 %718
  %720 = vrot.lane.b32.xlu0 %v205, 24
  %v721 = vpop.permute.xlu0 %720
  %722 = vrot.lane.b32.xlu0 %v206, 24
  %v723 = vpop.permute.xlu0 %722
  %724 = vrot.lane.b32.xlu0 %v207, 24
  %v725 = vpop.permute.xlu0 %724
  %726 = vrot.lane.b32.xlu0 %v208, 24
  %v727 = vpop.permute.xlu0 %726
  %728 = vrot.lane.b32.xlu0 %v209, 24
  %v729 = vpop.permute.xlu0 %728
  %730 = vrot.lane.b32.xlu0 %v210, 24
  %v731 = vpop.permute.xlu0 %730
  %vm747 = vcmask 228544
  %748 = vst.msk [vmem:[#allocation2] sm:$0xff] %vm747, %v703
  %749 = vst.msk [vmem:[#allocation2 + $0x8] sm:$0xff] %vm747, %v705
  %750 = vst.msk [vmem:[#allocation2 + $0x10] sm:$0xff] %vm747, %v707
  %751 = vst.msk [vmem:[#allocation2 + $0x18] sm:$0xff] %vm747, %v709
  %752 = vst.msk [vmem:[#allocation2 + $0x20] sm:$0xff] %vm747, %v711
  %753 = vst.msk [vmem:[#allocation2 + $0x28] sm:$0xff] %vm747, %v713
  %754 = vst.msk [vmem:[#allocation2 + $0x30] sm:$0xff] %vm747, %v715
  %755 = vst.msk [vmem:[#allocation2 + $0x38] sm:$0xff] %vm747, %v717
  %756 = vst.msk [vmem:[#allocation2 + $0x40] sm:$0xff] %vm747, %v719
  %757 = vst.msk [vmem:[#allocation2 + $0x48] sm:$0xff] %vm747, %v721
  %758 = vst.msk [vmem:[#allocation2 + $0x50] sm:$0xff] %vm747, %v723
  %759 = vst.msk [vmem:[#allocation2 + $0x58] sm:$0xff] %vm747, %v725
  %760 = vst.msk [vmem:[#allocation2 + $0x60] sm:$0xff] %vm747, %v727
  %761 = vst.msk [vmem:[#allocation2 + $0x68] sm:$0xff] %vm747, %v729
  %762 = vst.msk [vmem:[#allocation2 + $0x70] sm:$0xff] %vm747, %v731
  %763 = vst.msk [vmem:[#allocation2 + $0x78] sm:$0xff] %vm747, %v717
  %764 = vrot.lane.b32.xlu0 %v284, 28
  %v765 = vpop.permute.xlu0 %764
  %766 = vrot.lane.b32.xlu0 %v287, 28
  %v767 = vpop.permute.xlu0 %766
  %768 = vrot.lane.b32.xlu0 %v290, 28
  %v769 = vpop.permute.xlu0 %768
  %770 = vrot.lane.b32.xlu0 %v293, 28
  %v771 = vpop.permute.xlu0 %770
  %772 = vrot.lane.b32.xlu0 %v296, 28
  %v773 = vpop.permute.xlu0 %772
  %774 = vrot.lane.b32.xlu0 %v299, 28
  %v775 = vpop.permute.xlu0 %774
  %776 = vrot.lane.b32.xlu0 %v562, 28
  %v777 = vpop.permute.xlu0 %776
  %778 = vrot.lane.b32.xlu0 %v278, 28
  %v779 = vpop.permute.xlu0 %778
  %780 = vrot.lane.b32.xlu0 %v305, 28
  %v781 = vpop.permute.xlu0 %780
  %782 = vrot.lane.b32.xlu0 %v308, 28
  %v783 = vpop.permute.xlu0 %782
  %784 = vrot.lane.b32.xlu0 %v311, 28
  %v785 = vpop.permute.xlu0 %784
  %786 = vrot.lane.b32.xlu0 %v314, 28
  %v787 = vpop.permute.xlu0 %786
  %788 = vrot.lane.b32.xlu0 %v317, 28
  %v789 = vpop.permute.xlu0 %788
  %790 = vrot.lane.b32.xlu0 %v320, 28
  %v791 = vpop.permute.xlu0 %790
  %792 = vrot.lane.b32.xlu0 %v565, 28
  %v793 = vpop.permute.xlu0 %792
  %vm809 = vcmask 261344
  %810 = vst.msk [vmem:[#allocation2] sm:$0xff] %vm809, %v765
  %811 = vst.msk [vmem:[#allocation2 + $0x8] sm:$0xff] %vm809, %v767
  %812 = vst.msk [vmem:[#allocation2 + $0x10] sm:$0xff] %vm809, %v769
  %813 = vst.msk [vmem:[#allocation2 + $0x18] sm:$0xff] %vm809, %v771
  %814 = vst.msk [vmem:[#allocation2 + $0x20] sm:$0xff] %vm809, %v773
  %815 = vst.msk [vmem:[#allocation2 + $0x28] sm:$0xff] %vm809, %v775
  %816 = vst.msk [vmem:[#allocation2 + $0x30] sm:$0xff] %vm809, %v777
  %817 = vst.msk [vmem:[#allocation2 + $0x38] sm:$0xff] %vm809, %v779
  %818 = vst.msk [vmem:[#allocation2 + $0x40] sm:$0xff] %vm809, %v781
  %819 = vst.msk [vmem:[#allocation2 + $0x48] sm:$0xff] %vm809, %v783
  %820 = vst.msk [vmem:[#allocation2 + $0x50] sm:$0xff] %vm809, %v785
  %821 = vst.msk [vmem:[#allocation2 + $0x58] sm:$0xff] %vm809, %v787
  %822 = vst.msk [vmem:[#allocation2 + $0x60] sm:$0xff] %vm809, %v789
  %823 = vst.msk [vmem:[#allocation2 + $0x68] sm:$0xff] %vm809, %v791
  %824 = vst.msk [vmem:[#allocation2 + $0x70] sm:$0xff] %vm809, %v793
  %825 = vst.msk [vmem:[#allocation2 + $0x78] sm:$0xff] %vm809, %v779
  %826 = vrot.lane.b32.xlu0 %v392, 32
  %v827 = vpop.permute.xlu0 %826
  %828 = vrot.lane.b32.xlu0 %v395, 32
  %v829 = vpop.permute.xlu0 %828
  %830 = vrot.lane.b32.xlu0 %v398, 32
  %v831 = vpop.permute.xlu0 %830
  %832 = vrot.lane.b32.xlu0 %v401, 32
  %v833 = vpop.permute.xlu0 %832
  %834 = vrot.lane.b32.xlu0 %v404, 32
  %v835 = vpop.permute.xlu0 %834
  %836 = vrot.lane.b32.xlu0 %v407, 32
  %v837 = vpop.permute.xlu0 %836
  %838 = vrot.lane.b32.xlu0 %v633, 32
  %v839 = vpop.permute.xlu0 %838
  %840 = vrot.lane.b32.xlu0 %v386, 32
  %v841 = vpop.permute.xlu0 %840
  %842 = vrot.lane.b32.xlu0 %v413, 32
  %v843 = vpop.permute.xlu0 %842
  %844 = vrot.lane.b32.xlu0 %v416, 32
  %v845 = vpop.permute.xlu0 %844
  %846 = vrot.lane.b32.xlu0 %v419, 32
  %v847 = vpop.permute.xlu0 %846
  %848 = vrot.lane.b32.xlu0 %v422, 32
  %v849 = vpop.permute.xlu0 %848
  %850 = vrot.lane.b32.xlu0 %v425, 32
  %v851 = vpop.permute.xlu0 %850
  %852 = vrot.lane.b32.xlu0 %v428, 32
  %v853 = vpop.permute.xlu0 %852
  %854 = vrot.lane.b32.xlu0 %v636, 32
  %v855 = vpop.permute.xlu0 %854
  %vm871 = vcmask 294144
  %872 = vst.msk [vmem:[#allocation2] sm:$0xff] %vm871, %v827
  %873 = vst.msk [vmem:[#allocation2 + $0x8] sm:$0xff] %vm871, %v829
  %874 = vst.msk [vmem:[#allocation2 + $0x10] sm:$0xff] %vm871, %v831
  %875 = vst.msk [vmem:[#allocation2 + $0x18] sm:$0xff] %vm871, %v833
  %876 = vst.msk [vmem:[#allocation2 + $0x20] sm:$0xff] %vm871, %v835
  %877 = vst.msk [vmem:[#allocation2 + $0x28] sm:$0xff] %vm871, %v837
  %878 = vst.msk [vmem:[#allocation2 + $0x30] sm:$0xff] %vm871, %v839
  %879 = vst.msk [vmem:[#allocation2 + $0x38] sm:$0xff] %vm871, %v841
  %880 = vst.msk [vmem:[#allocation2 + $0x40] sm:$0xff] %vm871, %v843
  %881 = vst.msk [vmem:[#allocation2 + $0x48] sm:$0xff] %vm871, %v845
  %882 = vst.msk [vmem:[#allocation2 + $0x50] sm:$0xff] %vm871, %v847
  %883 = vst.msk [vmem:[#allocation2 + $0x58] sm:$0xff] %vm871, %v849
  %884 = vst.msk [vmem:[#allocation2 + $0x60] sm:$0xff] %vm871, %v851
  %885 = vst.msk [vmem:[#allocation2 + $0x68] sm:$0xff] %vm871, %v853
  %886 = vst.msk [vmem:[#allocation2 + $0x70] sm:$0xff] %vm871, %v855
  %887 = vst.msk [vmem:[#allocation2 + $0x78] sm:$0xff] %vm871, %v841
  %v888 = vld [vmem:[#allocation2] sm:$0xff]
  %v889 = vld [vmem:[#allocation2 + $0x8] sm:$0xff]
  %v890 = vld [vmem:[#allocation2 + $0x10] sm:$0xff]
  %v891 = vld [vmem:[#allocation2 + $0x18] sm:$0xff]
  %v892 = vld [vmem:[#allocation2 + $0x20] sm:$0xff]
  %v893 = vld [vmem:[#allocation2 + $0x28] sm:$0xff]
  %v894 = vld [vmem:[#allocation2 + $0x30] sm:$0xff]
  %v895 = vld [vmem:[#allocation2 + $0x38] sm:$0xff]
  %v896 = vld [vmem:[#allocation2 + $0x40] sm:$0xff]
  %v897 = vld [vmem:[#allocation2 + $0x48] sm:$0xff]
  %v898 = vld [vmem:[#allocation2 + $0x50] sm:$0xff]
  %v899 = vld [vmem:[#allocation2 + $0x58] sm:$0xff]
  %v900 = vld [vmem:[#allocation2 + $0x60] sm:$0xff]
  %v901 = vld [vmem:[#allocation2 + $0x68] sm:$0xff]
  %v902 = vld [vmem:[#allocation2 + $0x70] sm:$0xff]
  %v903 = vld [vmem:[#allocation2 + $0x78] sm:$0xff]
  %v904 = vpack.c.bf16 %v889, %v888
  %v905 = vpack.c.bf16 %v891, %v890
  %v906 = vpack.c.bf16 %v893, %v892
  %v907 = vpack.c.bf16 %v895, %v894
  %v908 = vpack.c.bf16 %v897, %v896
  %v909 = vpack.c.bf16 %v899, %v898
  %v910 = vpack.c.bf16 %v901, %v900
  %v911 = vpack.c.bf16 %v903, %v902
  %v912 = vld [vmem:[%s1] sm:$0xf]
  %v913 = vld [vmem:[%s1 + $0x4] sm:$0xf]
  %v914 = vld [vmem:[%s1 + $0x8] sm:$0xf]
  %v915 = vld [vmem:[%s1 + $0xc] sm:$0xf]
  %v916 = vld [vmem:[%s1 + $0x10] sm:$0x3]
  %v922 = vunpack.c.l.b16 %v912
  %v923 = vunpack.c.l.b16 %v913
  %v924 = vunpack.c.l.b16 %v914
  %v925 = vunpack.c.l.b16 %v915
  %v926 = vunpack.c.l.b16 %v916
  %v927 = vpack.c.b16 %v923, %v922
  %v928 = vpack.c.b16 %v925, %v924
  %v929 = vpack.c.b16 %v926, %v926
  %vm932 = vcmask 293888
  %v934 = vsel %vm932, %v904, 0
  %v937 = vsel %vm932, %v905, 0
  %v940 = vsel %vm932, %v906, 0
  %v943 = vsel %vm932, %v907, 0
  %v946 = vsel %vm932, %v908, 0
  %v949 = vsel %vm932, %v909, 0
  %v952 = vsel %vm932, %v910, 0
  %v955 = vsel %vm932, %v911, 0
  %vm957 = vcmask 1041408
  %v959 = vsel %vm957, %v929, 0
  %961 = vmatprep.subr.bf16.mxu0 0
  %962 = vmatpush1.bf16.msra.mxu0 0
  %963 = vmatprep.subr.bf16.mxu0 0
  %964 = vmatpush1.bf16.msra.mxu0 0
  %965 = vmatprep.subr.bf16.mxu0 0
  %966 = vmatpush1.bf16.msra.mxu0 0
  %967 = vmatprep.subr.bf16.mxu0 0
  %968 = vmatpush1.bf16.msra.mxu0 0
  %969 = vmatprep.subr.bf16.mxu0 0
  %970 = vmatpush1.bf16.msra.mxu0 0
  %971 = vmatprep.subr.bf16.mxu0 0
  %972 = vmatpush1.bf16.msra.mxu0 %v959
  %973 = vmatprep.subr.bf16.mxu0 0
  %974 = vmatpush1.bf16.msra.mxu0 %v928
  %975 = vmatprep.subr.bf16.mxu0 0
  %976 = vmatpush1.bf16.msra.mxu0 %v927
  %977 = vmatprep.subr.bf16.mxu0 0
  %978 = vmatpush2.bf16.msra.mxu0 0
  %979 = vmatprep.subr.bf16.mxu0 0
  %980 = vmatpush2.bf16.msra.mxu0 0
  %981 = vmatprep.subr.bf16.mxu0 0
  %982 = vmatpush2.bf16.msra.mxu0 0
  %983 = vmatprep.subr.bf16.mxu0 0
  %984 = vmatpush2.bf16.msra.mxu0 0
  %985 = vmatprep.subr.bf16.mxu0 0
  %986 = vmatpush2.bf16.msra.mxu0 0
  %987 = vmatprep.subr.bf16.mxu0 0
  %988 = vmatpush2.bf16.msra.mxu0 0
  %989 = vmatprep.subr.bf16.mxu0 0
  %990 = vmatpush2.bf16.msra.mxu0 0
  %991 = vmatprep.subr.bf16.mxu0 0
  %992 = vmatpush2.bf16.msra.mxu0 0
  %993 = vmatprep.mubr.bf16.mxu0 0
  %994 = vmatmul.mubr.bf16.gmra.mxu0 %v934
  %v995 = vpop.f32.mrf.mxu0
  %v996 = vadd.f32 0.0, %v995
  %v997 = vpop.f32.mrf.mxu0
  %v998 = vpop.f32.mrf.mxu0
  %v999 = vadd.f32 0.0, %v998
  %v1000 = vpop.f32.mrf.mxu0
  %1001 = vmatprep.mubr.bf16.mxu0 0
  %1002 = vmatmul.mubr.bf16.gmra.mxu0 %v937
  %v1003 = vpop.f32.mrf.mxu0
  %v1004 = vadd.f32 0.0, %v1003
  %v1005 = vpop.f32.mrf.mxu0
  %v1006 = vpop.f32.mrf.mxu0
  %v1007 = vadd.f32 0.0, %v1006
  %v1008 = vpop.f32.mrf.mxu0
  %1009 = vmatprep.mubr.bf16.mxu0 0
  %1010 = vmatmul.mubr.bf16.gmra.mxu0 %v940
  %v1011 = vpop.f32.mrf.mxu0
  %v1012 = vadd.f32 0.0, %v1011
  %v1013 = vpop.f32.mrf.mxu0
  %v1014 = vpop.f32.mrf.mxu0
  %v1015 = vadd.f32 0.0, %v1014
  %v1016 = vpop.f32.mrf.mxu0
  %1017 = vmatprep.mubr.bf16.mxu0 0
  %1018 = vmatmul.mubr.bf16.gmra.mxu0 %v943
  %v1019 = vpop.f32.mrf.mxu0
  %v1020 = vadd.f32 0.0, %v1019
  %v1021 = vpop.f32.mrf.mxu0
  %v1022 = vpop.f32.mrf.mxu0
  %v1023 = vadd.f32 0.0, %v1022
  %v1024 = vpop.f32.mrf.mxu0
  %1025 = vmatprep.mubr.bf16.mxu0 0
  %1026 = vmatmul.mubr.bf16.gmra.mxu0 %v946
  %v1027 = vpop.f32.mrf.mxu0
  %v1028 = vadd.f32 0.0, %v1027
  %v1029 = vpop.f32.mrf.mxu0
  %v1030 = vpop.f32.mrf.mxu0
  %v1031 = vadd.f32 0.0, %v1030
  %v1032 = vpop.f32.mrf.mxu0
  %1033 = vmatprep.mubr.bf16.mxu0 0
  %1034 = vmatmul.mubr.bf16.gmra.mxu0 %v949
  %v1035 = vpop.f32.mrf.mxu0
  %v1036 = vadd.f32 0.0, %v1035
  %v1037 = vpop.f32.mrf.mxu0
  %v1038 = vpop.f32.mrf.mxu0
  %v1039 = vadd.f32 0.0, %v1038
  %v1040 = vpop.f32.mrf.mxu0
  %1041 = vmatprep.mubr.bf16.mxu0 0
  %1042 = vmatmul.mubr.bf16.gmra.mxu0 %v952
  %v1043 = vpop.f32.mrf.mxu0
  %v1044 = vadd.f32 0.0, %v1043
  %v1045 = vpop.f32.mrf.mxu0
  %v1046 = vpop.f32.mrf.mxu0
  %v1047 = vadd.f32 0.0, %v1046
  %v1048 = vpop.f32.mrf.mxu0
  %1049 = vmatprep.mubr.bf16.mxu0 0
  %1050 = vmatmul.mubr.bf16.gmra.mxu0 %v955
  %v1051 = vpop.f32.mrf.mxu0
  %v1052 = vadd.f32 0.0, %v1051
  %v1053 = vpop.f32.mrf.mxu0
  %v1054 = vpop.f32.mrf.mxu0
  %v1055 = vadd.f32 0.0, %v1054
  %v1056 = vpop.f32.mrf.mxu0
  %1057 = vdwg.mxu0
  %v1058 = vadd.f32 %v996, %v999
  %v1059 = vadd.f32 %v1058, %v1004
  %v1060 = vadd.f32 %v1059, %v1007
  %v1061 = vadd.f32 %v1060, %v1012
  %v1062 = vadd.f32 %v1061, %v1015
  %v1063 = vadd.f32 %v1062, %v1020
  %v1064 = vadd.f32 %v1063, %v1023
  %v1065 = vadd.f32 %v1064, %v1028
  %v1066 = vadd.f32 %v1065, %v1031
  %v1067 = vadd.f32 %v1066, %v1036
  %v1068 = vadd.f32 %v1067, %v1039
  %v1069 = vadd.f32 %v1068, %v1044
  %v1070 = vadd.f32 %v1069, %v1047
  %v1071 = vadd.f32 %v1070, %v1052
  %v1072 = vadd.f32 %v1071, %v1055
  %v1073 = vrot.slane %v1072, 4
  %v1074 = vadd.f32 %v1072, %v1073
  %v1075 = vrot.slane %v1074, 2
  %v1076 = vadd.f32 %v1074, %v1075
  %v1077 = vrot.slane %v1076, 1
  %v1078 = vadd.f32 %v1076, %v1077
  %v1079 = vmul.f32 %v996, %v996
  %v1080 = vmul.f32 %v999, %v999
  %v1081 = vmul.f32 %v1004, %v1004
  %v1082 = vmul.f32 %v1007, %v1007
  %v1083 = vmul.f32 %v1012, %v1012
  %v1084 = vmul.f32 %v1015, %v1015
  %v1085 = vmul.f32 %v1020, %v1020
  %v1086 = vmul.f32 %v1023, %v1023
  %v1087 = vmul.f32 %v1028, %v1028
  %v1088 = vmul.f32 %v1031, %v1031
  %v1089 = vmul.f32 %v1036, %v1036
  %v1090 = vmul.f32 %v1039, %v1039
  %v1091 = vmul.f32 %v1044, %v1044
  %v1092 = vmul.f32 %v1047, %v1047
  %v1093 = vmul.f32 %v1052, %v1052
  %v1094 = vmul.f32 %v1055, %v1055
  %v1095 = vadd.f32 %v1079, %v1080
  %v1096 = vadd.f32 %v1095, %v1081
  %v1097 = vadd.f32 %v1096, %v1082
  %v1098 = vadd.f32 %v1097, %v1083
  %v1099 = vadd.f32 %v1098, %v1084
  %v1100 = vadd.f32 %v1099, %v1085
  %v1101 = vadd.f32 %v1100, %v1086
  %v1102 = vadd.f32 %v1101, %v1087
  %v1103 = vadd.f32 %v1102, %v1088
  %v1104 = vadd.f32 %v1103, %v1089
  %v1105 = vadd.f32 %v1104, %v1090
  %v1106 = vadd.f32 %v1105, %v1091
  %v1107 = vadd.f32 %v1106, %v1092
  %v1108 = vadd.f32 %v1107, %v1093
  %v1109 = vadd.f32 %v1108, %v1094
  %v1110 = vrot.slane %v1109, 4
  %v1111 = vadd.f32 %v1109, %v1110
  %v1112 = vrot.slane %v1111, 2
  %v1113 = vadd.f32 %v1111, %v1112
  %v1114 = vrot.slane %v1113, 1
  %v1115 = vadd.f32 %v1113, %v1114
  %v1116 = vsel %vm193, %v1078, %v1115
  %1117 = vst [vmem:[%s3] sm:$0x3] %v1116
  %v1118 = vpack.c.bf16 %v999, %v996
  %v1119 = vpack.c.bf16 %v1007, %v1004
  %v1120 = vpack.c.bf16 %v1015, %v1012
  %v1121 = vpack.c.bf16 %v1023, %v1020
  %v1122 = vpack.c.bf16 %v1031, %v1028
  %v1123 = vpack.c.bf16 %v1039, %v1036
  %v1124 = vpack.c.bf16 %v1047, %v1044
  %v1125 = vpack.c.bf16 %v1055, %v1052
  %v1134 = vunpack.c.l.b16 %v1118
  %v1135 = vunpack.c.h.b16 %v1118
  %v1136 = vunpack.c.l.b16 %v1119
  %v1137 = vunpack.c.h.b16 %v1119
  %v1138 = vunpack.c.l.b16 %v1120
  %v1139 = vunpack.c.h.b16 %v1120
  %v1140 = vunpack.c.l.b16 %v1121
  %v1141 = vunpack.c.h.b16 %v1121
  %v1142 = vunpack.c.l.b16 %v1122
  %v1143 = vunpack.c.h.b16 %v1122
  %v1144 = vunpack.c.l.b16 %v1123
  %v1145 = vunpack.c.h.b16 %v1123
  %v1146 = vunpack.c.l.b16 %v1124
  %v1147 = vunpack.c.h.b16 %v1124
  %v1148 = vunpack.c.l.b16 %v1125
  %v1149 = vunpack.c.h.b16 %v1125
  %v1150 = vpack.c.b16 %v1134, %v1134
  %v1151 = vpack.c.b16 %v1135, %v1135
  %v1152 = vpack.c.b16 %v1136, %v1136
  %v1153 = vpack.c.b16 %v1137, %v1137
  %v1154 = vpack.c.b16 %v1138, %v1138
  %v1155 = vpack.c.b16 %v1139, %v1139
  %v1156 = vpack.c.b16 %v1140, %v1140
  %v1157 = vpack.c.b16 %v1141, %v1141
  %v1158 = vpack.c.b16 %v1142, %v1142
  %v1159 = vpack.c.b16 %v1143, %v1143
  %v1160 = vpack.c.b16 %v1144, %v1144
  %v1161 = vpack.c.b16 %v1145, %v1145
  %v1162 = vpack.c.b16 %v1146, %v1146
  %v1163 = vpack.c.b16 %v1147, %v1147
  %v1164 = vpack.c.b16 %v1148, %v1148
  %v1165 = vpack.c.b16 %v1149, %v1149
  %1182 = vst [vmem:[%s2] sm:$0xf] %v1150
  %1183 = vst [vmem:[%s2 + $0x4] sm:$0xf] %v1151
  %1184 = vst [vmem:[%s2 + $0x8] sm:$0xf] %v1152
  %1185 = vst [vmem:[%s2 + $0xc] sm:$0xf] %v1153
  %1186 = vst [vmem:[%s2 + $0x10] sm:$0xf] %v1154
  %1187 = vst [vmem:[%s2 + $0x14] sm:$0xf] %v1155
  %1188 = vst [vmem:[%s2 + $0x18] sm:$0xf] %v1156
  %1189 = vst [vmem:[%s2 + $0x1c] sm:$0xf] %v1157
  %1190 = vst [vmem:[%s2 + $0x20] sm:$0xf] %v1158
  %1191 = vst [vmem:[%s2 + $0x24] sm:$0xf] %v1159
  %1192 = vst [vmem:[%s2 + $0x28] sm:$0xf] %v1160
  %1193 = vst [vmem:[%s2 + $0x2c] sm:$0xf] %v1161
  %1194 = vst [vmem:[%s2 + $0x30] sm:$0xf] %v1162
  %1195 = vst [vmem:[%s2 + $0x34] sm:$0xf] %v1163
  %1196 = vst [vmem:[%s2 + $0x38] sm:$0xf] %v1164
  %1197 = vst [vmem:[%s2 + $0x3c] sm:$0xf] %v1165
  // Predicated region
  $region10: #{downsamp_forward.2} parent=0 // pred_check
    _
  $region11: #{downsamp_forward.2} parent=0 // pred_check_branch
    %1199 = sbr.rel (0) target = $region13
  $region12: #{downsamp_forward.2} parent=0 // pred_region
    _
  $region13: #{downsamp_forward.2} parent=0 // pred_fallthru
    _
  // Predicated region
  $region14: #{downsamp_forward.2} parent=0 // pred_check
    _
  $region15: #{downsamp_forward.2} parent=0 // pred_check_branch
    %1201 = sbr.rel (0) target = $region17
  $region16: #{downsamp_forward.2} parent=0 // pred_region
    _
  $region17: #{downsamp_forward.2} parent=0 // pred_fallthru
    _
  // Predicated region
  $region18: #{downsamp_forward.2} parent=0 // pred_check
    _
  $region19: #{downsamp_forward.2} parent=0 // pred_check_branch
    %1203 = sbr.rel (0) target = $region21
  $region20: #{downsamp_forward.2} parent=0 // pred_region
    _
  $region21: #{downsamp_forward.2} parent=0 // pred_fallthru
    _
  // Predicated region
  $region22: #{downsamp_forward.2} parent=0 // pred_check
    _
  $region23: #{downsamp_forward.2} parent=0 // pred_check_branch
    %1205 = sbr.rel (0) target = $region25
  $region24: #{downsamp_forward.2} parent=0 // pred_region
    _
  $region25: #{downsamp_forward.2} parent=0 // pred_fallthru
    _

// kernel: downsamp_forward.3
$region0: #{downsamp_forward.3}
  #allocation0 [shape = 'u32[]', space=smem, size = 0x4, offset = 0x4, fixed_abs, tag = 'smem constant byte address 0x4 - core index']
  #allocation1 [shape = 'u32[144,128]{1,0:T(1,128)}', space=vmem, size = 0x12000, scoped, tag = 'internal scratch']
  #allocation2 [shape = 'bf16[128,1152]{1,0:T(8,128)(2,1)}', space=vmem, size = 0x48000, scoped, tag = 'scratch operand']
  %s0 = inlined_call_operand.vmem [shape: bf16[2,64,128], index: 0, kind: input, shape index: {}]
  %s1 = inlined_call_operand.vmem [shape: bf16[1152,128], index: 1, kind: input, shape index: {}]
  %s2 = inlined_call_operand.vmem [shape: f32[1,128], index: 2, kind: input, shape index: {}]
  %s3 = inlined_call_operand.vmem [shape: f32[1,128], index: 3, kind: input, shape index: {}]
  %s4 = inlined_call_operand.vmem [shape: bf16[2,64,128], index: 4, kind: output, shape index: {0}]
  %s5 = inlined_call_operand.vmem [shape: f32[1,2,128], index: 5, kind: output, shape index: {1}]
  %6 = xla_tuple %s4, %s5
  %s7 = sld [smem:[#allocation0]]
  $region34: #{downsamp_forward.3} parent=0
    _
  %s9 = ssub.s32 1, %s7
  %s10 = scalar_select 0, %s9, %s7
  // Predicated region
  $region2: #{downsamp_forward.3} parent=0 // pred_check
    _
  $region3: #{downsamp_forward.3} parent=0 // pred_check_branch
    %12 = sbr.rel (0) target = $region5
  $region4: #{downsamp_forward.3} parent=0 // pred_region
    _
  $region5: #{downsamp_forward.3} parent=0 // pred_fallthru
    _
  // Predicated region
  $region6: #{downsamp_forward.3} parent=0 // pred_check
    _
  $region7: #{downsamp_forward.3} parent=0 // pred_check_branch
    %14 = sbr.rel (0) target = $region9
  $region8: #{downsamp_forward.3} parent=0 // pred_region
    _
  $region9: #{downsamp_forward.3} parent=0 // pred_fallthru
    _
  // Predicated region
  $region10: #{downsamp_forward.3} parent=0 // pred_check
    _
  $region11: #{downsamp_forward.3} parent=0 // pred_check_branch
    %16 = sbr.rel (0) target = $region13
  $region12: #{downsamp_forward.3} parent=0 // pred_region
    _
  $region13: #{downsamp_forward.3} parent=0 // pred_fallthru
    _
  // Predicated region
  $region14: #{downsamp_forward.3} parent=0 // pred_check
    _
  $region15: #{downsamp_forward.3} parent=0 // pred_check_branch
    %18 = sbr.rel (0) target = $region17
  $region16: #{downsamp_forward.3} parent=0 // pred_region
    _
  $region17: #{downsamp_forward.3} parent=0 // pred_fallthru
    _
  %v20 = vld [vmem:[%s0] sm:$0xf]
  %v21 = vld [vmem:[%s0 + $0x4] sm:$0xf]
  %v22 = vld [vmem:[%s0 + $0x8] sm:$0xf]
  %v23 = vld [vmem:[%s0 + $0xc] sm:$0xf]
  %v24 = vld [vmem:[%s0 + $0x10] sm:$0xf]
  %v25 = vld [vmem:[%s0 + $0x14] sm:$0xf]
  %v26 = vld [vmem:[%s0 + $0x18] sm:$0xf]
  %v27 = vld [vmem:[%s0 + $0x1c] sm:$0xf]
  %v28 = vld [vmem:[%s0 + $0x20] sm:$0xf]
  %v29 = vld [vmem:[%s0 + $0x24] sm:$0xf]
  %v30 = vld [vmem:[%s0 + $0x28] sm:$0xf]
  %v31 = vld [vmem:[%s0 + $0x2c] sm:$0xf]
  %v32 = vld [vmem:[%s0 + $0x30] sm:$0xf]
  %v33 = vld [vmem:[%s0 + $0x34] sm:$0xf]
  %v34 = vld [vmem:[%s0 + $0x38] sm:$0xf]
  %v35 = vld [vmem:[%s0 + $0x3c] sm:$0xf]
  %v36 = vunpack.c.l.bf16 %v20
  %v37 = vunpack.c.l.bf16 %v21
  %v38 = vunpack.c.l.bf16 %v22
  %v39 = vunpack.c.l.bf16 %v23
  %v40 = vunpack.c.l.bf16 %v24
  %v41 = vunpack.c.l.bf16 %v25
  %v42 = vunpack.c.l.bf16 %v26
  %v43 = vunpack.c.l.bf16 %v27
  %v44 = vunpack.c.l.bf16 %v28
  %v45 = vunpack.c.l.bf16 %v29
  %v46 = vunpack.c.l.bf16 %v30
  %v47 = vunpack.c.l.bf16 %v31
  %v48 = vunpack.c.l.bf16 %v32
  %v49 = vunpack.c.l.bf16 %v33
  %v50 = vunpack.c.l.bf16 %v34
  %v51 = vunpack.c.l.bf16 %v35
  %v52 = vld [vmem:[%s2] sm:$0x1]
  %v54 = vlaneseq
  %v55 = vshrl.u32 %v54, 7
  %v56 = vsub.s32 0, %v55
  %v57 = vrot.slane %v52, %v56
  %v59 = vmul.f32 %v36, %v57
  %v60 = vmul.f32 %v37, %v57
  %v61 = vmul.f32 %v38, %v57
  %v62 = vmul.f32 %v39, %v57
  %v63 = vmul.f32 %v40, %v57
  %v64 = vmul.f32 %v41, %v57
  %v65 = vmul.f32 %v42, %v57
  %v66 = vmul.f32 %v43, %v57
  %v67 = vmul.f32 %v44, %v57
  %v68 = vmul.f32 %v45, %v57
  %v69 = vmul.f32 %v46, %v57
  %v70 = vmul.f32 %v47, %v57
  %v71 = vmul.f32 %v48, %v57
  %v72 = vmul.f32 %v49, %v57
  %v73 = vmul.f32 %v50, %v57
  %v74 = vmul.f32 %v51, %v57
  %v75 = vld [vmem:[%s3] sm:$0x1]
  %v77 = vlaneseq
  %v78 = vshrl.u32 %v77, 7
  %v79 = vsub.s32 0, %v78
  %v80 = vrot.slane %v75, %v79
  %v82 = vadd.f32 %v59, %v80
  %v83 = vadd.f32 %v60, %v80
  %v84 = vadd.f32 %v61, %v80
  %v85 = vadd.f32 %v62, %v80
  %v86 = vadd.f32 %v63, %v80
  %v87 = vadd.f32 %v64, %v80
  %v88 = vadd.f32 %v65, %v80
  %v89 = vadd.f32 %v66, %v80
  %v90 = vadd.f32 %v67, %v80
  %v91 = vadd.f32 %v68, %v80
  %v92 = vadd.f32 %v69, %v80
  %v93 = vadd.f32 %v70, %v80
  %v94 = vadd.f32 %v71, %v80
  %v95 = vadd.f32 %v72, %v80
  %v96 = vadd.f32 %v73, %v80
  %v97 = vadd.f32 %v74, %v80
  %v98 = vmax.f32 %v82, 0.0
  %v99 = vmax.f32 %v83, 0.0
  %v100 = vmax.f32 %v84, 0.0
  %v101 = vmax.f32 %v85, 0.0
  %v102 = vmax.f32 %v86, 0.0
  %v103 = vmax.f32 %v87, 0.0
  %v104 = vmax.f32 %v88, 0.0
  %v105 = vmax.f32 %v89, 0.0
  %v106 = vmax.f32 %v90, 0.0
  %v107 = vmax.f32 %v91, 0.0
  %v108 = vmax.f32 %v92, 0.0
  %v109 = vmax.f32 %v93, 0.0
  %v110 = vmax.f32 %v94, 0.0
  %v111 = vmax.f32 %v95, 0.0
  %v112 = vmax.f32 %v96, 0.0
  %v113 = vmax.f32 %v97, 0.0
  %v114 = vpack.c.bf16 %v99, %v98
  %v115 = vpack.c.bf16 %v101, %v100
  %v116 = vpack.c.bf16 %v103, %v102
  %v117 = vpack.c.bf16 %v105, %v104
  %v118 = vpack.c.bf16 %v107, %v106
  %v119 = vpack.c.bf16 %v109, %v108
  %v120 = vpack.c.bf16 %v111, %v110
  %v121 = vpack.c.bf16 %v113, %v112
  %v130 = vunpack.c.l.b16 %v114
  %v131 = vunpack.c.h.b16 %v114
  %v132 = vunpack.c.l.b16 %v115
  %v133 = vunpack.c.h.b16 %v115
  %v134 = vunpack.c.l.b16 %v116
  %v135 = vunpack.c.h.b16 %v116
  %v136 = vunpack.c.l.b16 %v117
  %v137 = vunpack.c.h.b16 %v117
  %v138 = vunpack.c.l.b16 %v118
  %v139 = vunpack.c.h.b16 %v118
  %v140 = vunpack.c.l.b16 %v119
  %v141 = vunpack.c.h.b16 %v119
  %v142 = vunpack.c.l.b16 %v120
  %v143 = vunpack.c.h.b16 %v120
  %v144 = vunpack.c.l.b16 %v121
  %v145 = vunpack.c.h.b16 %v121
  %v146 = vpack.c.b16 %v130, %v130
  %v147 = vpack.c.b16 %v131, %v131
  %v148 = vpack.c.b16 %v132, %v132
  %v149 = vpack.c.b16 %v133, %v133
  %v150 = vpack.c.b16 %v134, %v134
  %v151 = vpack.c.b16 %v135, %v135
  %v152 = vpack.c.b16 %v136, %v136
  %v153 = vpack.c.b16 %v137, %v137
  %v154 = vpack.c.b16 %v138, %v138
  %v155 = vpack.c.b16 %v139, %v139
  %v156 = vpack.c.b16 %v140, %v140
  %v157 = vpack.c.b16 %v141, %v141
  %v158 = vpack.c.b16 %v142, %v142
  %v159 = vpack.c.b16 %v143, %v143
  %v160 = vpack.c.b16 %v144, %v144
  %v161 = vpack.c.b16 %v145, %v145
  %v163 = vshrl.u32 0, 16
  %v165 = vrot.slane %v163, 7
  %v166 = vshll.u32 0, 16
  %v168 = vor.u32 %v165, %v166
  %v170 = vshrl.u32 %v146, 16
  %v172 = vrot.slane %v170, 7
  %v173 = vshll.u32 %v146, 16
  %v175 = vor.u32 %v172, %v173
  %v177 = vshrl.u32 %v147, 16
  %v179 = vrot.slane %v177, 7
  %v180 = vshll.u32 %v147, 16
  %v182 = vor.u32 %v179, %v180
  %v184 = vshrl.u32 %v148, 16
  %v186 = vrot.slane %v184, 7
  %v187 = vshll.u32 %v148, 16
  %v189 = vor.u32 %v186, %v187
  %v191 = vshrl.u32 %v149, 16
  %v193 = vrot.slane %v191, 7
  %v194 = vshll.u32 %v149, 16
  %v196 = vor.u32 %v193, %v194
  %v198 = vshrl.u32 %v150, 16
  %v200 = vrot.slane %v198, 7
  %v201 = vshll.u32 %v150, 16
  %v203 = vor.u32 %v200, %v201
  %v205 = vshrl.u32 %v151, 16
  %v207 = vrot.slane %v205, 7
  %v208 = vshll.u32 %v151, 16
  %v210 = vor.u32 %v207, %v208
  %v212 = vshrl.u32 %v152, 16
  %v214 = vrot.slane %v212, 7
  %v215 = vshll.u32 %v152, 16
  %v217 = vor.u32 %v214, %v215
  %v219 = vshrl.u32 %v153, 16
  %v221 = vrot.slane %v219, 7
  %v222 = vshll.u32 %v153, 16
  %v224 = vor.u32 %v221, %v222
  %v226 = vshrl.u32 %v154, 16
  %v228 = vrot.slane %v226, 7
  %v229 = vshll.u32 %v154, 16
  %v231 = vor.u32 %v228, %v229
  %v233 = vshrl.u32 %v155, 16
  %v235 = vrot.slane %v233, 7
  %v236 = vshll.u32 %v155, 16
  %v238 = vor.u32 %v235, %v236
  %v240 = vshrl.u32 %v156, 16
  %v242 = vrot.slane %v240, 7
  %v243 = vshll.u32 %v156, 16
  %v245 = vor.u32 %v242, %v243
  %v247 = vshrl.u32 %v157, 16
  %v249 = vrot.slane %v247, 7
  %v250 = vshll.u32 %v157, 16
  %v252 = vor.u32 %v249, %v250
  %v254 = vshrl.u32 %v158, 16
  %v256 = vrot.slane %v254, 7
  %v257 = vshll.u32 %v158, 16
  %v259 = vor.u32 %v256, %v257
  %v261 = vshrl.u32 %v159, 16
  %v263 = vrot.slane %v261, 7
  %v264 = vshll.u32 %v159, 16
  %v266 = vor.u32 %v263, %v264
  %v268 = vshrl.u32 %v160, 16
  %v270 = vrot.slane %v268, 7
  %v271 = vshll.u32 %v160, 16
  %v273 = vor.u32 %v270, %v271
  %v275 = vshrl.u32 %v161, 16
  %v277 = vrot.slane %v275, 7
  %v278 = vshll.u32 %v161, 16
  %v280 = vor.u32 %v277, %v278
  %vm298 = vcmask 1040384
  %vm299 = vsmask.f32 256
  %vm300 = vmand %vm298, %vm299
  %v301 = vsel %vm300, 0, %v168
  %v302 = vsel %vm300, 0, %v175
  %v303 = vsel %vm300, 0, %v182
  %v304 = vsel %vm300, 0, %v189
  %v305 = vsel %vm300, 0, %v196
  %v306 = vsel %vm300, 0, %v203
  %v307 = vsel %vm300, 0, %v210
  %v308 = vsel %vm300, 0, %v217
  %v309 = vsel %vm300, 0, %v224
  %v310 = vsel %vm300, 0, %v231
  %v311 = vsel %vm300, 0, %v238
  %v312 = vsel %vm300, 0, %v245
  %v313 = vsel %vm300, 0, %v252
  %v314 = vsel %vm300, 0, %v259
  %v315 = vsel %vm300, 0, %v266
  %v316 = vsel %vm300, 0, %v273
  %v317 = vsel %vm300, 0, %v280
  %vm318 = vcmask 1044480
  %vm319 = vsmask.f32 4352
  %vm320 = vmand %vm318, %vm319
  %v321 = vsel %vm320, %v301, 0
  %v322 = vsel %vm320, %v302, 0
  %v323 = vsel %vm320, %v303, 0
  %v324 = vsel %vm320, %v304, 0
  %v325 = vsel %vm320, %v305, 0
  %v326 = vsel %vm320, %v306, 0
  %v327 = vsel %vm320, %v307, 0
  %v328 = vsel %vm320, %v308, 0
  %v329 = vsel %vm320, %v309, 0
  %v330 = vsel %vm320, %v310, 0
  %v331 = vsel %vm320, %v311, 0
  %v332 = vsel %vm320, %v312, 0
  %v333 = vsel %vm320, %v313, 0
  %v334 = vsel %vm320, %v314, 0
  %v335 = vsel %vm320, %v315, 0
  %v336 = vsel %vm320, %v316, 0
  %v337 = vsel %vm320, %v317, 0
  %338 = vst [vmem:[#allocation2] sm:$0xf] %v321
  %339 = vst [vmem:[#allocation2 + $0x24] sm:$0xf] %v322
  %340 = vst [vmem:[#allocation2 + $0x48] sm:$0xf] %v323
  %341 = vst [vmem:[#allocation2 + $0x6c] sm:$0xf] %v324
  %342 = vst [vmem:[#allocation2 + $0x90] sm:$0xf] %v325
  %343 = vst [vmem:[#allocation2 + $0xb4] sm:$0xf] %v326
  %344 = vst [vmem:[#allocation2 + $0xd8] sm:$0xf] %v327
  %345 = vst [vmem:[#allocation2 + $0xfc] sm:$0xf] %v328
  %346 = vst [vmem:[#allocation2 + $0x120] sm:$0xf] %v321
  %347 = vst [vmem:[#allocation2 + $0x144] sm:$0xf] %v330
  %348 = vst [vmem:[#allocation2 + $0x168] sm:$0xf] %v331
  %349 = vst [vmem:[#allocation2 + $0x18c] sm:$0xf] %v332
  %350 = vst [vmem:[#allocation2 + $0x1b0] sm:$0xf] %v333
  %351 = vst [vmem:[#allocation2 + $0x1d4] sm:$0xf] %v334
  %352 = vst [vmem:[#allocation2 + $0x1f8] sm:$0xf] %v335
  %353 = vst [vmem:[#allocation2 + $0x21c] sm:$0xf] %v336
  %v369 = vunpack.c.l.b16 %v321
  %v370 = vunpack.c.h.b16 %v321
  %v371 = vunpack.c.l.b16 %v322
  %v372 = vunpack.c.h.b16 %v322
  %v373 = vunpack.c.l.b16 %v323
  %v374 = vunpack.c.h.b16 %v323
  %v375 = vunpack.c.l.b16 %v324
  %v376 = vunpack.c.h.b16 %v324
  %v377 = vunpack.c.l.b16 %v325
  %v378 = vunpack.c.h.b16 %v325
  %v379 = vunpack.c.l.b16 %v326
  %v380 = vunpack.c.h.b16 %v326
  %v381 = vunpack.c.l.b16 %v327
  %v382 = vunpack.c.h.b16 %v327
  %v383 = vunpack.c.l.b16 %v328
  %v384 = vunpack.c.h.b16 %v328
  %v385 = vunpack.c.l.b16 %v330
  %v386 = vunpack.c.h.b16 %v330
  %v387 = vunpack.c.l.b16 %v331
  %v388 = vunpack.c.h.b16 %v331
  %v389 = vunpack.c.l.b16 %v332
  %v390 = vunpack.c.h.b16 %v332
  %v391 = vunpack.c.l.b16 %v333
  %v392 = vunpack.c.h.b16 %v333
  %v393 = vunpack.c.l.b16 %v334
  %v394 = vunpack.c.h.b16 %v334
  %v395 = vunpack.c.l.b16 %v335
  %v396 = vunpack.c.h.b16 %v335
  %v397 = vunpack.c.l.b16 %v336
  %v398 = vunpack.c.h.b16 %v336
  %v399 = vpack.c.b16 %v369, %v369
  %v400 = vpack.c.b16 %v370, %v370
  %v401 = vpack.c.b16 %v371, %v371
  %v402 = vpack.c.b16 %v372, %v372
  %v403 = vpack.c.b16 %v373, %v373
  %v404 = vpack.c.b16 %v374, %v374
  %v405 = vpack.c.b16 %v375, %v375
  %v406 = vpack.c.b16 %v376, %v376
  %v407 = vpack.c.b16 %v377, %v377
  %v408 = vpack.c.b16 %v378, %v378
  %v409 = vpack.c.b16 %v379, %v379
  %v410 = vpack.c.b16 %v380, %v380
  %v411 = vpack.c.b16 %v381, %v381
  %v412 = vpack.c.b16 %v382, %v382
  %v413 = vpack.c.b16 %v383, %v383
  %v414 = vpack.c.b16 %v384, %v384
  %v415 = vpack.c.b16 %v385, %v385
  %v416 = vpack.c.b16 %v386, %v386
  %v417 = vpack.c.b16 %v387, %v387
  %v418 = vpack.c.b16 %v388, %v388
  %v419 = vpack.c.b16 %v389, %v389
  %v420 = vpack.c.b16 %v390, %v390
  %v421 = vpack.c.b16 %v391, %v391
  %v422 = vpack.c.b16 %v392, %v392
  %v423 = vpack.c.b16 %v393, %v393
  %v424 = vpack.c.b16 %v394, %v394
  %v425 = vpack.c.b16 %v395, %v395
  %v426 = vpack.c.b16 %v396, %v396
  %v427 = vpack.c.b16 %v397, %v397
  %v428 = vpack.c.b16 %v398, %v398
  %vm429 = vsmask.f32 3328
  %vm430 = vsmask.f32 7440
  %vm431 = vmor %vm429, %vm430
  %v433 = vshrl.u32 %v399, 16
  %v435 = vrot.slane %v433, 4
  %v436 = vshll.u32 %v399, 16
  %v438 = vrot.slane %v436, 5
  %v439 = vor.u32 %v435, %v438
  %v440 = vrot.slane %v439, 4
  %v442 = vshll.u32 %v400, 16
  %v444 = vrot.slane %v442, 5
  %v445 = vsel %vm431, %v440, %v444
  %v447 = vshrl.u32 %v401, 16
  %v449 = vrot.slane %v447, 4
  %v450 = vshll.u32 %v401, 16
  %v452 = vrot.slane %v450, 5
  %v453 = vor.u32 %v449, %v452
  %v454 = vrot.slane %v453, 4
  %v456 = vshll.u32 %v402, 16
  %v458 = vrot.slane %v456, 5
  %v459 = vsel %vm431, %v454, %v458
  %v461 = vshrl.u32 %v403, 16
  %v463 = vrot.slane %v461, 4
  %v464 = vshll.u32 %v403, 16
  %v466 = vrot.slane %v464, 5
  %v467 = vor.u32 %v463, %v466
  %v468 = vrot.slane %v467, 4
  %v470 = vshll.u32 %v404, 16
  %v472 = vrot.slane %v470, 5
  %v473 = vsel %vm431, %v468, %v472
  %v475 = vshrl.u32 %v405, 16
  %v477 = vrot.slane %v475, 4
  %v478 = vshll.u32 %v405, 16
  %v480 = vrot.slane %v478, 5
  %v481 = vor.u32 %v477, %v480
  %v482 = vrot.slane %v481, 4
  %v484 = vshll.u32 %v406, 16
  %v486 = vrot.slane %v484, 5
  %v487 = vsel %vm431, %v482, %v486
  %v489 = vshrl.u32 %v407, 16
  %v491 = vrot.slane %v489, 4
  %v492 = vshll.u32 %v407, 16
  %v494 = vrot.slane %v492, 5
  %v495 = vor.u32 %v491, %v494
  %v496 = vrot.slane %v495, 4
  %v498 = vshll.u32 %v408, 16
  %v500 = vrot.slane %v498, 5
  %v501 = vsel %vm431, %v496, %v500
  %v503 = vshrl.u32 %v409, 16
  %v505 = vrot.slane %v503, 4
  %v506 = vshll.u32 %v409, 16
  %v508 = vrot.slane %v506, 5
  %v509 = vor.u32 %v505, %v508
  %v510 = vrot.slane %v509, 4
  %v512 = vshll.u32 %v410, 16
  %v514 = vrot.slane %v512, 5
  %v515 = vsel %vm431, %v510, %v514
  %v517 = vshrl.u32 %v411, 16
  %v519 = vrot.slane %v517, 4
  %v520 = vshll.u32 %v411, 16
  %v522 = vrot.slane %v520, 5
  %v523 = vor.u32 %v519, %v522
  %v524 = vrot.slane %v523, 4
  %v526 = vshll.u32 %v412, 16
  %v528 = vrot.slane %v526, 5
  %v529 = vsel %vm431, %v524, %v528
  %v531 = vshrl.u32 %v413, 16
  %v533 = vrot.slane %v531, 4
  %v534 = vshll.u32 %v413, 16
  %v536 = vrot.slane %v534, 5
  %v537 = vor.u32 %v533, %v536
  %v538 = vrot.slane %v537, 4
  %v540 = vshll.u32 %v414, 16
  %v542 = vrot.slane %v540, 5
  %v543 = vsel %vm431, %v538, %v542
  %v545 = vshrl.u32 %v415, 16
  %v547 = vrot.slane %v545, 4
  %v548 = vshll.u32 %v415, 16
  %v550 = vrot.slane %v548, 5
  %v551 = vor.u32 %v547, %v550
  %v552 = vrot.slane %v551, 4
  %v554 = vshll.u32 %v416, 16
  %v556 = vrot.slane %v554, 5
  %v557 = vsel %vm431, %v552, %v556
  %v559 = vshrl.u32 %v417, 16
  %v561 = vrot.slane %v559, 4
  %v562 = vshll.u32 %v417, 16
  %v564 = vrot.slane %v562, 5
  %v565 = vor.u32 %v561, %v564
  %v566 = vrot.slane %v565, 4
  %v568 = vshll.u32 %v418, 16
  %v570 = vrot.slane %v568, 5
  %v571 = vsel %vm431, %v566, %v570
  %v573 = vshrl.u32 %v419, 16
  %v575 = vrot.slane %v573, 4
  %v576 = vshll.u32 %v419, 16
  %v578 = vrot.slane %v576, 5
  %v579 = vor.u32 %v575, %v578
  %v580 = vrot.slane %v579, 4
  %v582 = vshll.u32 %v420, 16
  %v584 = vrot.slane %v582, 5
  %v585 = vsel %vm431, %v580, %v584
  %v587 = vshrl.u32 %v421, 16
  %v589 = vrot.slane %v587, 4
  %v590 = vshll.u32 %v421, 16
  %v592 = vrot.slane %v590, 5
  %v593 = vor.u32 %v589, %v592
  %v594 = vrot.slane %v593, 4
  %v596 = vshll.u32 %v422, 16
  %v598 = vrot.slane %v596, 5
  %v599 = vsel %vm431, %v594, %v598
  %v601 = vshrl.u32 %v423, 16
  %v603 = vrot.slane %v601, 4
  %v604 = vshll.u32 %v423, 16
  %v606 = vrot.slane %v604, 5
  %v607 = vor.u32 %v603, %v606
  %v608 = vrot.slane %v607, 4
  %v610 = vshll.u32 %v424, 16
  %v612 = vrot.slane %v610, 5
  %v613 = vsel %vm431, %v608, %v612
  %v615 = vshrl.u32 %v425, 16
  %v617 = vrot.slane %v615, 4
  %v618 = vshll.u32 %v425, 16
  %v620 = vrot.slane %v618, 5
  %v621 = vor.u32 %v617, %v620
  %v622 = vrot.slane %v621, 4
  %v624 = vshll.u32 %v426, 16
  %v626 = vrot.slane %v624, 5
  %v627 = vsel %vm431, %v622, %v626
  %v629 = vshrl.u32 %v427, 16
  %v631 = vrot.slane %v629, 4
  %v632 = vshll.u32 %v427, 16
  %v634 = vrot.slane %v632, 5
  %v635 = vor.u32 %v631, %v634
  %v636 = vrot.slane %v635, 4
  %v638 = vshll.u32 %v428, 16
  %v640 = vrot.slane %v638, 5
  %v641 = vsel %vm431, %v636, %v640
  %657 = vst [vmem:[#allocation2 + $0x4] sm:$0xf] %v445
  %658 = vst [vmem:[#allocation2 + $0x28] sm:$0xf] %v459
  %659 = vst [vmem:[#allocation2 + $0x4c] sm:$0xf] %v473
  %660 = vst [vmem:[#allocation2 + $0x70] sm:$0xf] %v487
  %661 = vst [vmem:[#allocation2 + $0x94] sm:$0xf] %v501
  %662 = vst [vmem:[#allocation2 + $0xb8] sm:$0xf] %v515
  %663 = vst [vmem:[#allocation2 + $0xdc] sm:$0xf] %v529
  %664 = vst [vmem:[#allocation2 + $0x100] sm:$0xf] %v543
  %665 = vst [vmem:[#allocation2 + $0x124] sm:$0xf] %v445
  %666 = vst [vmem:[#allocation2 + $0x148] sm:$0xf] %v557
  %667 = vst [vmem:[#allocation2 + $0x16c] sm:$0xf] %v571
  %668 = vst [vmem:[#allocation2 + $0x190] sm:$0xf] %v585
  %669 = vst [vmem:[#allocation2 + $0x1b4] sm:$0xf] %v599
  %670 = vst [vmem:[#allocation2 + $0x1d8] sm:$0xf] %v613
  %671 = vst [vmem:[#allocation2 + $0x1fc] sm:$0xf] %v627
  %672 = vst [vmem:[#allocation2 + $0x220] sm:$0xf] %v641
  %vm673 = vcmask 1042432
  %vm674 = vcmask 1046532
  %vm675 = vmor %vm673, %vm674
  %v676 = vrot.slane %v399, 5
  %v677 = vrot.slane %v676, 4
  %v678 = vrot.slane %v400, 5
  %v679 = vsel %vm675, %v677, %v678
  %v680 = vrot.slane %v401, 5
  %v681 = vrot.slane %v680, 4
  %v682 = vrot.slane %v402, 5
  %v683 = vsel %vm675, %v681, %v682
  %v684 = vrot.slane %v403, 5
  %v685 = vrot.slane %v684, 4
  %v686 = vrot.slane %v404, 5
  %v687 = vsel %vm675, %v685, %v686
  %v688 = vrot.slane %v405, 5
  %v689 = vrot.slane %v688, 4
  %v690 = vrot.slane %v406, 5
  %v691 = vsel %vm675, %v689, %v690
  %v692 = vrot.slane %v407, 5
  %v693 = vrot.slane %v692, 4
  %v694 = vrot.slane %v408, 5
  %v695 = vsel %vm675, %v693, %v694
  %v696 = vrot.slane %v409, 5
  %v697 = vrot.slane %v696, 4
  %v698 = vrot.slane %v410, 5
  %v699 = vsel %vm675, %v697, %v698
  %v700 = vrot.slane %v411, 5
  %v701 = vrot.slane %v700, 4
  %v702 = vrot.slane %v412, 5
  %v703 = vsel %vm675, %v701, %v702
  %v704 = vrot.slane %v413, 5
  %v705 = vrot.slane %v704, 4
  %v706 = vrot.slane %v414, 5
  %v707 = vsel %vm675, %v705, %v706
  %v708 = vrot.slane %v415, 5
  %v709 = vrot.slane %v708, 4
  %v710 = vrot.slane %v416, 5
  %v711 = vsel %vm675, %v709, %v710
  %v712 = vrot.slane %v417, 5
  %v713 = vrot.slane %v712, 4
  %v714 = vrot.slane %v418, 5
  %v715 = vsel %vm675, %v713, %v714
  %v716 = vrot.slane %v419, 5
  %v717 = vrot.slane %v716, 4
  %v718 = vrot.slane %v420, 5
  %v719 = vsel %vm675, %v717, %v718
  %v720 = vrot.slane %v421, 5
  %v721 = vrot.slane %v720, 4
  %v722 = vrot.slane %v422, 5
  %v723 = vsel %vm675, %v721, %v722
  %v724 = vrot.slane %v423, 5
  %v725 = vrot.slane %v724, 4
  %v726 = vrot.slane %v424, 5
  %v727 = vsel %vm675, %v725, %v726
  %v728 = vrot.slane %v425, 5
  %v729 = vrot.slane %v728, 4
  %v730 = vrot.slane %v426, 5
  %v731 = vsel %vm675, %v729, %v730
  %v732 = vrot.slane %v427, 5
  %v733 = vrot.slane %v732, 4
  %v734 = vrot.slane %v428, 5
  %v735 = vsel %vm675, %v733, %v734
  %751 = vst [vmem:[#allocation2 + $0x8] sm:$0xf] %v679
  %752 = vst [vmem:[#allocation2 + $0x2c] sm:$0xf] %v683
  %753 = vst [vmem:[#allocation2 + $0x50] sm:$0xf] %v687
  %754 = vst [vmem:[#allocation2 + $0x74] sm:$0xf] %v691
  %755 = vst [vmem:[#allocation2 + $0x98] sm:$0xf] %v695
  %756 = vst [vmem:[#allocation2 + $0xbc] sm:$0xf] %v699
  %757 = vst [vmem:[#allocation2 + $0xe0] sm:$0xf] %v703
  %758 = vst [vmem:[#allocation2 + $0x104] sm:$0xf] %v707
  %759 = vst [vmem:[#allocation2 + $0x128] sm:$0xf] %v679
  %760 = vst [vmem:[#allocation2 + $0x14c] sm:$0xf] %v711
  %761 = vst [vmem:[#allocation2 + $0x170] sm:$0xf] %v715
  %762 = vst [vmem:[#allocation2 + $0x194] sm:$0xf] %v719
  %763 = vst [vmem:[#allocation2 + $0x1b8] sm:$0xf] %v723
  %764 = vst [vmem:[#allocation2 + $0x1dc] sm:$0xf] %v727
  %765 = vst [vmem:[#allocation2 + $0x200] sm:$0xf] %v731
  %766 = vst [vmem:[#allocation2 + $0x224] sm:$0xf] %v735
  %767 = vst [vmem:[#allocation2 + $0xc] sm:$0xf] %v322
  %768 = vst [vmem:[#allocation2 + $0x30] sm:$0xf] %v323
  %769 = vst [vmem:[#allocation2 + $0x54] sm:$0xf] %v324
  %770 = vst [vmem:[#allocation2 + $0x78] sm:$0xf] %v325
  %771 = vst [vmem:[#allocation2 + $0x9c] sm:$0xf] %v326
  %772 = vst [vmem:[#allocation2 + $0xc0] sm:$0xf] %v327
  %773 = vst [vmem:[#allocation2 + $0xe4] sm:$0xf] %v328
  %774 = vst [vmem:[#allocation2 + $0x108] sm:$0xf] %v329
  %775 = vst [vmem:[#allocation2 + $0x12c] sm:$0xf] %v330
  %776 = vst [vmem:[#allocation2 + $0x150] sm:$0xf] %v331
  %777 = vst [vmem:[#allocation2 + $0x174] sm:$0xf] %v332
  %778 = vst [vmem:[#allocation2 + $0x198] sm:$0xf] %v333
  %779 = vst [vmem:[#allocation2 + $0x1bc] sm:$0xf] %v334
  %780 = vst [vmem:[#allocation2 + $0x1e0] sm:$0xf] %v335
  %781 = vst [vmem:[#allocation2 + $0x204] sm:$0xf] %v336
  %782 = vst [vmem:[#allocation2 + $0x228] sm:$0xf] %v337
  %v785 = vunpack.c.l.b16 %v329
  %v786 = vunpack.c.h.b16 %v329
  %v787 = vunpack.c.l.b16 %v337
  %v788 = vunpack.c.h.b16 %v337
  %v789 = vpack.c.b16 %v785, %v785
  %v790 = vpack.c.b16 %v786, %v786
  %v791 = vpack.c.b16 %v787, %v787
  %v792 = vpack.c.b16 %v788, %v788
  %v794 = vshrl.u32 %v789, 16
  %v796 = vrot.slane %v794, 4
  %v797 = vshll.u32 %v789, 16
  %v799 = vrot.slane %v797, 5
  %v800 = vor.u32 %v796, %v799
  %v801 = vrot.slane %v800, 4
  %v803 = vshll.u32 %v790, 16
  %v805 = vrot.slane %v803, 5
  %v806 = vsel %vm431, %v801, %v805
  %v808 = vshrl.u32 %v791, 16
  %v810 = vrot.slane %v808, 4
  %v811 = vshll.u32 %v791, 16
  %v813 = vrot.slane %v811, 5
  %v814 = vor.u32 %v810, %v813
  %v815 = vrot.slane %v814, 4
  %v817 = vshll.u32 %v792, 16
  %v819 = vrot.slane %v817, 5
  %v820 = vsel %vm431, %v815, %v819
  %823 = vst [vmem:[#allocation2 + $0x10] sm:$0xf] %v459
  %824 = vst [vmem:[#allocation2 + $0x34] sm:$0xf] %v473
  %825 = vst [vmem:[#allocation2 + $0x58] sm:$0xf] %v487
  %826 = vst [vmem:[#allocation2 + $0x7c] sm:$0xf] %v501
  %827 = vst [vmem:[#allocation2 + $0xa0] sm:$0xf] %v515
  %828 = vst [vmem:[#allocation2 + $0xc4] sm:$0xf] %v529
  %829 = vst [vmem:[#allocation2 + $0xe8] sm:$0xf] %v543
  %830 = vst [vmem:[#allocation2 + $0x10c] sm:$0xf] %v806
  %831 = vst [vmem:[#allocation2 + $0x130] sm:$0xf] %v557
  %832 = vst [vmem:[#allocation2 + $0x154] sm:$0xf] %v571
  %833 = vst [vmem:[#allocation2 + $0x178] sm:$0xf] %v585
  %834 = vst [vmem:[#allocation2 + $0x19c] sm:$0xf] %v599
  %835 = vst [vmem:[#allocation2 + $0x1c0] sm:$0xf] %v613
  %836 = vst [vmem:[#allocation2 + $0x1e4] sm:$0xf] %v627
  %837 = vst [vmem:[#allocation2 + $0x208] sm:$0xf] %v641
  %838 = vst [vmem:[#allocation2 + $0x22c] sm:$0xf] %v820
  %v839 = vrot.slane %v789, 5
  %v840 = vrot.slane %v839, 4
  %v841 = vrot.slane %v790, 5
  %v842 = vsel %vm675, %v840, %v841
  %v843 = vrot.slane %v791, 5
  %v844 = vrot.slane %v843, 4
  %v845 = vrot.slane %v792, 5
  %v846 = vsel %vm675, %v844, %v845
  %849 = vst [vmem:[#allocation2 + $0x14] sm:$0xf] %v683
  %850 = vst [vmem:[#allocation2 + $0x38] sm:$0xf] %v687
  %851 = vst [vmem:[#allocation2 + $0x5c] sm:$0xf] %v691
  %852 = vst [vmem:[#allocation2 + $0x80] sm:$0xf] %v695
  %853 = vst [vmem:[#allocation2 + $0xa4] sm:$0xf] %v699
  %854 = vst [vmem:[#allocation2 + $0xc8] sm:$0xf] %v703
  %855 = vst [vmem:[#allocation2 + $0xec] sm:$0xf] %v707
  %856 = vst [vmem:[#allocation2 + $0x110] sm:$0xf] %v842
  %857 = vst [vmem:[#allocation2 + $0x134] sm:$0xf] %v711
  %858 = vst [vmem:[#allocation2 + $0x158] sm:$0xf] %v715
  %859 = vst [vmem:[#allocation2 + $0x17c] sm:$0xf] %v719
  %860 = vst [vmem:[#allocation2 + $0x1a0] sm:$0xf] %v723
  %861 = vst [vmem:[#allocation2 + $0x1c4] sm:$0xf] %v727
  %862 = vst [vmem:[#allocation2 + $0x1e8] sm:$0xf] %v731
  %863 = vst [vmem:[#allocation2 + $0x20c] sm:$0xf] %v735
  %864 = vst [vmem:[#allocation2 + $0x230] sm:$0xf] %v846
  %865 = vst [vmem:[#allocation2 + $0x18] sm:$0xf] %v323
  %866 = vst [vmem:[#allocation2 + $0x3c] sm:$0xf] %v324
  %867 = vst [vmem:[#allocation2 + $0x60] sm:$0xf] %v325
  %868 = vst [vmem:[#allocation2 + $0x84] sm:$0xf] %v326
  %869 = vst [vmem:[#allocation2 + $0xa8] sm:$0xf] %v327
  %870 = vst [vmem:[#allocation2 + $0xcc] sm:$0xf] %v328
  %871 = vst [vmem:[#allocation2 + $0xf0] sm:$0xf] %v329
  %872 = vst [vmem:[#allocation2 + $0x114] sm:$0xf] %v321
  %873 = vst [vmem:[#allocation2 + $0x138] sm:$0xf] %v331
  %874 = vst [vmem:[#allocation2 + $0x15c] sm:$0xf] %v332
  %875 = vst [vmem:[#allocation2 + $0x180] sm:$0xf] %v333
  %876 = vst [vmem:[#allocation2 + $0x1a4] sm:$0xf] %v334
  %877 = vst [vmem:[#allocation2 + $0x1c8] sm:$0xf] %v335
  %878 = vst [vmem:[#allocation2 + $0x1ec] sm:$0xf] %v336
  %879 = vst [vmem:[#allocation2 + $0x210] sm:$0xf] %v337
  %880 = vst [vmem:[#allocation2 + $0x234] sm:$0xf] %v321
  %881 = vst [vmem:[#allocation2 + $0x1c] sm:$0xf] %v473
  %882 = vst [vmem:[#allocation2 + $0x40] sm:$0xf] %v487
  %883 = vst [vmem:[#allocation2 + $0x64] sm:$0xf] %v501
  %884 = vst [vmem:[#allocation2 + $0x88] sm:$0xf] %v515
  %885 = vst [vmem:[#allocation2 + $0xac] sm:$0xf] %v529
  %886 = vst [vmem:[#allocation2 + $0xd0] sm:$0xf] %v543
  %887 = vst [vmem:[#allocation2 + $0xf4] sm:$0xf] %v806
  %888 = vst [vmem:[#allocation2 + $0x118] sm:$0xf] %v445
  %889 = vst [vmem:[#allocation2 + $0x13c] sm:$0xf] %v571
  %890 = vst [vmem:[#allocation2 + $0x160] sm:$0xf] %v585
  %891 = vst [vmem:[#allocation2 + $0x184] sm:$0xf] %v599
  %892 = vst [vmem:[#allocation2 + $0x1a8] sm:$0xf] %v613
  %893 = vst [vmem:[#allocation2 + $0x1cc] sm:$0xf] %v627
  %894 = vst [vmem:[#allocation2 + $0x1f0] sm:$0xf] %v641
  %895 = vst [vmem:[#allocation2 + $0x214] sm:$0xf] %v820
  %896 = vst [vmem:[#allocation2 + $0x238] sm:$0xf] %v445
  %897 = vst [vmem:[#allocation2 + $0x20] sm:$0xf] %v687
  %898 = vst [vmem:[#allocation2 + $0x44] sm:$0xf] %v691
  %899 = vst [vmem:[#allocation2 + $0x68] sm:$0xf] %v695
  %900 = vst [vmem:[#allocation2 + $0x8c] sm:$0xf] %v699
  %901 = vst [vmem:[#allocation2 + $0xb0] sm:$0xf] %v703
  %902 = vst [vmem:[#allocation2 + $0xd4] sm:$0xf] %v707
  %903 = vst [vmem:[#allocation2 + $0xf8] sm:$0xf] %v842
  %904 = vst [vmem:[#allocation2 + $0x11c] sm:$0xf] %v679
  %905 = vst [vmem:[#allocation2 + $0x140] sm:$0xf] %v715
  %906 = vst [vmem:[#allocation2 + $0x164] sm:$0xf] %v719
  %907 = vst [vmem:[#allocation2 + $0x188] sm:$0xf] %v723
  %908 = vst [vmem:[#allocation2 + $0x1ac] sm:$0xf] %v727
  %909 = vst [vmem:[#allocation2 + $0x1d0] sm:$0xf] %v731
  %910 = vst [vmem:[#allocation2 + $0x1f4] sm:$0xf] %v735
  %911 = vst [vmem:[#allocation2 + $0x218] sm:$0xf] %v846
  %912 = vst [vmem:[#allocation2 + $0x23c] sm:$0xf] %v679
  %v913 = vld [vmem:[#allocation2] sm:$0xff]
  %v914 = vld [vmem:[#allocation2 + $0x8] sm:$0xff]
  %v915 = vld [vmem:[#allocation2 + $0x10] sm:$0xff]
  %v916 = vld [vmem:[#allocation2 + $0x18] sm:$0xff]
  %v917 = vld [vmem:[#allocation2 + $0x20] sm:$0xf]
  %v918 = vld [vmem:[#allocation2 + $0x24] sm:$0xff]
  %v919 = vld [vmem:[#allocation2 + $0x2c] sm:$0xff]
  %v920 = vld [vmem:[#allocation2 + $0x34] sm:$0xff]
  %v921 = vld [vmem:[#allocation2 + $0x3c] sm:$0xff]
  %v922 = vld [vmem:[#allocation2 + $0x44] sm:$0xf]
  %v923 = vld [vmem:[#allocation2 + $0x48] sm:$0xff]
  %v924 = vld [vmem:[#allocation2 + $0x50] sm:$0xff]
  %v925 = vld [vmem:[#allocation2 + $0x58] sm:$0xff]
  %v926 = vld [vmem:[#allocation2 + $0x60] sm:$0xff]
  %v927 = vld [vmem:[#allocation2 + $0x68] sm:$0xf]
  %v928 = vld [vmem:[#allocation2 + $0x6c] sm:$0xff]
  %v929 = vld [vmem:[#allocation2 + $0x74] sm:$0xff]
  %v930 = vld [vmem:[#allocation2 + $0x7c] sm:$0xff]
  %v931 = vld [vmem:[#allocation2 + $0x84] sm:$0xff]
  %v932 = vld [vmem:[#allocation2 + $0x8c] sm:$0xf]
  %v933 = vld [vmem:[#allocation2 + $0x90] sm:$0xff]
  %v934 = vld [vmem:[#allocation2 + $0x98] sm:$0xff]
  %v935 = vld [vmem:[#allocation2 + $0xa0] sm:$0xff]
  %v936 = vld [vmem:[#allocation2 + $0xa8] sm:$0xff]
  %v937 = vld [vmem:[#allocation2 + $0xb0] sm:$0xf]
  %v938 = vld [vmem:[#allocation2 + $0xb4] sm:$0xff]
  %v939 = vld [vmem:[#allocation2 + $0xbc] sm:$0xff]
  %v940 = vld [vmem:[#allocation2 + $0xc4] sm:$0xff]
  %v941 = vld [vmem:[#allocation2 + $0xcc] sm:$0xff]
  %v942 = vld [vmem:[#allocation2 + $0xd4] sm:$0xf]
  %v943 = vld [vmem:[#allocation2 + $0xd8] sm:$0xff]
  %v944 = vld [vmem:[#allocation2 + $0xe0] sm:$0xff]
  %v945 = vld [vmem:[#allocation2 + $0xe8] sm:$0xff]
  %v946 = vld [vmem:[#allocation2 + $0xf0] sm:$0xff]
  %v947 = vld [vmem:[#allocation2 + $0xf8] sm:$0xf]
  %v948 = vld [vmem:[#allocation2 + $0xfc] sm:$0xff]
  %v949 = vld [vmem:[#allocation2 + $0x104] sm:$0xff]
  %v950 = vld [vmem:[#allocation2 + $0x10c] sm:$0xff]
  %v951 = vld [vmem:[#allocation2 + $0x114] sm:$0xff]
  %v952 = vld [vmem:[#allocation2 + $0x11c] sm:$0xf]
  %v953 = vld [vmem:[#allocation2 + $0x120] sm:$0xff]
  %v954 = vld [vmem:[#allocation2 + $0x128] sm:$0xff]
  %v955 = vld [vmem:[#allocation2 + $0x130] sm:$0xff]
  %v956 = vld [vmem:[#allocation2 + $0x138] sm:$0xff]
  %v957 = vld [vmem:[#allocation2 + $0x140] sm:$0xf]
  %v958 = vld [vmem:[#allocation2 + $0x144] sm:$0xff]
  %v959 = vld [vmem:[#allocation2 + $0x14c] sm:$0xff]
  %v960 = vld [vmem:[#allocation2 + $0x154] sm:$0xff]
  %v961 = vld [vmem:[#allocation2 + $0x15c] sm:$0xff]
  %v962 = vld [vmem:[#allocation2 + $0x164] sm:$0xf]
  %v963 = vld [vmem:[#allocation2 + $0x168] sm:$0xff]
  %v964 = vld [vmem:[#allocation2 + $0x170] sm:$0xff]
  %v965 = vld [vmem:[#allocation2 + $0x178] sm:$0xff]
  %v966 = vld [vmem:[#allocation2 + $0x180] sm:$0xff]
  %v967 = vld [vmem:[#allocation2 + $0x188] sm:$0xf]
  %v968 = vld [vmem:[#allocation2 + $0x18c] sm:$0xff]
  %v969 = vld [vmem:[#allocation2 + $0x194] sm:$0xff]
  %v970 = vld [vmem:[#allocation2 + $0x19c] sm:$0xff]
  %v971 = vld [vmem:[#allocation2 + $0x1a4] sm:$0xff]
  %v972 = vld [vmem:[#allocation2 + $0x1ac] sm:$0xf]
  %v973 = vld [vmem:[#allocation2 + $0x1b0] sm:$0xff]
  %v974 = vld [vmem:[#allocation2 + $0x1b8] sm:$0xff]
  %v975 = vld [vmem:[#allocation2 + $0x1c0] sm:$0xff]
  %v976 = vld [vmem:[#allocation2 + $0x1c8] sm:$0xff]
  %v977 = vld [vmem:[#allocation2 + $0x1d0] sm:$0xf]
  %v978 = vld [vmem:[#allocation2 + $0x1d4] sm:$0xff]
  %v979 = vld [vmem:[#allocation2 + $0x1dc] sm:$0xff]
  %v980 = vld [vmem:[#allocation2 + $0x1e4] sm:$0xff]
  %v981 = vld [vmem:[#allocation2 + $0x1ec] sm:$0xff]
  %v982 = vld [vmem:[#allocation2 + $0x1f4] sm:$0xf]
  %v983 = vld [vmem:[#allocation2 + $0x1f8] sm:$0xff]
  %v984 = vld [vmem:[#allocation2 + $0x200] sm:$0xff]
  %v985 = vld [vmem:[#allocation2 + $0x208] sm:$0xff]
  %v986 = vld [vmem:[#allocation2 + $0x210] sm:$0xff]
  %v987 = vld [vmem:[#allocation2 + $0x218] sm:$0xf]
  %v988 = vld [vmem:[#allocation2 + $0x21c] sm:$0xff]
  %v989 = vld [vmem:[#allocation2 + $0x224] sm:$0xff]
  %v990 = vld [vmem:[#allocation2 + $0x22c] sm:$0xff]
  %v991 = vld [vmem:[#allocation2 + $0x234] sm:$0xff]
  %v992 = vld [vmem:[#allocation2 + $0x23c] sm:$0xf]
  %v993 = vld [vmem:[%s1] sm:$0xf]
  %v994 = vld [vmem:[%s1 + $0x4] sm:$0xf]
  %v995 = vld [vmem:[%s1 + $0x8] sm:$0xf]
  %v996 = vld [vmem:[%s1 + $0xc] sm:$0xf]
  %v997 = vld [vmem:[%s1 + $0x10] sm:$0xf]
  %v998 = vld [vmem:[%s1 + $0x14] sm:$0xf]
  %v999 = vld [vmem:[%s1 + $0x18] sm:$0xf]
  %v1000 = vld [vmem:[%s1 + $0x1c] sm:$0xf]
  %v1001 = vld [vmem:[%s1 + $0x20] sm:$0xf]
  %v1002 = vld [vmem:[%s1 + $0x24] sm:$0xf]
  %v1003 = vld [vmem:[%s1 + $0x28] sm:$0xf]
  %v1004 = vld [vmem:[%s1 + $0x2c] sm:$0xf]
  %v1005 = vld [vmem:[%s1 + $0x30] sm:$0xf]
  %v1006 = vld [vmem:[%s1 + $0x34] sm:$0xf]
  %v1007 = vld [vmem:[%s1 + $0x38] sm:$0xf]
  %v1008 = vld [vmem:[%s1 + $0x3c] sm:$0xf]
  %v1009 = vld [vmem:[%s1 + $0x40] sm:$0xf]
  %v1010 = vld [vmem:[%s1 + $0x44] sm:$0xf]
  %v1011 = vld [vmem:[%s1 + $0x48] sm:$0xf]
  %v1012 = vld [vmem:[%s1 + $0x4c] sm:$0xf]
  %v1013 = vld [vmem:[%s1 + $0x50] sm:$0xf]
  %v1014 = vld [vmem:[%s1 + $0x54] sm:$0xf]
  %v1015 = vld [vmem:[%s1 + $0x58] sm:$0xf]
  %v1016 = vld [vmem:[%s1 + $0x5c] sm:$0xf]
  %v1017 = vld [vmem:[%s1 + $0x60] sm:$0xf]
  %v1018 = vld [vmem:[%s1 + $0x64] sm:$0xf]
  %v1019 = vld [vmem:[%s1 + $0x68] sm:$0xf]
  %v1020 = vld [vmem:[%s1 + $0x6c] sm:$0xf]
  %v1021 = vld [vmem:[%s1 + $0x70] sm:$0xf]
  %v1022 = vld [vmem:[%s1 + $0x74] sm:$0xf]
  %v1023 = vld [vmem:[%s1 + $0x78] sm:$0xf]
  %v1024 = vld [vmem:[%s1 + $0x7c] sm:$0xf]
  %v1025 = vld [vmem:[%s1 + $0x80] sm:$0xf]
  %v1026 = vld [vmem:[%s1 + $0x84] sm:$0xf]
  %v1027 = vld [vmem:[%s1 + $0x88] sm:$0xf]
  %v1028 = vld [vmem:[%s1 + $0x8c] sm:$0xf]
  %v1029 = vld [vmem:[%s1 + $0x90] sm:$0xf]
  %v1030 = vld [vmem:[%s1 + $0x94] sm:$0xf]
  %v1031 = vld [vmem:[%s1 + $0x98] sm:$0xf]
  %v1032 = vld [vmem:[%s1 + $0x9c] sm:$0xf]
  %v1033 = vld [vmem:[%s1 + $0xa0] sm:$0xf]
  %v1034 = vld [vmem:[%s1 + $0xa4] sm:$0xf]
  %v1035 = vld [vmem:[%s1 + $0xa8] sm:$0xf]
  %v1036 = vld [vmem:[%s1 + $0xac] sm:$0xf]
  %v1037 = vld [vmem:[%s1 + $0xb0] sm:$0xf]
  %v1038 = vld [vmem:[%s1 + $0xb4] sm:$0xf]
  %v1039 = vld [vmem:[%s1 + $0xb8] sm:$0xf]
  %v1040 = vld [vmem:[%s1 + $0xbc] sm:$0xf]
  %v1041 = vld [vmem:[%s1 + $0xc0] sm:$0xf]
  %v1042 = vld [vmem:[%s1 + $0xc4] sm:$0xf]
  %v1043 = vld [vmem:[%s1 + $0xc8] sm:$0xf]
  %v1044 = vld [vmem:[%s1 + $0xcc] sm:$0xf]
  %v1045 = vld [vmem:[%s1 + $0xd0] sm:$0xf]
  %v1046 = vld [vmem:[%s1 + $0xd4] sm:$0xf]
  %v1047 = vld [vmem:[%s1 + $0xd8] sm:$0xf]
  %v1048 = vld [vmem:[%s1 + $0xdc] sm:$0xf]
  %v1049 = vld [vmem:[%s1 + $0xe0] sm:$0xf]
  %v1050 = vld [vmem:[%s1 + $0xe4] sm:$0xf]
  %v1051 = vld [vmem:[%s1 + $0xe8] sm:$0xf]
  %v1052 = vld [vmem:[%s1 + $0xec] sm:$0xf]
  %v1053 = vld [vmem:[%s1 + $0xf0] sm:$0xf]
  %v1054 = vld [vmem:[%s1 + $0xf4] sm:$0xf]
  %v1055 = vld [vmem:[%s1 + $0xf8] sm:$0xf]
  %v1056 = vld [vmem:[%s1 + $0xfc] sm:$0xf]
  %v1057 = vld [vmem:[%s1 + $0x100] sm:$0xf]
  %v1058 = vld [vmem:[%s1 + $0x104] sm:$0xf]
  %v1059 = vld [vmem:[%s1 + $0x108] sm:$0xf]
  %v1060 = vld [vmem:[%s1 + $0x10c] sm:$0xf]
  %v1061 = vld [vmem:[%s1 + $0x110] sm:$0xf]
  %v1062 = vld [vmem:[%s1 + $0x114] sm:$0xf]
  %v1063 = vld [vmem:[%s1 + $0x118] sm:$0xf]
  %v1064 = vld [vmem:[%s1 + $0x11c] sm:$0xf]
  %v1065 = vld [vmem:[%s1 + $0x120] sm:$0xf]
  %v1066 = vld [vmem:[%s1 + $0x124] sm:$0xf]
  %v1067 = vld [vmem:[%s1 + $0x128] sm:$0xf]
  %v1068 = vld [vmem:[%s1 + $0x12c] sm:$0xf]
  %v1069 = vld [vmem:[%s1 + $0x130] sm:$0xf]
  %v1070 = vld [vmem:[%s1 + $0x134] sm:$0xf]
  %v1071 = vld [vmem:[%s1 + $0x138] sm:$0xf]
  %v1072 = vld [vmem:[%s1 + $0x13c] sm:$0xf]
  %v1073 = vld [vmem:[%s1 + $0x140] sm:$0xf]
  %v1074 = vld [vmem:[%s1 + $0x144] sm:$0xf]
  %v1075 = vld [vmem:[%s1 + $0x148] sm:$0xf]
  %v1076 = vld [vmem:[%s1 + $0x14c] sm:$0xf]
  %v1077 = vld [vmem:[%s1 + $0x150] sm:$0xf]
  %v1078 = vld [vmem:[%s1 + $0x154] sm:$0xf]
  %v1079 = vld [vmem:[%s1 + $0x158] sm:$0xf]
  %v1080 = vld [vmem:[%s1 + $0x15c] sm:$0xf]
  %v1081 = vld [vmem:[%s1 + $0x160] sm:$0xf]
  %v1082 = vld [vmem:[%s1 + $0x164] sm:$0xf]
  %v1083 = vld [vmem:[%s1 + $0x168] sm:$0xf]
  %v1084 = vld [vmem:[%s1 + $0x16c] sm:$0xf]
  %v1085 = vld [vmem:[%s1 + $0x170] sm:$0xf]
  %v1086 = vld [vmem:[%s1 + $0x174] sm:$0xf]
  %v1087 = vld [vmem:[%s1 + $0x178] sm:$0xf]
  %v1088 = vld [vmem:[%s1 + $0x17c] sm:$0xf]
  %v1089 = vld [vmem:[%s1 + $0x180] sm:$0xf]
  %v1090 = vld [vmem:[%s1 + $0x184] sm:$0xf]
  %v1091 = vld [vmem:[%s1 + $0x188] sm:$0xf]
  %v1092 = vld [vmem:[%s1 + $0x18c] sm:$0xf]
  %v1093 = vld [vmem:[%s1 + $0x190] sm:$0xf]
  %v1094 = vld [vmem:[%s1 + $0x194] sm:$0xf]
  %v1095 = vld [vmem:[%s1 + $0x198] sm:$0xf]
  %v1096 = vld [vmem:[%s1 + $0x19c] sm:$0xf]
  %v1097 = vld [vmem:[%s1 + $0x1a0] sm:$0xf]
  %v1098 = vld [vmem:[%s1 + $0x1a4] sm:$0xf]
  %v1099 = vld [vmem:[%s1 + $0x1a8] sm:$0xf]
  %v1100 = vld [vmem:[%s1 + $0x1ac] sm:$0xf]
  %v1101 = vld [vmem:[%s1 + $0x1b0] sm:$0xf]
  %v1102 = vld [vmem:[%s1 + $0x1b4] sm:$0xf]
  %v1103 = vld [vmem:[%s1 + $0x1b8] sm:$0xf]
  %v1104 = vld [vmem:[%s1 + $0x1bc] sm:$0xf]
  %v1105 = vld [vmem:[%s1 + $0x1c0] sm:$0xf]
  %v1106 = vld [vmem:[%s1 + $0x1c4] sm:$0xf]
  %v1107 = vld [vmem:[%s1 + $0x1c8] sm:$0xf]
  %v1108 = vld [vmem:[%s1 + $0x1cc] sm:$0xf]
  %v1109 = vld [vmem:[%s1 + $0x1d0] sm:$0xf]
  %v1110 = vld [vmem:[%s1 + $0x1d4] sm:$0xf]
  %v1111 = vld [vmem:[%s1 + $0x1d8] sm:$0xf]
  %v1112 = vld [vmem:[%s1 + $0x1dc] sm:$0xf]
  %v1113 = vld [vmem:[%s1 + $0x1e0] sm:$0xf]
  %v1114 = vld [vmem:[%s1 + $0x1e4] sm:$0xf]
  %v1115 = vld [vmem:[%s1 + $0x1e8] sm:$0xf]
  %v1116 = vld [vmem:[%s1 + $0x1ec] sm:$0xf]
  %v1117 = vld [vmem:[%s1 + $0x1f0] sm:$0xf]
  %v1118 = vld [vmem:[%s1 + $0x1f4] sm:$0xf]
  %v1119 = vld [vmem:[%s1 + $0x1f8] sm:$0xf]
  %v1120 = vld [vmem:[%s1 + $0x1fc] sm:$0xf]
  %v1121 = vld [vmem:[%s1 + $0x200] sm:$0xf]
  %v1122 = vld [vmem:[%s1 + $0x204] sm:$0xf]
  %v1123 = vld [vmem:[%s1 + $0x208] sm:$0xf]
  %v1124 = vld [vmem:[%s1 + $0x20c] sm:$0xf]
  %v1125 = vld [vmem:[%s1 + $0x210] sm:$0xf]
  %v1126 = vld [vmem:[%s1 + $0x214] sm:$0xf]
  %v1127 = vld [vmem:[%s1 + $0x218] sm:$0xf]
  %v1128 = vld [vmem:[%s1 + $0x21c] sm:$0xf]
  %v1129 = vld [vmem:[%s1 + $0x220] sm:$0xf]
  %v1130 = vld [vmem:[%s1 + $0x224] sm:$0xf]
  %v1131 = vld [vmem:[%s1 + $0x228] sm:$0xf]
  %v1132 = vld [vmem:[%s1 + $0x22c] sm:$0xf]
  %v1133 = vld [vmem:[%s1 + $0x230] sm:$0xf]
  %v1134 = vld [vmem:[%s1 + $0x234] sm:$0xf]
  %v1135 = vld [vmem:[%s1 + $0x238] sm:$0xf]
  %v1136 = vld [vmem:[%s1 + $0x23c] sm:$0xf]
  %v1217 = vunpack.c.l.b16 %v913
  %v1218 = vunpack.c.h.b16 %v913
  %v1219 = vunpack.c.l.b16 %v914
  %v1220 = vunpack.c.h.b16 %v914
  %v1221 = vunpack.c.l.b16 %v915
  %v1222 = vunpack.c.h.b16 %v915
  %v1223 = vunpack.c.l.b16 %v916
  %v1224 = vunpack.c.h.b16 %v916
  %v1225 = vunpack.c.l.b16 %v917
  %v1226 = vunpack.c.l.b16 %v918
  %v1227 = vunpack.c.h.b16 %v918
  %v1228 = vunpack.c.l.b16 %v919
  %v1229 = vunpack.c.h.b16 %v919
  %v1230 = vunpack.c.l.b16 %v920
  %v1231 = vunpack.c.h.b16 %v920
  %v1232 = vunpack.c.l.b16 %v921
  %v1233 = vunpack.c.h.b16 %v921
  %v1234 = vunpack.c.l.b16 %v922
  %v1235 = vunpack.c.l.b16 %v923
  %v1236 = vunpack.c.h.b16 %v923
  %v1237 = vunpack.c.l.b16 %v924
  %v1238 = vunpack.c.h.b16 %v924
  %v1239 = vunpack.c.l.b16 %v925
  %v1240 = vunpack.c.h.b16 %v925
  %v1241 = vunpack.c.l.b16 %v926
  %v1242 = vunpack.c.h.b16 %v926
  %v1243 = vunpack.c.l.b16 %v927
  %v1244 = vunpack.c.l.b16 %v928
  %v1245 = vunpack.c.h.b16 %v928
  %v1246 = vunpack.c.l.b16 %v929
  %v1247 = vunpack.c.h.b16 %v929
  %v1248 = vunpack.c.l.b16 %v930
  %v1249 = vunpack.c.h.b16 %v930
  %v1250 = vunpack.c.l.b16 %v931
  %v1251 = vunpack.c.h.b16 %v931
  %v1252 = vunpack.c.l.b16 %v932
  %v1253 = vunpack.c.l.b16 %v933
  %v1254 = vunpack.c.h.b16 %v933
  %v1255 = vunpack.c.l.b16 %v934
  %v1256 = vunpack.c.h.b16 %v934
  %v1257 = vunpack.c.l.b16 %v935
  %v1258 = vunpack.c.h.b16 %v935
  %v1259 = vunpack.c.l.b16 %v936
  %v1260 = vunpack.c.h.b16 %v936
  %v1261 = vunpack.c.l.b16 %v937
  %v1262 = vunpack.c.l.b16 %v938
  %v1263 = vunpack.c.h.b16 %v938
  %v1264 = vunpack.c.l.b16 %v939
  %v1265 = vunpack.c.h.b16 %v939
  %v1266 = vunpack.c.l.b16 %v940
  %v1267 = vunpack.c.h.b16 %v940
  %v1268 = vunpack.c.l.b16 %v941
  %v1269 = vunpack.c.h.b16 %v941
  %v1270 = vunpack.c.l.b16 %v942
  %v1271 = vunpack.c.l.b16 %v943
  %v1272 = vunpack.c.h.b16 %v943
  %v1273 = vunpack.c.l.b16 %v944
  %v1274 = vunpack.c.h.b16 %v944
  %v1275 = vunpack.c.l.b16 %v945
  %v1276 = vunpack.c.h.b16 %v945
  %v1277 = vunpack.c.l.b16 %v946
  %v1278 = vunpack.c.h.b16 %v946
  %v1279 = vunpack.c.l.b16 %v947
  %v1280 = vunpack.c.l.b16 %v948
  %v1281 = vunpack.c.h.b16 %v948
  %v1282 = vunpack.c.l.b16 %v949
  %v1283 = vunpack.c.h.b16 %v949
  %v1284 = vunpack.c.l.b16 %v950
  %v1285 = vunpack.c.h.b16 %v950
  %v1286 = vunpack.c.l.b16 %v951
  %v1287 = vunpack.c.h.b16 %v951
  %v1288 = vunpack.c.l.b16 %v952
  %v1289 = vunpack.c.l.b16 %v953
  %v1290 = vunpack.c.h.b16 %v953
  %v1291 = vunpack.c.l.b16 %v954
  %v1292 = vunpack.c.h.b16 %v954
  %v1293 = vunpack.c.l.b16 %v955
  %v1294 = vunpack.c.h.b16 %v955
  %v1295 = vunpack.c.l.b16 %v956
  %v1296 = vunpack.c.h.b16 %v956
  %v1297 = vunpack.c.l.b16 %v957
  %v1298 = vunpack.c.l.b16 %v958
  %v1299 = vunpack.c.h.b16 %v958
  %v1300 = vunpack.c.l.b16 %v959
  %v1301 = vunpack.c.h.b16 %v959
  %v1302 = vunpack.c.l.b16 %v960
  %v1303 = vunpack.c.h.b16 %v960
  %v1304 = vunpack.c.l.b16 %v961
  %v1305 = vunpack.c.h.b16 %v961
  %v1306 = vunpack.c.l.b16 %v962
  %v1307 = vunpack.c.l.b16 %v963
  %v1308 = vunpack.c.h.b16 %v963
  %v1309 = vunpack.c.l.b16 %v964
  %v1310 = vunpack.c.h.b16 %v964
  %v1311 = vunpack.c.l.b16 %v965
  %v1312 = vunpack.c.h.b16 %v965
  %v1313 = vunpack.c.l.b16 %v966
  %v1314 = vunpack.c.h.b16 %v966
  %v1315 = vunpack.c.l.b16 %v967
  %v1316 = vunpack.c.l.b16 %v968
  %v1317 = vunpack.c.h.b16 %v968
  %v1318 = vunpack.c.l.b16 %v969
  %v1319 = vunpack.c.h.b16 %v969
  %v1320 = vunpack.c.l.b16 %v970
  %v1321 = vunpack.c.h.b16 %v970
  %v1322 = vunpack.c.l.b16 %v971
  %v1323 = vunpack.c.h.b16 %v971
  %v1324 = vunpack.c.l.b16 %v972
  %v1325 = vunpack.c.l.b16 %v973
  %v1326 = vunpack.c.h.b16 %v973
  %v1327 = vunpack.c.l.b16 %v974
  %v1328 = vunpack.c.h.b16 %v974
  %v1329 = vunpack.c.l.b16 %v975
  %v1330 = vunpack.c.h.b16 %v975
  %v1331 = vunpack.c.l.b16 %v976
  %v1332 = vunpack.c.h.b16 %v976
  %v1333 = vunpack.c.l.b16 %v977
  %v1334 = vunpack.c.l.b16 %v978
  %v1335 = vunpack.c.h.b16 %v978
  %v1336 = vunpack.c.l.b16 %v979
  %v1337 = vunpack.c.h.b16 %v979
  %v1338 = vunpack.c.l.b16 %v980
  %v1339 = vunpack.c.h.b16 %v980
  %v1340 = vunpack.c.l.b16 %v981
  %v1341 = vunpack.c.h.b16 %v981
  %v1342 = vunpack.c.l.b16 %v982
  %v1343 = vunpack.c.l.b16 %v983
  %v1344 = vunpack.c.h.b16 %v983
  %v1345 = vunpack.c.l.b16 %v984
  %v1346 = vunpack.c.h.b16 %v984
  %v1347 = vunpack.c.l.b16 %v985
  %v1348 = vunpack.c.h.b16 %v985
  %v1349 = vunpack.c.l.b16 %v986
  %v1350 = vunpack.c.h.b16 %v986
  %v1351 = vunpack.c.l.b16 %v987
  %v1352 = vunpack.c.l.b16 %v988
  %v1353 = vunpack.c.h.b16 %v988
  %v1354 = vunpack.c.l.b16 %v989
  %v1355 = vunpack.c.h.b16 %v989
  %v1356 = vunpack.c.l.b16 %v990
  %v1357 = vunpack.c.h.b16 %v990
  %v1358 = vunpack.c.l.b16 %v991
  %v1359 = vunpack.c.h.b16 %v991
  %v1360 = vunpack.c.l.b16 %v992
  %v1361 = vpack.c.b16 %v1226, %v1217
  %v1362 = vpack.c.b16 %v1227, %v1218
  %v1363 = vpack.c.b16 %v1228, %v1219
  %v1364 = vpack.c.b16 %v1229, %v1220
  %v1365 = vpack.c.b16 %v1230, %v1221
  %v1366 = vpack.c.b16 %v1231, %v1222
  %v1367 = vpack.c.b16 %v1232, %v1223
  %v1368 = vpack.c.b16 %v1233, %v1224
  %v1369 = vpack.c.b16 %v1234, %v1225
  %v1370 = vpack.c.b16 %v1244, %v1235
  %v1371 = vpack.c.b16 %v1245, %v1236
  %v1372 = vpack.c.b16 %v1246, %v1237
  %v1373 = vpack.c.b16 %v1247, %v1238
  %v1374 = vpack.c.b16 %v1248, %v1239
  %v1375 = vpack.c.b16 %v1249, %v1240
  %v1376 = vpack.c.b16 %v1250, %v1241
  %v1377 = vpack.c.b16 %v1251, %v1242
  %v1378 = vpack.c.b16 %v1252, %v1243
  %v1379 = vpack.c.b16 %v1262, %v1253
  %v1380 = vpack.c.b16 %v1263, %v1254
  %v1381 = vpack.c.b16 %v1264, %v1255
  %v1382 = vpack.c.b16 %v1265, %v1256
  %v1383 = vpack.c.b16 %v1266, %v1257
  %v1384 = vpack.c.b16 %v1267, %v1258
  %v1385 = vpack.c.b16 %v1268, %v1259
  %v1386 = vpack.c.b16 %v1269, %v1260
  %v1387 = vpack.c.b16 %v1270, %v1261
  %v1388 = vpack.c.b16 %v1280, %v1271
  %v1389 = vpack.c.b16 %v1281, %v1272
  %v1390 = vpack.c.b16 %v1282, %v1273
  %v1391 = vpack.c.b16 %v1283, %v1274
  %v1392 = vpack.c.b16 %v1284, %v1275
  %v1393 = vpack.c.b16 %v1285, %v1276
  %v1394 = vpack.c.b16 %v1286, %v1277
  %v1395 = vpack.c.b16 %v1287, %v1278
  %v1396 = vpack.c.b16 %v1288, %v1279
  %v1397 = vpack.c.b16 %v1298, %v1289
  %v1398 = vpack.c.b16 %v1299, %v1290
  %v1399 = vpack.c.b16 %v1300, %v1291
  %v1400 = vpack.c.b16 %v1301, %v1292
  %v1401 = vpack.c.b16 %v1302, %v1293
  %v1402 = vpack.c.b16 %v1303, %v1294
  %v1403 = vpack.c.b16 %v1304, %v1295
  %v1404 = vpack.c.b16 %v1305, %v1296
  %v1405 = vpack.c.b16 %v1306, %v1297
  %v1406 = vpack.c.b16 %v1316, %v1307
  %v1407 = vpack.c.b16 %v1317, %v1308
  %v1408 = vpack.c.b16 %v1318, %v1309
  %v1409 = vpack.c.b16 %v1319, %v1310
  %v1410 = vpack.c.b16 %v1320, %v1311
  %v1411 = vpack.c.b16 %v1321, %v1312
  %v1412 = vpack.c.b16 %v1322, %v1313
  %v1413 = vpack.c.b16 %v1323, %v1314
  %v1414 = vpack.c.b16 %v1324, %v1315
  %v1415 = vpack.c.b16 %v1334, %v1325
  %v1416 = vpack.c.b16 %v1335, %v1326
  %v1417 = vpack.c.b16 %v1336, %v1327
  %v1418 = vpack.c.b16 %v1337, %v1328
  %v1419 = vpack.c.b16 %v1338, %v1329
  %v1420 = vpack.c.b16 %v1339, %v1330
  %v1421 = vpack.c.b16 %v1340, %v1331
  %v1422 = vpack.c.b16 %v1341, %v1332
  %v1423 = vpack.c.b16 %v1342, %v1333
  %v1424 = vpack.c.b16 %v1352, %v1343
  %v1425 = vpack.c.b16 %v1353, %v1344
  %v1426 = vpack.c.b16 %v1354, %v1345
  %v1427 = vpack.c.b16 %v1355, %v1346
  %v1428 = vpack.c.b16 %v1356, %v1347
  %v1429 = vpack.c.b16 %v1357, %v1348
  %v1430 = vpack.c.b16 %v1358, %v1349
  %v1431 = vpack.c.b16 %v1359, %v1350
  %v1432 = vpack.c.b16 %v1360, %v1351
  %v1649 = vunpack.c.l.b16 %v993
  %v1650 = vunpack.c.l.b16 %v994
  %v1651 = vunpack.c.l.b16 %v995
  %v1652 = vunpack.c.l.b16 %v996
  %v1653 = vunpack.c.l.b16 %v997
  %v1654 = vunpack.c.l.b16 %v998
  %v1655 = vunpack.c.l.b16 %v999
  %v1656 = vunpack.c.l.b16 %v1000
  %v1657 = vunpack.c.l.b16 %v1001
  %v1658 = vunpack.c.l.b16 %v1002
  %v1659 = vunpack.c.l.b16 %v1003
  %v1660 = vunpack.c.l.b16 %v1004
  %v1661 = vunpack.c.l.b16 %v1005
  %v1662 = vunpack.c.l.b16 %v1006
  %v1663 = vunpack.c.l.b16 %v1007
  %v1664 = vunpack.c.l.b16 %v1008
  %v1665 = vunpack.c.l.b16 %v1009
  %v1666 = vunpack.c.l.b16 %v1010
  %v1667 = vunpack.c.l.b16 %v1011
  %v1668 = vunpack.c.l.b16 %v1012
  %v1669 = vunpack.c.l.b16 %v1013
  %v1670 = vunpack.c.l.b16 %v1014
  %v1671 = vunpack.c.l.b16 %v1015
  %v1672 = vunpack.c.l.b16 %v1016
  %v1673 = vunpack.c.l.b16 %v1017
  %v1674 = vunpack.c.l.b16 %v1018
  %v1675 = vunpack.c.l.b16 %v1019
  %v1676 = vunpack.c.l.b16 %v1020
  %v1677 = vunpack.c.l.b16 %v1021
  %v1678 = vunpack.c.l.b16 %v1022
  %v1679 = vunpack.c.l.b16 %v1023
  %v1680 = vunpack.c.l.b16 %v1024
  %v1681 = vunpack.c.l.b16 %v1025
  %v1682 = vunpack.c.l.b16 %v1026
  %v1683 = vunpack.c.l.b16 %v1027
  %v1684 = vunpack.c.l.b16 %v1028
  %v1685 = vunpack.c.l.b16 %v1029
  %v1686 = vunpack.c.l.b16 %v1030
  %v1687 = vunpack.c.l.b16 %v1031
  %v1688 = vunpack.c.l.b16 %v1032
  %v1689 = vunpack.c.l.b16 %v1033
  %v1690 = vunpack.c.l.b16 %v1034
  %v1691 = vunpack.c.l.b16 %v1035
  %v1692 = vunpack.c.l.b16 %v1036
  %v1693 = vunpack.c.l.b16 %v1037
  %v1694 = vunpack.c.l.b16 %v1038
  %v1695 = vunpack.c.l.b16 %v1039
  %v1696 = vunpack.c.l.b16 %v1040
  %v1697 = vunpack.c.l.b16 %v1041
  %v1698 = vunpack.c.l.b16 %v1042
  %v1699 = vunpack.c.l.b16 %v1043
  %v1700 = vunpack.c.l.b16 %v1044
  %v1701 = vunpack.c.l.b16 %v1045
  %v1702 = vunpack.c.l.b16 %v1046
  %v1703 = vunpack.c.l.b16 %v1047
  %v1704 = vunpack.c.l.b16 %v1048
  %v1705 = vunpack.c.l.b16 %v1049
  %v1706 = vunpack.c.l.b16 %v1050
  %v1707 = vunpack.c.l.b16 %v1051
  %v1708 = vunpack.c.l.b16 %v1052
  %v1709 = vunpack.c.l.b16 %v1053
  %v1710 = vunpack.c.l.b16 %v1054
  %v1711 = vunpack.c.l.b16 %v1055
  %v1712 = vunpack.c.l.b16 %v1056
  %v1713 = vunpack.c.l.b16 %v1057
  %v1714 = vunpack.c.l.b16 %v1058
  %v1715 = vunpack.c.l.b16 %v1059
  %v1716 = vunpack.c.l.b16 %v1060
  %v1717 = vunpack.c.l.b16 %v1061
  %v1718 = vunpack.c.l.b16 %v1062
  %v1719 = vunpack.c.l.b16 %v1063
  %v1720 = vunpack.c.l.b16 %v1064
  %v1721 = vunpack.c.l.b16 %v1065
  %v1722 = vunpack.c.l.b16 %v1066
  %v1723 = vunpack.c.l.b16 %v1067
  %v1724 = vunpack.c.l.b16 %v1068
  %v1725 = vunpack.c.l.b16 %v1069
  %v1726 = vunpack.c.l.b16 %v1070
  %v1727 = vunpack.c.l.b16 %v1071
  %v1728 = vunpack.c.l.b16 %v1072
  %v1729 = vunpack.c.l.b16 %v1073
  %v1730 = vunpack.c.l.b16 %v1074
  %v1731 = vunpack.c.l.b16 %v1075
  %v1732 = vunpack.c.l.b16 %v1076
  %v1733 = vunpack.c.l.b16 %v1077
  %v1734 = vunpack.c.l.b16 %v1078
  %v1735 = vunpack.c.l.b16 %v1079
  %v1736 = vunpack.c.l.b16 %v1080
  %v1737 = vunpack.c.l.b16 %v1081
  %v1738 = vunpack.c.l.b16 %v1082
  %v1739 = vunpack.c.l.b16 %v1083
  %v1740 = vunpack.c.l.b16 %v1084
  %v1741 = vunpack.c.l.b16 %v1085
  %v1742 = vunpack.c.l.b16 %v1086
  %v1743 = vunpack.c.l.b16 %v1087
  %v1744 = vunpack.c.l.b16 %v1088
  %v1745 = vunpack.c.l.b16 %v1089
  %v1746 = vunpack.c.l.b16 %v1090
  %v1747 = vunpack.c.l.b16 %v1091
  %v1748 = vunpack.c.l.b16 %v1092
  %v1749 = vunpack.c.l.b16 %v1093
  %v1750 = vunpack.c.l.b16 %v1094
  %v1751 = vunpack.c.l.b16 %v1095
  %v1752 = vunpack.c.l.b16 %v1096
  %v1753 = vunpack.c.l.b16 %v1097
  %v1754 = vunpack.c.l.b16 %v1098
  %v1755 = vunpack.c.l.b16 %v1099
  %v1756 = vunpack.c.l.b16 %v1100
  %v1757 = vunpack.c.l.b16 %v1101
  %v1758 = vunpack.c.l.b16 %v1102
  %v1759 = vunpack.c.l.b16 %v1103
  %v1760 = vunpack.c.l.b16 %v1104
  %v1761 = vunpack.c.l.b16 %v1105
  %v1762 = vunpack.c.l.b16 %v1106
  %v1763 = vunpack.c.l.b16 %v1107
  %v1764 = vunpack.c.l.b16 %v1108
  %v1765 = vunpack.c.l.b16 %v1109
  %v1766 = vunpack.c.l.b16 %v1110
  %v1767 = vunpack.c.l.b16 %v1111
  %v1768 = vunpack.c.l.b16 %v1112
  %v1769 = vunpack.c.l.b16 %v1113
  %v1770 = vunpack.c.l.b16 %v1114
  %v1771 = vunpack.c.l.b16 %v1115
  %v1772 = vunpack.c.l.b16 %v1116
  %v1773 = vunpack.c.l.b16 %v1117
  %v1774 = vunpack.c.l.b16 %v1118
  %v1775 = vunpack.c.l.b16 %v1119
  %v1776 = vunpack.c.l.b16 %v1120
  %v1777 = vunpack.c.l.b16 %v1121
  %v1778 = vunpack.c.l.b16 %v1122
  %v1779 = vunpack.c.l.b16 %v1123
  %v1780 = vunpack.c.l.b16 %v1124
  %v1781 = vunpack.c.l.b16 %v1125
  %v1782 = vunpack.c.l.b16 %v1126
  %v1783 = vunpack.c.l.b16 %v1127
  %v1784 = vunpack.c.l.b16 %v1128
  %v1785 = vunpack.c.l.b16 %v1129
  %v1786 = vunpack.c.l.b16 %v1130
  %v1787 = vunpack.c.l.b16 %v1131
  %v1788 = vunpack.c.l.b16 %v1132
  %v1789 = vunpack.c.l.b16 %v1133
  %v1790 = vunpack.c.l.b16 %v1134
  %v1791 = vunpack.c.l.b16 %v1135
  %v1792 = vunpack.c.l.b16 %v1136
  %v1793 = vpack.c.b16 %v1650, %v1649
  %v1794 = vpack.c.b16 %v1652, %v1651
  %v1795 = vpack.c.b16 %v1654, %v1653
  %v1796 = vpack.c.b16 %v1656, %v1655
  %v1797 = vpack.c.b16 %v1658, %v1657
  %v1798 = vpack.c.b16 %v1660, %v1659
  %v1799 = vpack.c.b16 %v1662, %v1661
  %v1800 = vpack.c.b16 %v1664, %v1663
  %v1801 = vpack.c.b16 %v1666, %v1665
  %v1802 = vpack.c.b16 %v1668, %v1667
  %v1803 = vpack.c.b16 %v1670, %v1669
  %v1804 = vpack.c.b16 %v1672, %v1671
  %v1805 = vpack.c.b16 %v1674, %v1673
  %v1806 = vpack.c.b16 %v1676, %v1675
  %v1807 = vpack.c.b16 %v1678, %v1677
  %v1808 = vpack.c.b16 %v1680, %v1679
  %v1809 = vpack.c.b16 %v1682, %v1681
  %v1810 = vpack.c.b16 %v1684, %v1683
  %v1811 = vpack.c.b16 %v1686, %v1685
  %v1812 = vpack.c.b16 %v1688, %v1687
  %v1813 = vpack.c.b16 %v1690, %v1689
  %v1814 = vpack.c.b16 %v1692, %v1691
  %v1815 = vpack.c.b16 %v1694, %v1693
  %v1816 = vpack.c.b16 %v1696, %v1695
  %v1817 = vpack.c.b16 %v1698, %v1697
  %v1818 = vpack.c.b16 %v1700, %v1699
  %v1819 = vpack.c.b16 %v1702, %v1701
  %v1820 = vpack.c.b16 %v1704, %v1703
  %v1821 = vpack.c.b16 %v1706, %v1705
  %v1822 = vpack.c.b16 %v1708, %v1707
  %v1823 = vpack.c.b16 %v1710, %v1709
  %v1824 = vpack.c.b16 %v1712, %v1711
  %v1825 = vpack.c.b16 %v1714, %v1713
  %v1826 = vpack.c.b16 %v1716, %v1715
  %v1827 = vpack.c.b16 %v1718, %v1717
  %v1828 = vpack.c.b16 %v1720, %v1719
  %v1829 = vpack.c.b16 %v1722, %v1721
  %v1830 = vpack.c.b16 %v1724, %v1723
  %v1831 = vpack.c.b16 %v1726, %v1725
  %v1832 = vpack.c.b16 %v1728, %v1727
  %v1833 = vpack.c.b16 %v1730, %v1729
  %v1834 = vpack.c.b16 %v1732, %v1731
  %v1835 = vpack.c.b16 %v1734, %v1733
  %v1836 = vpack.c.b16 %v1736, %v1735
  %v1837 = vpack.c.b16 %v1738, %v1737
  %v1838 = vpack.c.b16 %v1740, %v1739
  %v1839 = vpack.c.b16 %v1742, %v1741
  %v1840 = vpack.c.b16 %v1744, %v1743
  %v1841 = vpack.c.b16 %v1746, %v1745
  %v1842 = vpack.c.b16 %v1748, %v1747
  %v1843 = vpack.c.b16 %v1750, %v1749
  %v1844 = vpack.c.b16 %v1752, %v1751
  %v1845 = vpack.c.b16 %v1754, %v1753
  %v1846 = vpack.c.b16 %v1756, %v1755
  %v1847 = vpack.c.b16 %v1758, %v1757
  %v1848 = vpack.c.b16 %v1760, %v1759
  %v1849 = vpack.c.b16 %v1762, %v1761
  %v1850 = vpack.c.b16 %v1764, %v1763
  %v1851 = vpack.c.b16 %v1766, %v1765
  %v1852 = vpack.c.b16 %v1768, %v1767
  %v1853 = vpack.c.b16 %v1770, %v1769
  %v1854 = vpack.c.b16 %v1772, %v1771
  %v1855 = vpack.c.b16 %v1774, %v1773
  %v1856 = vpack.c.b16 %v1776, %v1775
  %v1857 = vpack.c.b16 %v1778, %v1777
  %v1858 = vpack.c.b16 %v1780, %v1779
  %v1859 = vpack.c.b16 %v1782, %v1781
  %v1860 = vpack.c.b16 %v1784, %v1783
  %v1861 = vpack.c.b16 %v1786, %v1785
  %v1862 = vpack.c.b16 %v1788, %v1787
  %v1863 = vpack.c.b16 %v1790, %v1789
  %v1864 = vpack.c.b16 %v1792, %v1791
  %1937 = vmatprep.subr.bf16.mxu0 0
  %1938 = vmatpush1.bf16.msra.mxu0 %v1800
  %1939 = vmatprep.subr.bf16.mxu0 0
  %1940 = vmatpush1.bf16.msra.mxu0 %v1799
  %1941 = vmatprep.subr.bf16.mxu0 0
  %1942 = vmatpush1.bf16.msra.mxu0 %v1798
  %1943 = vmatprep.subr.bf16.mxu0 0
  %1944 = vmatpush1.bf16.msra.mxu0 %v1797
  %1945 = vmatprep.subr.bf16.mxu0 0
  %1946 = vmatpush1.bf16.msra.mxu0 %v1796
  %1947 = vmatprep.subr.bf16.mxu0 0
  %1948 = vmatpush1.bf16.msra.mxu0 %v1795
  %1949 = vmatprep.subr.bf16.mxu0 0
  %1950 = vmatpush1.bf16.msra.mxu0 %v1794
  %1951 = vmatprep.subr.bf16.mxu0 0
  %1952 = vmatpush1.bf16.msra.mxu0 %v1793
  %1953 = vmatprep.subr.bf16.mxu0 0
  %1954 = vmatpush2.bf16.msra.mxu0 %v1808
  %1955 = vmatprep.subr.bf16.mxu0 0
  %1956 = vmatpush2.bf16.msra.mxu0 %v1807
  %1957 = vmatprep.subr.bf16.mxu0 0
  %1958 = vmatpush2.bf16.msra.mxu0 %v1806
  %1959 = vmatprep.subr.bf16.mxu0 0
  %1960 = vmatpush2.bf16.msra.mxu0 %v1805
  %1961 = vmatprep.subr.bf16.mxu0 0
  %1962 = vmatpush2.bf16.msra.mxu0 %v1804
  %1963 = vmatprep.subr.bf16.mxu0 0
  %1964 = vmatpush2.bf16.msra.mxu0 %v1803
  %1965 = vmatprep.subr.bf16.mxu0 0
  %1966 = vmatpush2.bf16.msra.mxu0 %v1802
  %1967 = vmatprep.subr.bf16.mxu0 0
  %1968 = vmatpush2.bf16.msra.mxu0 %v1801
  %1969 = vmatprep.mubr.bf16.mxu0 %v1362
  %1970 = vmatmul.mubr.bf16.gmra.mxu0 %v1361
  %v1971 = vpop.f32.mrf.mxu0
  %v1972 = vadd.f32 0.0, %v1971
  %v1973 = vpop.f32.mrf.mxu0
  %v1974 = vpop.f32.mrf.mxu0
  %v1975 = vadd.f32 0.0, %v1974
  %v1976 = vpop.f32.mrf.mxu0
  %1977 = vmatprep.mubr.bf16.mxu0 %v1371
  %1978 = vmatmul.mubr.bf16.gmra.mxu0 %v1370
  %v1979 = vpop.f32.mrf.mxu0
  %v1980 = vadd.f32 0.0, %v1979
  %v1981 = vpop.f32.mrf.mxu0
  %v1982 = vpop.f32.mrf.mxu0
  %v1983 = vadd.f32 0.0, %v1982
  %v1984 = vpop.f32.mrf.mxu0
  %1985 = vmatprep.mubr.bf16.mxu0 %v1380
  %1986 = vmatmul.mubr.bf16.gmra.mxu0 %v1379
  %v1987 = vpop.f32.mrf.mxu0
  %v1988 = vadd.f32 0.0, %v1987
  %v1989 = vpop.f32.mrf.mxu0
  %v1990 = vpop.f32.mrf.mxu0
  %v1991 = vadd.f32 0.0, %v1990
  %v1992 = vpop.f32.mrf.mxu0
  %1993 = vmatprep.mubr.bf16.mxu0 %v1389
  %1994 = vmatmul.mubr.bf16.gmra.mxu0 %v1388
  %v1995 = vpop.f32.mrf.mxu0
  %v1996 = vadd.f32 0.0, %v1995
  %v1997 = vpop.f32.mrf.mxu0
  %v1998 = vpop.f32.mrf.mxu0
  %v1999 = vadd.f32 0.0, %v1998
  %v2000 = vpop.f32.mrf.mxu0
  %2001 = vmatprep.mubr.bf16.mxu0 %v1398
  %2002 = vmatmul.mubr.bf16.gmra.mxu0 %v1397
  %v2003 = vpop.f32.mrf.mxu0
  %v2004 = vadd.f32 0.0, %v2003
  %v2005 = vpop.f32.mrf.mxu0
  %v2006 = vpop.f32.mrf.mxu0
  %v2007 = vadd.f32 0.0, %v2006
  %v2008 = vpop.f32.mrf.mxu0
  %2009 = vmatprep.mubr.bf16.mxu0 %v1407
  %2010 = vmatmul.mubr.bf16.gmra.mxu0 %v1406
  %v2011 = vpop.f32.mrf.mxu0
  %v2012 = vadd.f32 0.0, %v2011
  %v2013 = vpop.f32.mrf.mxu0
  %v2014 = vpop.f32.mrf.mxu0
  %v2015 = vadd.f32 0.0, %v2014
  %v2016 = vpop.f32.mrf.mxu0
  %2017 = vmatprep.mubr.bf16.mxu0 %v1416
  %2018 = vmatmul.mubr.bf16.gmra.mxu0 %v1415
  %v2019 = vpop.f32.mrf.mxu0
  %v2020 = vadd.f32 0.0, %v2019
  %v2021 = vpop.f32.mrf.mxu0
  %v2022 = vpop.f32.mrf.mxu0
  %v2023 = vadd.f32 0.0, %v2022
  %v2024 = vpop.f32.mrf.mxu0
  %2025 = vmatprep.mubr.bf16.mxu0 %v1425
  %2026 = vmatmul.mubr.bf16.gmra.mxu0 %v1424
  %v2027 = vpop.f32.mrf.mxu0
  %v2028 = vadd.f32 0.0, %v2027
  %v2029 = vpop.f32.mrf.mxu0
  %v2030 = vpop.f32.mrf.mxu0
  %v2031 = vadd.f32 0.0, %v2030
  %v2032 = vpop.f32.mrf.mxu0
  %2033 = vdwg.mxu0
  %2034 = vmatprep.subr.bf16.mxu0 0
  %2035 = vmatpush1.bf16.msra.mxu0 %v1816
  %2036 = vmatprep.subr.bf16.mxu0 0
  %2037 = vmatpush1.bf16.msra.mxu0 %v1815
  %2038 = vmatprep.subr.bf16.mxu0 0
  %2039 = vmatpush1.bf16.msra.mxu0 %v1814
  %2040 = vmatprep.subr.bf16.mxu0 0
  %2041 = vmatpush1.bf16.msra.mxu0 %v1813
  %2042 = vmatprep.subr.bf16.mxu0 0
  %2043 = vmatpush1.bf16.msra.mxu0 %v1812
  %2044 = vmatprep.subr.bf16.mxu0 0
  %2045 = vmatpush1.bf16.msra.mxu0 %v1811
  %2046 = vmatprep.subr.bf16.mxu0 0
  %2047 = vmatpush1.bf16.msra.mxu0 %v1810
  %2048 = vmatprep.subr.bf16.mxu0 0
  %2049 = vmatpush1.bf16.msra.mxu0 %v1809
  %2050 = vmatprep.subr.bf16.mxu0 0
  %2051 = vmatpush2.bf16.msra.mxu0 %v1824
  %2052 = vmatprep.subr.bf16.mxu0 0
  %2053 = vmatpush2.bf16.msra.mxu0 %v1823
  %2054 = vmatprep.subr.bf16.mxu0 0
  %2055 = vmatpush2.bf16.msra.mxu0 %v1822
  %2056 = vmatprep.subr.bf16.mxu0 0
  %2057 = vmatpush2.bf16.msra.mxu0 %v1821
  %2058 = vmatprep.subr.bf16.mxu0 0
  %2059 = vmatpush2.bf16.msra.mxu0 %v1820
  %2060 = vmatprep.subr.bf16.mxu0 0
  %2061 = vmatpush2.bf16.msra.mxu0 %v1819
  %2062 = vmatprep.subr.bf16.mxu0 0
  %2063 = vmatpush2.bf16.msra.mxu0 %v1818
  %2064 = vmatprep.subr.bf16.mxu0 0
  %2065 = vmatpush2.bf16.msra.mxu0 %v1817
  %2066 = vmatprep.mubr.bf16.mxu0 %v1364
  %2067 = vmatmul.mubr.bf16.gmra.mxu0 %v1363
  %v2068 = vpop.f32.mrf.mxu0
  %v2069 = vadd.f32 %v1972, %v2068
  %v2070 = vpop.f32.mrf.mxu0
  %v2071 = vpop.f32.mrf.mxu0
  %v2072 = vadd.f32 %v1975, %v2071
  %v2073 = vpop.f32.mrf.mxu0
  %2074 = vmatprep.mubr.bf16.mxu0 %v1373
  %2075 = vmatmul.mubr.bf16.gmra.mxu0 %v1372
  %v2076 = vpop.f32.mrf.mxu0
  %v2077 = vadd.f32 %v1980, %v2076
  %v2078 = vpop.f32.mrf.mxu0
  %v2079 = vpop.f32.mrf.mxu0
  %v2080 = vadd.f32 %v1983, %v2079
  %v2081 = vpop.f32.mrf.mxu0
  %2082 = vmatprep.mubr.bf16.mxu0 %v1382
  %2083 = vmatmul.mubr.bf16.gmra.mxu0 %v1381
  %v2084 = vpop.f32.mrf.mxu0
  %v2085 = vadd.f32 %v1988, %v2084
  %v2086 = vpop.f32.mrf.mxu0
  %v2087 = vpop.f32.mrf.mxu0
  %v2088 = vadd.f32 %v1991, %v2087
  %v2089 = vpop.f32.mrf.mxu0
  %2090 = vmatprep.mubr.bf16.mxu0 %v1391
  %2091 = vmatmul.mubr.bf16.gmra.mxu0 %v1390
  %v2092 = vpop.f32.mrf.mxu0
  %v2093 = vadd.f32 %v1996, %v2092
  %v2094 = vpop.f32.mrf.mxu0
  %v2095 = vpop.f32.mrf.mxu0
  %v2096 = vadd.f32 %v1999, %v2095
  %v2097 = vpop.f32.mrf.mxu0
  %2098 = vmatprep.mubr.bf16.mxu0 %v1400
  %2099 = vmatmul.mubr.bf16.gmra.mxu0 %v1399
  %v2100 = vpop.f32.mrf.mxu0
  %v2101 = vadd.f32 %v2004, %v2100
  %v2102 = vpop.f32.mrf.mxu0
  %v2103 = vpop.f32.mrf.mxu0
  %v2104 = vadd.f32 %v2007, %v2103
  %v2105 = vpop.f32.mrf.mxu0
  %2106 = vmatprep.mubr.bf16.mxu0 %v1409
  %2107 = vmatmul.mubr.bf16.gmra.mxu0 %v1408
  %v2108 = vpop.f32.mrf.mxu0
  %v2109 = vadd.f32 %v2012, %v2108
  %v2110 = vpop.f32.mrf.mxu0
  %v2111 = vpop.f32.mrf.mxu0
  %v2112 = vadd.f32 %v2015, %v2111
  %v2113 = vpop.f32.mrf.mxu0
  %2114 = vmatprep.mubr.bf16.mxu0 %v1418
  %2115 = vmatmul.mubr.bf16.gmra.mxu0 %v1417
  %v2116 = vpop.f32.mrf.mxu0
  %v2117 = vadd.f32 %v2020, %v2116
  %v2118 = vpop.f32.mrf.mxu0
  %v2119 = vpop.f32.mrf.mxu0
  %v2120 = vadd.f32 %v2023, %v2119
  %v2121 = vpop.f32.mrf.mxu0
  %2122 = vmatprep.mubr.bf16.mxu0 %v1427
  %2123 = vmatmul.mubr.bf16.gmra.mxu0 %v1426
  %v2124 = vpop.f32.mrf.mxu0
  %v2125 = vadd.f32 %v2028, %v2124
  %v2126 = vpop.f32.mrf.mxu0
  %v2127 = vpop.f32.mrf.mxu0
  %v2128 = vadd.f32 %v2031, %v2127
  %v2129 = vpop.f32.mrf.mxu0
  %2130 = vdwg.mxu0
  %2131 = vmatprep.subr.bf16.mxu0 0
  %2132 = vmatpush1.bf16.msra.mxu0 %v1832
  %2133 = vmatprep.subr.bf16.mxu0 0
  %2134 = vmatpush1.bf16.msra.mxu0 %v1831
  %2135 = vmatprep.subr.bf16.mxu0 0
  %2136 = vmatpush1.bf16.msra.mxu0 %v1830
  %2137 = vmatprep.subr.bf16.mxu0 0
  %2138 = vmatpush1.bf16.msra.mxu0 %v1829
  %2139 = vmatprep.subr.bf16.mxu0 0
  %2140 = vmatpush1.bf16.msra.mxu0 %v1828
  %2141 = vmatprep.subr.bf16.mxu0 0
  %2142 = vmatpush1.bf16.msra.mxu0 %v1827
  %2143 = vmatprep.subr.bf16.mxu0 0
  %2144 = vmatpush1.bf16.msra.mxu0 %v1826
  %2145 = vmatprep.subr.bf16.mxu0 0
  %2146 = vmatpush1.bf16.msra.mxu0 %v1825
  %2147 = vmatprep.subr.bf16.mxu0 0
  %2148 = vmatpush2.bf16.msra.mxu0 %v1840
  %2149 = vmatprep.subr.bf16.mxu0 0
  %2150 = vmatpush2.bf16.msra.mxu0 %v1839
  %2151 = vmatprep.subr.bf16.mxu0 0
  %2152 = vmatpush2.bf16.msra.mxu0 %v1838
  %2153 = vmatprep.subr.bf16.mxu0 0
  %2154 = vmatpush2.bf16.msra.mxu0 %v1837
  %2155 = vmatprep.subr.bf16.mxu0 0
  %2156 = vmatpush2.bf16.msra.mxu0 %v1836
  %2157 = vmatprep.subr.bf16.mxu0 0
  %2158 = vmatpush2.bf16.msra.mxu0 %v1835
  %2159 = vmatprep.subr.bf16.mxu0 0
  %2160 = vmatpush2.bf16.msra.mxu0 %v1834
  %2161 = vmatprep.subr.bf16.mxu0 0
  %2162 = vmatpush2.bf16.msra.mxu0 %v1833
  %2163 = vmatprep.mubr.bf16.mxu0 %v1366
  %2164 = vmatmul.mubr.bf16.gmra.mxu0 %v1365
  %v2165 = vpop.f32.mrf.mxu0
  %v2166 = vadd.f32 %v2069, %v2165
  %v2167 = vpop.f32.mrf.mxu0
  %v2168 = vpop.f32.mrf.mxu0
  %v2169 = vadd.f32 %v2072, %v2168
  %v2170 = vpop.f32.mrf.mxu0
  %2171 = vmatprep.mubr.bf16.mxu0 %v1375
  %2172 = vmatmul.mubr.bf16.gmra.mxu0 %v1374
  %v2173 = vpop.f32.mrf.mxu0
  %v2174 = vadd.f32 %v2077, %v2173
  %v2175 = vpop.f32.mrf.mxu0
  %v2176 = vpop.f32.mrf.mxu0
  %v2177 = vadd.f32 %v2080, %v2176
  %v2178 = vpop.f32.mrf.mxu0
  %2179 = vmatprep.mubr.bf16.mxu0 %v1384
  %2180 = vmatmul.mubr.bf16.gmra.mxu0 %v1383
  %v2181 = vpop.f32.mrf.mxu0
  %v2182 = vadd.f32 %v2085, %v2181
  %v2183 = vpop.f32.mrf.mxu0
  %v2184 = vpop.f32.mrf.mxu0
  %v2185 = vadd.f32 %v2088, %v2184
  %v2186 = vpop.f32.mrf.mxu0
  %2187 = vmatprep.mubr.bf16.mxu0 %v1393
  %2188 = vmatmul.mubr.bf16.gmra.mxu0 %v1392
  %v2189 = vpop.f32.mrf.mxu0
  %v2190 = vadd.f32 %v2093, %v2189
  %v2191 = vpop.f32.mrf.mxu0
  %v2192 = vpop.f32.mrf.mxu0
  %v2193 = vadd.f32 %v2096, %v2192
  %v2194 = vpop.f32.mrf.mxu0
  %2195 = vmatprep.mubr.bf16.mxu0 %v1402
  %2196 = vmatmul.mubr.bf16.gmra.mxu0 %v1401
  %v2197 = vpop.f32.mrf.mxu0
  %v2198 = vadd.f32 %v2101, %v2197
  %v2199 = vpop.f32.mrf.mxu0
  %v2200 = vpop.f32.mrf.mxu0
  %v2201 = vadd.f32 %v2104, %v2200
  %v2202 = vpop.f32.mrf.mxu0
  %2203 = vmatprep.mubr.bf16.mxu0 %v1411
  %2204 = vmatmul.mubr.bf16.gmra.mxu0 %v1410
  %v2205 = vpop.f32.mrf.mxu0
  %v2206 = vadd.f32 %v2109, %v2205
  %v2207 = vpop.f32.mrf.mxu0
  %v2208 = vpop.f32.mrf.mxu0
  %v2209 = vadd.f32 %v2112, %v2208
  %v2210 = vpop.f32.mrf.mxu0
  %2211 = vmatprep.mubr.bf16.mxu0 %v1420
  %2212 = vmatmul.mubr.bf16.gmra.mxu0 %v1419
  %v2213 = vpop.f32.mrf.mxu0
  %v2214 = vadd.f32 %v2117, %v2213
  %v2215 = vpop.f32.mrf.mxu0
  %v2216 = vpop.f32.mrf.mxu0
  %v2217 = vadd.f32 %v2120, %v2216
  %v2218 = vpop.f32.mrf.mxu0
  %2219 = vmatprep.mubr.bf16.mxu0 %v1429
  %2220 = vmatmul.mubr.bf16.gmra.mxu0 %v1428
  %v2221 = vpop.f32.mrf.mxu0
  %v2222 = vadd.f32 %v2125, %v2221
  %v2223 = vpop.f32.mrf.mxu0
  %v2224 = vpop.f32.mrf.mxu0
  %v2225 = vadd.f32 %v2128, %v2224
  %v2226 = vpop.f32.mrf.mxu0
  %2227 = vdwg.mxu0
  %2228 = vmatprep.subr.bf16.mxu0 0
  %2229 = vmatpush1.bf16.msra.mxu0 %v1848
  %2230 = vmatprep.subr.bf16.mxu0 0
  %2231 = vmatpush1.bf16.msra.mxu0 %v1847
  %2232 = vmatprep.subr.bf16.mxu0 0
  %2233 = vmatpush1.bf16.msra.mxu0 %v1846
  %2234 = vmatprep.subr.bf16.mxu0 0
  %2235 = vmatpush1.bf16.msra.mxu0 %v1845
  %2236 = vmatprep.subr.bf16.mxu0 0
  %2237 = vmatpush1.bf16.msra.mxu0 %v1844
  %2238 = vmatprep.subr.bf16.mxu0 0
  %2239 = vmatpush1.bf16.msra.mxu0 %v1843
  %2240 = vmatprep.subr.bf16.mxu0 0
  %2241 = vmatpush1.bf16.msra.mxu0 %v1842
  %2242 = vmatprep.subr.bf16.mxu0 0
  %2243 = vmatpush1.bf16.msra.mxu0 %v1841
  %2244 = vmatprep.subr.bf16.mxu0 0
  %2245 = vmatpush2.bf16.msra.mxu0 %v1856
  %2246 = vmatprep.subr.bf16.mxu0 0
  %2247 = vmatpush2.bf16.msra.mxu0 %v1855
  %2248 = vmatprep.subr.bf16.mxu0 0
  %2249 = vmatpush2.bf16.msra.mxu0 %v1854
  %2250 = vmatprep.subr.bf16.mxu0 0
  %2251 = vmatpush2.bf16.msra.mxu0 %v1853
  %2252 = vmatprep.subr.bf16.mxu0 0
  %2253 = vmatpush2.bf16.msra.mxu0 %v1852
  %2254 = vmatprep.subr.bf16.mxu0 0
  %2255 = vmatpush2.bf16.msra.mxu0 %v1851
  %2256 = vmatprep.subr.bf16.mxu0 0
  %2257 = vmatpush2.bf16.msra.mxu0 %v1850
  %2258 = vmatprep.subr.bf16.mxu0 0
  %2259 = vmatpush2.bf16.msra.mxu0 %v1849
  %2260 = vmatprep.mubr.bf16.mxu0 %v1368
  %2261 = vmatmul.mubr.bf16.gmra.mxu0 %v1367
  %v2262 = vpop.f32.mrf.mxu0
  %v2263 = vadd.f32 %v2166, %v2262
  %v2264 = vpop.f32.mrf.mxu0
  %v2265 = vpop.f32.mrf.mxu0
  %v2266 = vadd.f32 %v2169, %v2265
  %v2267 = vpop.f32.mrf.mxu0
  %2268 = vmatprep.mubr.bf16.mxu0 %v1377
  %2269 = vmatmul.mubr.bf16.gmra.mxu0 %v1376
  %v2270 = vpop.f32.mrf.mxu0
  %v2271 = vadd.f32 %v2174, %v2270
  %v2272 = vpop.f32.mrf.mxu0
  %v2273 = vpop.f32.mrf.mxu0
  %v2274 = vadd.f32 %v2177, %v2273
  %v2275 = vpop.f32.mrf.mxu0
  %2276 = vmatprep.mubr.bf16.mxu0 %v1386
  %2277 = vmatmul.mubr.bf16.gmra.mxu0 %v1385
  %v2278 = vpop.f32.mrf.mxu0
  %v2279 = vadd.f32 %v2182, %v2278
  %v2280 = vpop.f32.mrf.mxu0
  %v2281 = vpop.f32.mrf.mxu0
  %v2282 = vadd.f32 %v2185, %v2281
  %v2283 = vpop.f32.mrf.mxu0
  %2284 = vmatprep.mubr.bf16.mxu0 %v1395
  %2285 = vmatmul.mubr.bf16.gmra.mxu0 %v1394
  %v2286 = vpop.f32.mrf.mxu0
  %v2287 = vadd.f32 %v2190, %v2286
  %v2288 = vpop.f32.mrf.mxu0
  %v2289 = vpop.f32.mrf.mxu0
  %v2290 = vadd.f32 %v2193, %v2289
  %v2291 = vpop.f32.mrf.mxu0
  %2292 = vmatprep.mubr.bf16.mxu0 %v1404
  %2293 = vmatmul.mubr.bf16.gmra.mxu0 %v1403
  %v2294 = vpop.f32.mrf.mxu0
  %v2295 = vadd.f32 %v2198, %v2294
  %v2296 = vpop.f32.mrf.mxu0
  %v2297 = vpop.f32.mrf.mxu0
  %v2298 = vadd.f32 %v2201, %v2297
  %v2299 = vpop.f32.mrf.mxu0
  %2300 = vmatprep.mubr.bf16.mxu0 %v1413
  %2301 = vmatmul.mubr.bf16.gmra.mxu0 %v1412
  %v2302 = vpop.f32.mrf.mxu0
  %v2303 = vadd.f32 %v2206, %v2302
  %v2304 = vpop.f32.mrf.mxu0
  %v2305 = vpop.f32.mrf.mxu0
  %v2306 = vadd.f32 %v2209, %v2305
  %v2307 = vpop.f32.mrf.mxu0
  %2308 = vmatprep.mubr.bf16.mxu0 %v1422
  %2309 = vmatmul.mubr.bf16.gmra.mxu0 %v1421
  %v2310 = vpop.f32.mrf.mxu0
  %v2311 = vadd.f32 %v2214, %v2310
  %v2312 = vpop.f32.mrf.mxu0
  %v2313 = vpop.f32.mrf.mxu0
  %v2314 = vadd.f32 %v2217, %v2313
  %v2315 = vpop.f32.mrf.mxu0
  %2316 = vmatprep.mubr.bf16.mxu0 %v1431
  %2317 = vmatmul.mubr.bf16.gmra.mxu0 %v1430
  %v2318 = vpop.f32.mrf.mxu0
  %v2319 = vadd.f32 %v2222, %v2318
  %v2320 = vpop.f32.mrf.mxu0
  %v2321 = vpop.f32.mrf.mxu0
  %v2322 = vadd.f32 %v2225, %v2321
  %v2323 = vpop.f32.mrf.mxu0
  %2324 = vdwg.mxu0
  %2325 = vmatprep.subr.bf16.mxu0 0
  %2326 = vmatpush1.bf16.msra.mxu0 %v1864
  %2327 = vmatprep.subr.bf16.mxu0 0
  %2328 = vmatpush1.bf16.msra.mxu0 %v1863
  %2329 = vmatprep.subr.bf16.mxu0 0
  %2330 = vmatpush1.bf16.msra.mxu0 %v1862
  %2331 = vmatprep.subr.bf16.mxu0 0
  %2332 = vmatpush1.bf16.msra.mxu0 %v1861
  %2333 = vmatprep.subr.bf16.mxu0 0
  %2334 = vmatpush1.bf16.msra.mxu0 %v1860
  %2335 = vmatprep.subr.bf16.mxu0 0
  %2336 = vmatpush1.bf16.msra.mxu0 %v1859
  %2337 = vmatprep.subr.bf16.mxu0 0
  %2338 = vmatpush1.bf16.msra.mxu0 %v1858
  %2339 = vmatprep.subr.bf16.mxu0 0
  %2340 = vmatpush1.bf16.msra.mxu0 %v1857
  %2341 = vmatprep.subr.bf16.mxu0 0
  %2342 = vmatpush2.bf16.msra.mxu0 0
  %2343 = vmatprep.subr.bf16.mxu0 0
  %2344 = vmatpush2.bf16.msra.mxu0 0
  %2345 = vmatprep.subr.bf16.mxu0 0
  %2346 = vmatpush2.bf16.msra.mxu0 0
  %2347 = vmatprep.subr.bf16.mxu0 0
  %2348 = vmatpush2.bf16.msra.mxu0 0
  %2349 = vmatprep.subr.bf16.mxu0 0
  %2350 = vmatpush2.bf16.msra.mxu0 0
  %2351 = vmatprep.subr.bf16.mxu0 0
  %2352 = vmatpush2.bf16.msra.mxu0 0
  %2353 = vmatprep.subr.bf16.mxu0 0
  %2354 = vmatpush2.bf16.msra.mxu0 0
  %2355 = vmatprep.subr.bf16.mxu0 0
  %2356 = vmatpush2.bf16.msra.mxu0 0
  %2357 = vmatprep.mubr.bf16.mxu0 0
  %2358 = vmatmul.mubr.bf16.gmra.mxu0 %v1369
  %v2359 = vpop.f32.mrf.mxu0
  %v2360 = vadd.f32 %v2263, %v2359
  %v2361 = vpop.f32.mrf.mxu0
  %v2362 = vpop.f32.mrf.mxu0
  %v2363 = vadd.f32 %v2266, %v2362
  %v2364 = vpop.f32.mrf.mxu0
  %2365 = vmatprep.mubr.bf16.mxu0 0
  %2366 = vmatmul.mubr.bf16.gmra.mxu0 %v1378
  %v2367 = vpop.f32.mrf.mxu0
  %v2368 = vadd.f32 %v2271, %v2367
  %v2369 = vpop.f32.mrf.mxu0
  %v2370 = vpop.f32.mrf.mxu0
  %v2371 = vadd.f32 %v2274, %v2370
  %v2372 = vpop.f32.mrf.mxu0
  %2373 = vmatprep.mubr.bf16.mxu0 0
  %2374 = vmatmul.mubr.bf16.gmra.mxu0 %v1387
  %v2375 = vpop.f32.mrf.mxu0
  %v2376 = vadd.f32 %v2279, %v2375
  %v2377 = vpop.f32.mrf.mxu0
  %v2378 = vpop.f32.mrf.mxu0
  %v2379 = vadd.f32 %v2282, %v2378
  %v2380 = vpop.f32.mrf.mxu0
  %2381 = vmatprep.mubr.bf16.mxu0 0
  %2382 = vmatmul.mubr.bf16.gmra.mxu0 %v1396
  %v2383 = vpop.f32.mrf.mxu0
  %v2384 = vadd.f32 %v2287, %v2383
  %v2385 = vpop.f32.mrf.mxu0
  %v2386 = vpop.f32.mrf.mxu0
  %v2387 = vadd.f32 %v2290, %v2386
  %v2388 = vpop.f32.mrf.mxu0
  %2389 = vmatprep.mubr.bf16.mxu0 0
  %2390 = vmatmul.mubr.bf16.gmra.mxu0 %v1405
  %v2391 = vpop.f32.mrf.mxu0
  %v2392 = vadd.f32 %v2295, %v2391
  %v2393 = vpop.f32.mrf.mxu0
  %v2394 = vpop.f32.mrf.mxu0
  %v2395 = vadd.f32 %v2298, %v2394
  %v2396 = vpop.f32.mrf.mxu0
  %2397 = vmatprep.mubr.bf16.mxu0 0
  %2398 = vmatmul.mubr.bf16.gmra.mxu0 %v1414
  %v2399 = vpop.f32.mrf.mxu0
  %v2400 = vadd.f32 %v2303, %v2399
  %v2401 = vpop.f32.mrf.mxu0
  %v2402 = vpop.f32.mrf.mxu0
  %v2403 = vadd.f32 %v2306, %v2402
  %v2404 = vpop.f32.mrf.mxu0
  %2405 = vmatprep.mubr.bf16.mxu0 0
  %2406 = vmatmul.mubr.bf16.gmra.mxu0 %v1423
  %v2407 = vpop.f32.mrf.mxu0
  %v2408 = vadd.f32 %v2311, %v2407
  %v2409 = vpop.f32.mrf.mxu0
  %v2410 = vpop.f32.mrf.mxu0
  %v2411 = vadd.f32 %v2314, %v2410
  %v2412 = vpop.f32.mrf.mxu0
  %2413 = vmatprep.mubr.bf16.mxu0 0
  %2414 = vmatmul.mubr.bf16.gmra.mxu0 %v1432
  %v2415 = vpop.f32.mrf.mxu0
  %v2416 = vadd.f32 %v2319, %v2415
  %v2417 = vpop.f32.mrf.mxu0
  %v2418 = vpop.f32.mrf.mxu0
  %v2419 = vadd.f32 %v2322, %v2418
  %v2420 = vpop.f32.mrf.mxu0
  %2421 = vdwg.mxu0
  %v2422 = vadd.f32 %v2360, %v2363
  %v2423 = vadd.f32 %v2422, %v2368
  %v2424 = vadd.f32 %v2423, %v2371
  %v2425 = vadd.f32 %v2424, %v2376
  %v2426 = vadd.f32 %v2425, %v2379
  %v2427 = vadd.f32 %v2426, %v2384
  %v2428 = vadd.f32 %v2427, %v2387
  %v2429 = vadd.f32 %v2428, %v2392
  %v2430 = vadd.f32 %v2429, %v2395
  %v2431 = vadd.f32 %v2430, %v2400
  %v2432 = vadd.f32 %v2431, %v2403
  %v2433 = vadd.f32 %v2432, %v2408
  %v2434 = vadd.f32 %v2433, %v2411
  %v2435 = vadd.f32 %v2434, %v2416
  %v2436 = vadd.f32 %v2435, %v2419
  %v2437 = vrot.slane %v2436, 4
  %v2438 = vadd.f32 %v2436, %v2437
  %v2439 = vrot.slane %v2438, 2
  %v2440 = vadd.f32 %v2438, %v2439
  %v2441 = vrot.slane %v2440, 1
  %v2442 = vadd.f32 %v2440, %v2441
  %v2443 = vmul.f32 %v2360, %v2360
  %v2444 = vmul.f32 %v2363, %v2363
  %v2445 = vmul.f32 %v2368, %v2368
  %v2446 = vmul.f32 %v2371, %v2371
  %v2447 = vmul.f32 %v2376, %v2376
  %v2448 = vmul.f32 %v2379, %v2379
  %v2449 = vmul.f32 %v2384, %v2384
  %v2450 = vmul.f32 %v2387, %v2387
  %v2451 = vmul.f32 %v2392, %v2392
  %v2452 = vmul.f32 %v2395, %v2395
  %v2453 = vmul.f32 %v2400, %v2400
  %v2454 = vmul.f32 %v2403, %v2403
  %v2455 = vmul.f32 %v2408, %v2408
  %v2456 = vmul.f32 %v2411, %v2411
  %v2457 = vmul.f32 %v2416, %v2416
  %v2458 = vmul.f32 %v2419, %v2419
  %v2459 = vadd.f32 %v2443, %v2444
  %v2460 = vadd.f32 %v2459, %v2445
  %v2461 = vadd.f32 %v2460, %v2446
  %v2462 = vadd.f32 %v2461, %v2447
  %v2463 = vadd.f32 %v2462, %v2448
  %v2464 = vadd.f32 %v2463, %v2449
  %v2465 = vadd.f32 %v2464, %v2450
  %v2466 = vadd.f32 %v2465, %v2451
  %v2467 = vadd.f32 %v2466, %v2452
  %v2468 = vadd.f32 %v2467, %v2453
  %v2469 = vadd.f32 %v2468, %v2454
  %v2470 = vadd.f32 %v2469, %v2455
  %v2471 = vadd.f32 %v2470, %v2456
  %v2472 = vadd.f32 %v2471, %v2457
  %v2473 = vadd.f32 %v2472, %v2458
  %v2474 = vrot.slane %v2473, 4
  %v2475 = vadd.f32 %v2473, %v2474
  %v2476 = vrot.slane %v2475, 2
  %v2477 = vadd.f32 %v2475, %v2476
  %v2478 = vrot.slane %v2477, 1
  %v2479 = vadd.f32 %v2477, %v2478
  %vm2480 = vcmask 1040384
  %v2481 = vsel %vm2480, %v2442, %v2479
  %2482 = vst [vmem:[%s5] sm:$0x3] %v2481
  %v2483 = vpack.c.bf16 %v2363, %v2360
  %v2484 = vpack.c.bf16 %v2371, %v2368
  %v2485 = vpack.c.bf16 %v2379, %v2376
  %v2486 = vpack.c.bf16 %v2387, %v2384
  %v2487 = vpack.c.bf16 %v2395, %v2392
  %v2488 = vpack.c.bf16 %v2403, %v2400
  %v2489 = vpack.c.bf16 %v2411, %v2408
  %v2490 = vpack.c.bf16 %v2419, %v2416
  %v2499 = vunpack.c.l.b16 %v2483
  %v2500 = vunpack.c.h.b16 %v2483
  %v2501 = vunpack.c.l.b16 %v2484
  %v2502 = vunpack.c.h.b16 %v2484
  %v2503 = vunpack.c.l.b16 %v2485
  %v2504 = vunpack.c.h.b16 %v2485
  %v2505 = vunpack.c.l.b16 %v2486
  %v2506 = vunpack.c.h.b16 %v2486
  %v2507 = vunpack.c.l.b16 %v2487
  %v2508 = vunpack.c.h.b16 %v2487
  %v2509 = vunpack.c.l.b16 %v2488
  %v2510 = vunpack.c.h.b16 %v2488
  %v2511 = vunpack.c.l.b16 %v2489
  %v2512 = vunpack.c.h.b16 %v2489
  %v2513 = vunpack.c.l.b16 %v2490
  %v2514 = vunpack.c.h.b16 %v2490
  %v2515 = vpack.c.b16 %v2499, %v2499
  %v2516 = vpack.c.b16 %v2500, %v2500
  %v2517 = vpack.c.b16 %v2501, %v2501
  %v2518 = vpack.c.b16 %v2502, %v2502
  %v2519 = vpack.c.b16 %v2503, %v2503
  %v2520 = vpack.c.b16 %v2504, %v2504
  %v2521 = vpack.c.b16 %v2505, %v2505
  %v2522 = vpack.c.b16 %v2506, %v2506
  %v2523 = vpack.c.b16 %v2507, %v2507
  %v2524 = vpack.c.b16 %v2508, %v2508
  %v2525 = vpack.c.b16 %v2509, %v2509
  %v2526 = vpack.c.b16 %v2510, %v2510
  %v2527 = vpack.c.b16 %v2511, %v2511
  %v2528 = vpack.c.b16 %v2512, %v2512
  %v2529 = vpack.c.b16 %v2513, %v2513
  %v2530 = vpack.c.b16 %v2514, %v2514
  %2547 = vst [vmem:[%s4] sm:$0xf] %v2515
  %2548 = vst [vmem:[%s4 + $0x4] sm:$0xf] %v2516
  %2549 = vst [vmem:[%s4 + $0x8] sm:$0xf] %v2517
  %2550 = vst [vmem:[%s4 + $0xc] sm:$0xf] %v2518
  %2551 = vst [vmem:[%s4 + $0x10] sm:$0xf] %v2519
  %2552 = vst [vmem:[%s4 + $0x14] sm:$0xf] %v2520
  %2553 = vst [vmem:[%s4 + $0x18] sm:$0xf] %v2521
  %2554 = vst [vmem:[%s4 + $0x1c] sm:$0xf] %v2522
  %2555 = vst [vmem:[%s4 + $0x20] sm:$0xf] %v2523
  %2556 = vst [vmem:[%s4 + $0x24] sm:$0xf] %v2524
  %2557 = vst [vmem:[%s4 + $0x28] sm:$0xf] %v2525
  %2558 = vst [vmem:[%s4 + $0x2c] sm:$0xf] %v2526
  %2559 = vst [vmem:[%s4 + $0x30] sm:$0xf] %v2527
  %2560 = vst [vmem:[%s4 + $0x34] sm:$0xf] %v2528
  %2561 = vst [vmem:[%s4 + $0x38] sm:$0xf] %v2529
  %2562 = vst [vmem:[%s4 + $0x3c] sm:$0xf] %v2530
  // Predicated region
  $region18: #{downsamp_forward.3} parent=0 // pred_check
    _
  $region19: #{downsamp_forward.3} parent=0 // pred_check_branch
    %2564 = sbr.rel (0) target = $region21
  $region20: #{downsamp_forward.3} parent=0 // pred_region
    _
  $region21: #{downsamp_forward.3} parent=0 // pred_fallthru
    _
  // Predicated region
  $region22: #{downsamp_forward.3} parent=0 // pred_check
    _
  $region23: #{downsamp_forward.3} parent=0 // pred_check_branch
    %2566 = sbr.rel (0) target = $region25
  $region24: #{downsamp_forward.3} parent=0 // pred_region
    _
  $region25: #{downsamp_forward.3} parent=0 // pred_fallthru
    _
  // Predicated region
  $region26: #{downsamp_forward.3} parent=0 // pred_check
    _
  $region27: #{downsamp_forward.3} parent=0 // pred_check_branch
    %2568 = sbr.rel (0) target = $region29
  $region28: #{downsamp_forward.3} parent=0 // pred_region
    _
  $region29: #{downsamp_forward.3} parent=0 // pred_fallthru
    _
  // Predicated region
  $region30: #{downsamp_forward.3} parent=0 // pred_check
    _
  $region31: #{downsamp_forward.3} parent=0 // pred_check_branch
    %2570 = sbr.rel (0) target = $region33
  $region32: #{downsamp_forward.3} parent=0 // pred_region
    _
  $region33: #{downsamp_forward.3} parent=0 // pred_fallthru
    _

</llo_original>
